<compile_context>
chip_gen: v6e
topology: v6e:2x2x1
jax: 0.10.0
libtpu: 0.0.40
codegen_flags: <defaults>
</compile_context>

<pallas_src>
import jax
import jax.numpy as jnp
from jax.experimental import pallas as pl
from jax.experimental.pallas import tpu as pltpu

# ----------------------------- model sizes -----------------------------
B = 2          # batch
K = 8          # sequence length
D_MODEL = 32   # d_model
Q_DIM = 8      # per-head query/key dim
V_DIM = 8      # per-head value dim
H = 4          # heads
D_FF = 64      # PositionwiseFeedForward hidden dim (library default is 2048;
               # small value chosen for the synthetic test)
LN_EPS = 1e-5
VEC_W = max(D_MODEL, D_FF)        # lane width of the packed parameter-vector array
ATTN_SCALE = 1.0 / (K ** 0.5)     # reference scales by sqrt(seq_len), not sqrt(q)

# TODO(synk): Dropout(p=0.3) is stochastic in train mode; implemented as identity
#             (eval / inference mode).


def _layernorm(x, w, b):
    # PyTorch nn.LayerNorm: biased variance over last dim, eps=1e-5.
    mean = jnp.mean(x, axis=-1, keepdims=True)
    var = jnp.mean(jnp.square(x - mean), axis=-1, keepdims=True)
    return (x - mean) * jax.lax.rsqrt(var + LN_EPS) * w + b


# ----------------------------- the kernel -----------------------------
def _decoder_kernel(x_ref, mem_ref, wq_ref, wkv_ref, wo_ref, bqkv_ref,
                    w1_ref, w2_ref, vecs_ref, o_ref):
    f32 = jnp.float32
    x_bh = x_ref[...]      # (B*H, K, D)  -- query input, tiled over heads
    mem_bh = mem_ref[...]  # (B*H, K, D)  -- memory input, tiled over heads

    # -------- encoder-decoder multi-head attention (head-batched) --------
    # Q projection: (B*H, K, D) @ (B*H, D, q) -> (B*H, K, q)
    q = jnp.einsum("bkd,bdq->bkq", x_bh, wq_ref[...],
                   preferred_element_type=f32)
    q = q + bqkv_ref[:, :, 0:Q_DIM]
    # Fused K|V projection: (B*H, K, D) @ (B*H, D, 2q) -> (B*H, K, 2q)
    kv = jnp.einsum("bkd,bdn->bkn", mem_bh, wkv_ref[...],
                    preferred_element_type=f32)
    kv = kv + bqkv_ref[:, :, Q_DIM:3 * Q_DIM]
    k = kv[:, :, 0:Q_DIM]
    v = kv[:, :, Q_DIM:Q_DIM + V_DIM]

    # scores / softmax (reference divides by sqrt(K) == sequence length)
    s = jnp.einsum("bkq,bnq->bkn", q, k, preferred_element_type=f32) * ATTN_SCALE
    s = s - jnp.max(s, axis=-1, keepdims=True)
    p = jnp.exp(s)
    p = p * pl.reciprocal(jnp.sum(p, axis=-1, keepdims=True), approx=True)
    o = jnp.einsum("bkn,bnv->bkv", p, v, preferred_element_type=f32)  # (B*H, K, v)

    # Per-head output projection, then sum over heads
    # (identical to concat(heads) @ W_O).
    proj = jnp.einsum("bkv,bvd->bkd", o, wo_ref[...],
                      preferred_element_type=f32)          # (B*H, K, D)
    proj4 = proj.reshape(B, H, K, D_MODEL)
    attn = proj4[:, 0]
    for hi in range(1, H):                                 # H is a small constant
        attn = attn + proj4[:, hi]
    attn = attn.reshape(B * K, D_MODEL) + vecs_ref[0:1, 0:D_MODEL]  # + b_O

    # dropout -> identity; residual + LayerNorm2
    x_res = x_bh.reshape(B, H, K, D_MODEL)[:, 0].reshape(B * K, D_MODEL)
    y = _layernorm(attn + x_res,
                   vecs_ref[1:2, 0:D_MODEL], vecs_ref[2:3, 0:D_MODEL])

    # -------- position-wise feed forward (M = B*K rows, single matmuls) --------
    hdn = jnp.dot(y, w1_ref[...], preferred_element_type=f32) + vecs_ref[6:7, 0:D_FF]
    hdn = jnp.maximum(hdn, 0.0)
    ffn = jnp.dot(hdn, w2_ref[...], preferred_element_type=f32) + vecs_ref[3:4, 0:D_MODEL]

    # dropout -> identity; residual + LayerNorm3
    z = _layernorm(ffn + y, vecs_ref[4:5, 0:D_MODEL], vecs_ref[5:6, 0:D_MODEL])

    o_ref[...] = z.astype(o_ref.dtype)


# ----------------------------- parameter packing -----------------------------
def pack_params(params):
    """Re-lay-out the PyTorch-style parameters for the head-batched kernel.

    Pure weight re-layout (done once, outside the kernel); no math is changed.
    """
    (wq, bq, wk, bk, wv, bv, wo, bo,
     ln2w, ln2b, w1, b1, w2, b2, ln3w, ln3b) = params

    # Per-head weights: (D, H*q) -> (H, D, q); W_O: (H*v, D) -> (H, v, D).
    wq_h = wq.reshape(D_MODEL, H, Q_DIM).transpose(1, 0, 2)
    wk_h = wk.reshape(D_MODEL, H, Q_DIM).transpose(1, 0, 2)
    wv_h = wv.reshape(D_MODEL, H, V_DIM).transpose(1, 0, 2)
    wkv_h = jnp.concatenate([wk_h, wv_h], axis=-1)          # (H, D, q+v)
    wo_h = wo.reshape(H, V_DIM, D_MODEL)                    # (H, v, D)

    # Tile over batch so the kernel's single batch dim is B*H (index b*H + h).
    wq_bh = jnp.tile(wq_h, (B, 1, 1))                       # (B*H, D, q)
    wkv_bh = jnp.tile(wkv_h, (B, 1, 1))                     # (B*H, D, 2q)
    wo_bh = jnp.tile(wo_h, (B, 1, 1))                       # (B*H, v, D)

    # Pack the Q/K/V biases into one (B*H, 1, 3q) array.
    bqkv_h = jnp.concatenate([bq.reshape(H, Q_DIM),
                              bk.reshape(H, Q_DIM),
                              bv.reshape(H, V_DIM)], axis=-1)   # (H, 3q)
    bqkv_bh = jnp.tile(bqkv_h, (B, 1)).reshape(B * H, 1, 3 * Q_DIM)

    # Pack the remaining per-channel vectors into one (7, VEC_W) array:
    #   row 0: b_O | 1: ln2_w | 2: ln2_b | 3: b2 | 4: ln3_w | 5: ln3_b | 6: b1
    def _pad_row(v):
        v = v.reshape(1, -1)
        return jnp.pad(v, ((0, 0), (0, VEC_W - v.shape[1])))
    vecs = jnp.concatenate(
        [_pad_row(t) for t in (bo, ln2w, ln2b, b2, ln3w, ln3b, b1)], axis=0)

    return wq_bh, wkv_bh, wo_bh, bqkv_bh, w1, w2, vecs


# ----------------------------- wrapper -----------------------------
def decoder_forward(x, memory, params):
    """x, memory: (B, K, D_MODEL) float32 -> (B, K, D_MODEL) float32."""
    wq_bh, wkv_bh, wo_bh, bqkv_bh, w1, w2, vecs = pack_params(params)

    # Tile activations over heads so every attention einsum shares the single
    # B*H batch dim (8 KiB total -- negligible, and it removes all in-kernel
    # lane slicing of heads).
    x_bh = jnp.broadcast_to(x[:, None], (B, H, K, D_MODEL)).reshape(B * H, K, D_MODEL)
    mem_bh = jnp.broadcast_to(memory[:, None], (B, H, K, D_MODEL)).reshape(B * H, K, D_MODEL)

    operands = (x_bh, mem_bh, wq_bh, wkv_bh, wo_bh, bqkv_bh, w1, w2, vecs)

    def full(a):
        return pl.BlockSpec(a.shape, lambda i, _nd=a.ndim: (0,) * _nd)

    out = pl.pallas_call(
        _decoder_kernel,
        out_shape=jax.ShapeDtypeStruct((B * K, D_MODEL), jnp.float32),
        grid_spec=pltpu.PrefetchScalarGridSpec(
            num_scalar_prefetch=0,
            grid=(1,),                      # single invocation: no per-step overhead
            in_specs=[full(a) for a in operands],
            # D_MODEL=32 < 128 lanes -> masked stores, but the whole output is
            # 2 KiB; a lane-dense relayout would cost more than it saves here.
            out_specs=pl.BlockSpec((B * K, D_MODEL), lambda i: (0, 0)),
        ),
        compiler_params=pltpu.CompilerParams(
            dimension_semantics=("arbitrary",)),
    )(*operands)

    return out.reshape(B, K, D_MODEL)


# ----------------------------- reference (pure JAX) -----------------------------
def decoder_reference(x, memory, params):
    (wq, bq, wk, bk, wv, bv, wo, bo,
     ln2w, ln2b, w1, b1, w2, b2, ln3w, ln3b) = params
    q_all = x @ wq + bq
    k_all = memory @ wk + bk
    v_all = memory @ wv + bv
    heads = []
    for hi in range(H):
        qh = q_all[..., hi * Q_DIM:(hi + 1) * Q_DIM]
        kh = k_all[..., hi * Q_DIM:(hi + 1) * Q_DIM]
        vh = v_all[..., hi * V_DIM:(hi + 1) * V_DIM]
        s = jnp.einsum("bkd,bqd->bkq", qh, kh) * ATTN_SCALE
        p = jax.nn.softmax(s, axis=-1)
        heads.append(jnp.einsum("bkq,bqd->bkd", p, vh))
    attn = jnp.concatenate(heads, axis=-1)
    attn_out = attn @ wo + bo
    y = _layernorm(attn_out + x, ln2w, ln2b)
    hdn = jax.nn.relu(y @ w1 + b1)
    ffn = hdn @ w2 + b2
    return _layernorm(ffn + y, ln3w, ln3b)


def make_params(key):
    ks = jax.random.split(key, 12)

    def lin(k, n_in, n_out):
        kw, kb = jax.random.split(k)
        bound = 1.0 / jnp.sqrt(n_in)
        w = jax.random.uniform(kw, (n_in, n_out), jnp.float32, -bound, bound)
        b = jax.random.uniform(kb, (1, n_out), jnp.float32, -bound, bound)
        return w, b

    wq, bq = lin(ks[0], D_MODEL, Q_DIM * H)
    wk, bk = lin(ks[1], D_MODEL, Q_DIM * H)
    wv, bv = lin(ks[2], D_MODEL, V_DIM * H)
    wo, bo = lin(ks[3], V_DIM * H, D_MODEL)
    w1, b1 = lin(ks[4], D_MODEL, D_FF)
    w2, b2 = lin(ks[5], D_FF, D_MODEL)
    # LayerNorm default init: weight=1, bias=0
    ln2w = jnp.ones((1, D_MODEL), jnp.float32)
    ln2b = jnp.zeros((1, D_MODEL), jnp.float32)
    ln3w = jnp.ones((1, D_MODEL), jnp.float32)
    ln3b = jnp.zeros((1, D_MODEL), jnp.float32)
    return (wq, bq, wk, bk, wv, bv, wo, bo,
            ln2w, ln2b, w1, b1, w2, b2, ln3w, ln3b)


if __name__ == "__main__":
    key = jax.random.PRNGKey(0)
    kx, km, kp = jax.random.split(key, 3)
    x = jax.random.normal(kx, (B, K, D_MODEL), jnp.float32)
    memory = jax.random.normal(km, (B, K, D_MODEL), jnp.float32)
    params = make_params(kp)

    out = decoder_forward(x, memory, params)
    out = jax.block_until_ready(out)

    ref = decoder_reference(x, memory, params)
    assert out.shape == (B, K, D_MODEL)
    # Tolerance relaxed vs. exact f32 because the softmax denominator uses the
    # EUP approximate reciprocal (pl.reciprocal(..., approx=True)).
    assert jnp.allclose(out, ref, atol=2e-2, rtol=2e-2), "mismatch vs JAX reference"

    print("KERNEL_OK")
</pallas_src>

<mosaic_0001>
module attributes {stable_mosaic.version = 11 : i64} {
  func.func @_decoder_kernel(%arg0: i32, %arg1: memref<8x8x32xf32, #tpu.memory_space<vmem>>, %arg2: memref<8x8x32xf32, #tpu.memory_space<vmem>>, %arg3: memref<8x32x8xf32, #tpu.memory_space<vmem>>, %arg4: memref<8x32x16xf32, #tpu.memory_space<vmem>>, %arg5: memref<8x8x32xf32, #tpu.memory_space<vmem>>, %arg6: memref<8x1x24xf32, #tpu.memory_space<vmem>>, %arg7: memref<32x64xf32, #tpu.memory_space<vmem>>, %arg8: memref<64x32xf32, #tpu.memory_space<vmem>>, %arg9: memref<7x64xf32, #tpu.memory_space<vmem>>, %arg10: memref<16x32xf32, #tpu.memory_space<vmem>>) attributes {dimension_semantics = [#tpu.dimension_semantics<arbitrary>], iteration_bounds = array<i64: 1>, scalar_prefetch = 0 : i64, scratch_operands = 0 : i64, tpu.core_type = #tpu.core_type<tc>, window_params = [{pipeline_mode = #tpu.pipeline_mode<synchronous>, transform_indices = @transform_0, window_bounds = array<i64: 8, 8, 32>}, {pipeline_mode = #tpu.pipeline_mode<synchronous>, transform_indices = @transform_1, window_bounds = array<i64: 8, 8, 32>}, {pipeline_mode = #tpu.pipeline_mode<synchronous>, transform_indices = @transform_2, window_bounds = array<i64: 8, 32, 8>}, {pipeline_mode = #tpu.pipeline_mode<synchronous>, transform_indices = @transform_3, window_bounds = array<i64: 8, 32, 16>}, {pipeline_mode = #tpu.pipeline_mode<synchronous>, transform_indices = @transform_4, window_bounds = array<i64: 8, 8, 32>}, {pipeline_mode = #tpu.pipeline_mode<synchronous>, transform_indices = @transform_5, window_bounds = array<i64: 8, 1, 24>}, {pipeline_mode = #tpu.pipeline_mode<synchronous>, transform_indices = @transform_6, window_bounds = array<i64: 32, 64>}, {pipeline_mode = #tpu.pipeline_mode<synchronous>, transform_indices = @transform_7, window_bounds = array<i64: 64, 32>}, {pipeline_mode = #tpu.pipeline_mode<synchronous>, transform_indices = @transform_8, window_bounds = array<i64: 7, 64>}, {pipeline_mode = #tpu.pipeline_mode<synchronous>, transform_indices = @transform_9, window_bounds = array<i64: 16, 32>}]} {
    %c0 = arith.constant 0 : index
    %c0_0 = arith.constant 0 : index
    %c0_1 = arith.constant 0 : index
    %0 = vector.load %arg1[%c0, %c0_0, %c0_1] : memref<8x8x32xf32, #tpu.memory_space<vmem>>, vector<8x8x32xf32>
    %c0_2 = arith.constant 0 : index
    %c0_3 = arith.constant 0 : index
    %c0_4 = arith.constant 0 : index
    %1 = vector.load %arg2[%c0_2, %c0_3, %c0_4] : memref<8x8x32xf32, #tpu.memory_space<vmem>>, vector<8x8x32xf32>
    %c0_5 = arith.constant 0 : index
    %c0_6 = arith.constant 0 : index
    %c0_7 = arith.constant 0 : index
    %2 = vector.load %arg3[%c0_5, %c0_6, %c0_7] : memref<8x32x8xf32, #tpu.memory_space<vmem>>, vector<8x32x8xf32>
    "tpu.trace_start"() <{level = 10 : i32, message = "bkd,bdq->bkq"}> : () -> ()
    %cst = arith.constant dense<0.000000e+00> : vector<8x8x8xf32>
    %3 = tpu.matmul %0, %2, %cst {dimension_numbers = #tpu.dot_dimension_numbers<[2], [1], [1], [2], [0, 0, 0, 1, 1, 2], [0], [0]>} : vector<8x8x32xf32>, vector<8x32x8xf32>, vector<8x8x8xf32> -> vector<8x8x8xf32>
    "tpu.trace_stop"() : () -> ()
    %c0_8 = arith.constant 0 : index
    %c0_9 = arith.constant 0 : index
    %c0_10 = arith.constant 0 : index
    %4 = vector.load %arg6[%c0_8, %c0_9, %c0_10] : memref<8x1x24xf32, #tpu.memory_space<vmem>>, vector<8x1x8xf32>
    %5 = vector.broadcast %4 : vector<8x1x8xf32> to vector<8x8x8xf32>
    %6 = arith.addf %3, %5 : vector<8x8x8xf32>
    %c0_11 = arith.constant 0 : index
    %c0_12 = arith.constant 0 : index
    %c0_13 = arith.constant 0 : index
    %7 = vector.load %arg4[%c0_11, %c0_12, %c0_13] : memref<8x32x16xf32, #tpu.memory_space<vmem>>, vector<8x32x16xf32>
    "tpu.trace_start"() <{level = 10 : i32, message = "bkd,bdn->bkn"}> : () -> ()
    %cst_14 = arith.constant dense<0.000000e+00> : vector<8x8x16xf32>
    %8 = tpu.matmul %1, %7, %cst_14 {dimension_numbers = #tpu.dot_dimension_numbers<[2], [1], [1], [2], [0, 0, 0, 1, 1, 2], [0], [0]>} : vector<8x8x32xf32>, vector<8x32x16xf32>, vector<8x8x16xf32> -> vector<8x8x16xf32>
    "tpu.trace_stop"() : () -> ()
    %c0_15 = arith.constant 0 : index
    %c0_16 = arith.constant 0 : index
    %c8 = arith.constant 8 : index
    %9 = vector.load %arg6[%c0_15, %c0_16, %c8] : memref<8x1x24xf32, #tpu.memory_space<vmem>>, vector<8x1x16xf32>
    %10 = vector.broadcast %9 : vector<8x1x16xf32> to vector<8x8x16xf32>
    %11 = arith.addf %8, %10 : vector<8x8x16xf32>
    %12 = vector.extract_strided_slice %11 {offsets = [0, 0, 0], sizes = [8, 8, 8], strides = [1, 1, 1]} : vector<8x8x16xf32> to vector<8x8x8xf32>
    %13 = vector.extract_strided_slice %11 {offsets = [0, 0, 8], sizes = [8, 8, 8], strides = [1, 1, 1]} : vector<8x8x16xf32> to vector<8x8x8xf32>
    "tpu.trace_start"() <{level = 10 : i32, message = "bkq,bnq->bkn"}> : () -> ()
    %cst_17 = arith.constant dense<0.000000e+00> : vector<8x8x8xf32>
    %14 = tpu.matmul %6, %12, %cst_17 {dimension_numbers = #tpu.dot_dimension_numbers<[2], [2], [1], [1], [0, 0, 0, 1, 1, 1], [0], [0]>} : vector<8x8x8xf32>, vector<8x8x8xf32>, vector<8x8x8xf32> -> vector<8x8x8xf32>
    "tpu.trace_stop"() : () -> ()
    %cst_18 = arith.constant 0.353553385 : f32
    %15 = vector.broadcast %cst_18 : f32 to vector<8x8x8xf32>
    %16 = arith.mulf %14, %15 : vector<8x8x8xf32>
    %cst_19 = arith.constant dense<0xFF800000> : vector<8x8xf32>
    %17 = vector.multi_reduction <maximumf>, %16, %cst_19 [2] : vector<8x8x8xf32> to vector<8x8xf32>
    %18 = vector.shape_cast %17 : vector<8x8xf32> to vector<8x8x1xf32>
    %19 = vector.broadcast %18 : vector<8x8x1xf32> to vector<8x8x8xf32>
    %20 = arith.subf %16, %19 : vector<8x8x8xf32>
    %21 = math.exp %20 : vector<8x8x8xf32>
    %cst_20 = arith.constant dense<0.000000e+00> : vector<8x8xf32>
    %22 = vector.multi_reduction <add>, %21, %cst_20 [2] : vector<8x8x8xf32> to vector<8x8xf32>
    %23 = vector.shape_cast %22 : vector<8x8xf32> to vector<8x8x1xf32>
    %24 = tpu.reciprocal %23 {approx = true} : vector<8x8x1xf32> -> vector<8x8x1xf32>
    %25 = vector.broadcast %24 : vector<8x8x1xf32> to vector<8x8x8xf32>
    %26 = arith.mulf %21, %25 : vector<8x8x8xf32>
    "tpu.trace_start"() <{level = 10 : i32, message = "bkn,bnv->bkv"}> : () -> ()
    %cst_21 = arith.constant dense<0.000000e+00> : vector<8x8x8xf32>
    %27 = tpu.matmul %26, %13, %cst_21 {dimension_numbers = #tpu.dot_dimension_numbers<[2], [1], [1], [2], [0, 0, 0, 1, 1, 2], [0], [0]>} : vector<8x8x8xf32>, vector<8x8x8xf32>, vector<8x8x8xf32> -> vector<8x8x8xf32>
    "tpu.trace_stop"() : () -> ()
    %c0_22 = arith.constant 0 : index
    %c0_23 = arith.constant 0 : index
    %c0_24 = arith.constant 0 : index
    %28 = vector.load %arg5[%c0_22, %c0_23, %c0_24] : memref<8x8x32xf32, #tpu.memory_space<vmem>>, vector<8x8x32xf32>
    "tpu.trace_start"() <{level = 10 : i32, message = "bkv,bvd->bkd"}> : () -> ()
    %cst_25 = arith.constant dense<0.000000e+00> : vector<8x8x32xf32>
    %29 = tpu.matmul %27, %28, %cst_25 {dimension_numbers = #tpu.dot_dimension_numbers<[2], [1], [1], [2], [0, 0, 0, 1, 1, 2], [0], [0]>} : vector<8x8x8xf32>, vector<8x8x32xf32>, vector<8x8x32xf32> -> vector<8x8x32xf32>
    "tpu.trace_stop"() : () -> ()
    %30 = vector.shape_cast %29 : vector<8x8x32xf32> to vector<2x4x8x32xf32>
    %31 = vector.extract_strided_slice %30 {offsets = [0, 0, 0, 0], sizes = [2, 1, 8, 32], strides = [1, 1, 1, 1]} : vector<2x4x8x32xf32> to vector<2x1x8x32xf32>
    %32 = vector.shape_cast %31 : vector<2x1x8x32xf32> to vector<2x8x32xf32>
    %33 = vector.extract_strided_slice %30 {offsets = [0, 1, 0, 0], sizes = [2, 1, 8, 32], strides = [1, 1, 1, 1]} : vector<2x4x8x32xf32> to vector<2x1x8x32xf32>
    %34 = vector.shape_cast %33 : vector<2x1x8x32xf32> to vector<2x8x32xf32>
    %35 = arith.addf %32, %34 : vector<2x8x32xf32>
    %36 = vector.extract_strided_slice %30 {offsets = [0, 2, 0, 0], sizes = [2, 1, 8, 32], strides = [1, 1, 1, 1]} : vector<2x4x8x32xf32> to vector<2x1x8x32xf32>
    %37 = vector.shape_cast %36 : vector<2x1x8x32xf32> to vector<2x8x32xf32>
    %38 = arith.addf %35, %37 : vector<2x8x32xf32>
    %39 = vector.extract_strided_slice %30 {offsets = [0, 3, 0, 0], sizes = [2, 1, 8, 32], strides = [1, 1, 1, 1]} : vector<2x4x8x32xf32> to vector<2x1x8x32xf32>
    %40 = vector.shape_cast %39 : vector<2x1x8x32xf32> to vector<2x8x32xf32>
    %41 = arith.addf %38, %40 : vector<2x8x32xf32>
    %42 = vector.shape_cast %41 : vector<2x8x32xf32> to vector<16x32xf32>
    %c0_26 = arith.constant 0 : index
    %c0_27 = arith.constant 0 : index
    %43 = vector.load %arg9[%c0_26, %c0_27] : memref<7x64xf32, #tpu.memory_space<vmem>>, vector<1x32xf32>
    %44 = vector.broadcast %43 : vector<1x32xf32> to vector<16x32xf32>
    %45 = arith.addf %42, %44 : vector<16x32xf32>
    %46 = vector.shape_cast %0 : vector<8x8x32xf32> to vector<2x4x8x32xf32>
    %47 = vector.extract_strided_slice %46 {offsets = [0, 0, 0, 0], sizes = [2, 1, 8, 32], strides = [1, 1, 1, 1]} : vector<2x4x8x32xf32> to vector<2x1x8x32xf32>
    %48 = vector.shape_cast %47 : vector<2x1x8x32xf32> to vector<2x8x32xf32>
    %49 = vector.shape_cast %48 : vector<2x8x32xf32> to vector<16x32xf32>
    %50 = arith.addf %45, %49 : vector<16x32xf32>
    %c1 = arith.constant 1 : index
    %c0_28 = arith.constant 0 : index
    %51 = vector.load %arg9[%c1, %c0_28] : memref<7x64xf32, #tpu.memory_space<vmem>>, vector<1x32xf32>
    %c2 = arith.constant 2 : index
    %c0_29 = arith.constant 0 : index
    %52 = vector.load %arg9[%c2, %c0_29] : memref<7x64xf32, #tpu.memory_space<vmem>>, vector<1x32xf32>
    %cst_30 = arith.constant dense<0.000000e+00> : vector<16xf32>
    %53 = vector.multi_reduction <add>, %50, %cst_30 [1] : vector<16x32xf32> to vector<16xf32>
    %54 = vector.shape_cast %53 : vector<16xf32> to vector<16x1xf32>
    %cst_31 = arith.constant 3.200000e+01 : f32
    %55 = vector.broadcast %cst_31 : f32 to vector<16x1xf32>
    %56 = arith.divf %54, %55 : vector<16x1xf32>
    %57 = vector.broadcast %56 : vector<16x1xf32> to vector<16x32xf32>
    %58 = arith.subf %50, %57 : vector<16x32xf32>
    %59 = arith.mulf %58, %58 : vector<16x32xf32>
    %cst_32 = arith.constant dense<0.000000e+00> : vector<16xf32>
    %60 = vector.multi_reduction <add>, %59, %cst_32 [1] : vector<16x32xf32> to vector<16xf32>
    %61 = vector.shape_cast %60 : vector<16xf32> to vector<16x1xf32>
    %cst_33 = arith.constant 3.200000e+01 : f32
    %62 = vector.broadcast %cst_33 : f32 to vector<16x1xf32>
    %63 = arith.divf %61, %62 : vector<16x1xf32>
    %64 = vector.broadcast %56 : vector<16x1xf32> to vector<16x32xf32>
    %65 = arith.subf %50, %64 : vector<16x32xf32>
    %cst_34 = arith.constant 9.99999974E-6 : f32
    %66 = vector.broadcast %cst_34 : f32 to vector<16x1xf32>
    %67 = arith.addf %63, %66 : vector<16x1xf32>
    %68 = math.rsqrt %67 : vector<16x1xf32>
    %69 = vector.broadcast %68 : vector<16x1xf32> to vector<16x32xf32>
    %70 = arith.mulf %65, %69 : vector<16x32xf32>
    %71 = vector.broadcast %51 : vector<1x32xf32> to vector<16x32xf32>
    %72 = arith.mulf %70, %71 : vector<16x32xf32>
    %73 = vector.broadcast %52 : vector<1x32xf32> to vector<16x32xf32>
    %74 = arith.addf %72, %73 : vector<16x32xf32>
    %c0_35 = arith.constant 0 : index
    %c0_36 = arith.constant 0 : index
    %75 = vector.load %arg7[%c0_35, %c0_36] : memref<32x64xf32, #tpu.memory_space<vmem>>, vector<32x64xf32>
    %cst_37 = arith.constant dense<0.000000e+00> : vector<16x64xf32>
    %76 = tpu.matmul %74, %75, %cst_37 {dimension_numbers = #tpu.dot_dimension_numbers<[1], [0], [0], [1], [0, 0, 1, 1], [], []>} : vector<16x32xf32>, vector<32x64xf32>, vector<16x64xf32> -> vector<16x64xf32>
    %c6 = arith.constant 6 : index
    %c0_38 = arith.constant 0 : index
    %77 = vector.load %arg9[%c6, %c0_38] : memref<7x64xf32, #tpu.memory_space<vmem>>, vector<1x64xf32>
    %78 = vector.broadcast %77 : vector<1x64xf32> to vector<16x64xf32>
    %79 = arith.addf %76, %78 : vector<16x64xf32>
    %cst_39 = arith.constant 0.000000e+00 : f32
    %80 = vector.broadcast %cst_39 : f32 to vector<16x64xf32>
    %81 = arith.maximumf %79, %80 : vector<16x64xf32>
    %c0_40 = arith.constant 0 : index
    %c0_41 = arith.constant 0 : index
    %82 = vector.load %arg8[%c0_40, %c0_41] : memref<64x32xf32, #tpu.memory_space<vmem>>, vector<64x32xf32>
    %cst_42 = arith.constant dense<0.000000e+00> : vector<16x32xf32>
    %83 = tpu.matmul %81, %82, %cst_42 {dimension_numbers = #tpu.dot_dimension_numbers<[1], [0], [0], [1], [0, 0, 1, 1], [], []>} : vector<16x64xf32>, vector<64x32xf32>, vector<16x32xf32> -> vector<16x32xf32>
    %c3 = arith.constant 3 : index
    %c0_43 = arith.constant 0 : index
    %84 = vector.load %arg9[%c3, %c0_43] : memref<7x64xf32, #tpu.memory_space<vmem>>, vector<1x32xf32>
    %85 = vector.broadcast %84 : vector<1x32xf32> to vector<16x32xf32>
    %86 = arith.addf %83, %85 : vector<16x32xf32>
    %87 = arith.addf %86, %74 : vector<16x32xf32>
    %c4 = arith.constant 4 : index
    %c0_44 = arith.constant 0 : index
    %88 = vector.load %arg9[%c4, %c0_44] : memref<7x64xf32, #tpu.memory_space<vmem>>, vector<1x32xf32>
    %c5 = arith.constant 5 : index
    %c0_45 = arith.constant 0 : index
    %89 = vector.load %arg9[%c5, %c0_45] : memref<7x64xf32, #tpu.memory_space<vmem>>, vector<1x32xf32>
    %cst_46 = arith.constant dense<0.000000e+00> : vector<16xf32>
    %90 = vector.multi_reduction <add>, %87, %cst_46 [1] : vector<16x32xf32> to vector<16xf32>
    %91 = vector.shape_cast %90 : vector<16xf32> to vector<16x1xf32>
    %cst_47 = arith.constant 3.200000e+01 : f32
    %92 = vector.broadcast %cst_47 : f32 to vector<16x1xf32>
    %93 = arith.divf %91, %92 : vector<16x1xf32>
    %94 = vector.broadcast %93 : vector<16x1xf32> to vector<16x32xf32>
    %95 = arith.subf %87, %94 : vector<16x32xf32>
    %96 = arith.mulf %95, %95 : vector<16x32xf32>
    %cst_48 = arith.constant dense<0.000000e+00> : vector<16xf32>
    %97 = vector.multi_reduction <add>, %96, %cst_48 [1] : vector<16x32xf32> to vector<16xf32>
    %98 = vector.shape_cast %97 : vector<16xf32> to vector<16x1xf32>
    %cst_49 = arith.constant 3.200000e+01 : f32
    %99 = vector.broadcast %cst_49 : f32 to vector<16x1xf32>
    %100 = arith.divf %98, %99 : vector<16x1xf32>
    %101 = vector.broadcast %93 : vector<16x1xf32> to vector<16x32xf32>
    %102 = arith.subf %87, %101 : vector<16x32xf32>
    %cst_50 = arith.constant 9.99999974E-6 : f32
    %103 = vector.broadcast %cst_50 : f32 to vector<16x1xf32>
    %104 = arith.addf %100, %103 : vector<16x1xf32>
    %105 = math.rsqrt %104 : vector<16x1xf32>
    %106 = vector.broadcast %105 : vector<16x1xf32> to vector<16x32xf32>
    %107 = arith.mulf %102, %106 : vector<16x32xf32>
    %108 = vector.broadcast %88 : vector<1x32xf32> to vector<16x32xf32>
    %109 = arith.mulf %107, %108 : vector<16x32xf32>
    %110 = vector.broadcast %89 : vector<1x32xf32> to vector<16x32xf32>
    %111 = arith.addf %109, %110 : vector<16x32xf32>
    %c0_51 = arith.constant 0 : index
    %c0_52 = arith.constant 0 : index
    %112 = vector.load %arg10[%c0_51, %c0_52] : memref<16x32xf32, #tpu.memory_space<vmem>>, vector<16x32xf32>
    tpu.vector_store %arg10[%c0_51, %c0_52], %111 {strides = array<i32>} : memref<16x32xf32, #tpu.memory_space<vmem>>, vector<16x32xf32>,
    return
  }
  func.func @transform_0(%arg0: i32) -> (i32, i32, i32) {
    %c0_i32 = arith.constant 0 : i32
    %c0_i32_0 = arith.constant 0 : i32
    %c0_i32_1 = arith.constant 0 : i32
    %c0_i32_2 = arith.constant 0 : i32
    return %c0_i32, %c0_i32_0, %c0_i32_1 : i32, i32, i32
  }
  func.func @transform_1(%arg0: i32) -> (i32, i32, i32) {
    %c0_i32 = arith.constant 0 : i32
    %c0_i32_0 = arith.constant 0 : i32
    %c0_i32_1 = arith.constant 0 : i32
    %c0_i32_2 = arith.constant 0 : i32
    return %c0_i32, %c0_i32_0, %c0_i32_1 : i32, i32, i32
  }
  func.func @transform_2(%arg0: i32) -> (i32, i32, i32) {
    %c0_i32 = arith.constant 0 : i32
    %c0_i32_0 = arith.constant 0 : i32
    %c0_i32_1 = arith.constant 0 : i32
    %c0_i32_2 = arith.constant 0 : i32
    return %c0_i32, %c0_i32_0, %c0_i32_1 : i32, i32, i32
  }
  func.func @transform_3(%arg0: i32) -> (i32, i32, i32) {
    %c0_i32 = arith.constant 0 : i32
    %c0_i32_0 = arith.constant 0 : i32
    %c0_i32_1 = arith.constant 0 : i32
    %c0_i32_2 = arith.constant 0 : i32
    return %c0_i32, %c0_i32_0, %c0_i32_1 : i32, i32, i32
  }
  func.func @transform_4(%arg0: i32) -> (i32, i32, i32) {
    %c0_i32 = arith.constant 0 : i32
    %c0_i32_0 = arith.constant 0 : i32
    %c0_i32_1 = arith.constant 0 : i32
    %c0_i32_2 = arith.constant 0 : i32
    return %c0_i32, %c0_i32_0, %c0_i32_1 : i32, i32, i32
  }
  func.func @transform_5(%arg0: i32) -> (i32, i32, i32) {
    %c0_i32 = arith.constant 0 : i32
    %c0_i32_0 = arith.constant 0 : i32
    %c0_i32_1 = arith.constant 0 : i32
    %c0_i32_2 = arith.constant 0 : i32
    return %c0_i32, %c0_i32_0, %c0_i32_1 : i32, i32, i32
  }
  func.func @transform_6(%arg0: i32) -> (i32, i32) {
    %c0_i32 = arith.constant 0 : i32
    %c0_i32_0 = arith.constant 0 : i32
    %c0_i32_1 = arith.constant 0 : i32
    return %c0_i32, %c0_i32_0 : i32, i32
  }
  func.func @transform_7(%arg0: i32) -> (i32, i32) {
    %c0_i32 = arith.constant 0 : i32
    %c0_i32_0 = arith.constant 0 : i32
    %c0_i32_1 = arith.constant 0 : i32
    return %c0_i32, %c0_i32_0 : i32, i32
  }
  func.func @transform_8(%arg0: i32) -> (i32, i32) {
    %c0_i32 = arith.constant 0 : i32
    %c0_i32_0 = arith.constant 0 : i32
    %c0_i32_1 = arith.constant 0 : i32
    return %c0_i32, %c0_i32_0 : i32, i32
  }
  func.func @transform_9(%arg0: i32) -> (i32, i32) {
    %c0_i32 = arith.constant 0 : i32
    %c0_i32_0 = arith.constant 0 : i32
    %c0_i32_1 = arith.constant 0 : i32
    return %c0_i32, %c0_i32_0 : i32, i32
  }
}

</mosaic_0001>

<llo_original>
// kernel: tpu_custom_call.1
$region0: #{tpu_custom_call.1}
  #allocation0 [shape = 'u32[]', space=smem, size = 0x4, offset = 0x4, fixed_abs, tag = 'smem constant byte address 0x4 - core index']
  #allocation1 [shape = 'u32[144,128]{1,0:T(1,128)}', space=vmem, size = 0x12000, scoped, tag = 'internal scratch']
  %s0 = inlined_call_operand.vmem [shape: f32[8,8,32], index: 0, kind: input, shape index: {}]
  %s1 = inlined_call_operand.vmem [shape: f32[8,8,32], index: 1, kind: input, shape index: {}]
  %s2 = inlined_call_operand.vmem [shape: f32[8,32,8], index: 2, kind: input, shape index: {}]
  %s3 = inlined_call_operand.vmem [shape: f32[8,32,16], index: 3, kind: input, shape index: {}]
  %s4 = inlined_call_operand.vmem [shape: f32[8,8,32], index: 4, kind: input, shape index: {}]
  %s5 = inlined_call_operand.vmem [shape: f32[8,1,24], index: 5, kind: input, shape index: {}]
  %s6 = inlined_call_operand.vmem [shape: f32[32,64], index: 6, kind: input, shape index: {}]
  %s7 = inlined_call_operand.vmem [shape: f32[64,32], index: 7, kind: input, shape index: {}]
  %s8 = inlined_call_operand.vmem [shape: f32[7,64], index: 8, kind: input, shape index: {}]
  %s9 = inlined_call_operand.hbm [shape: f32[16,32], index: 9, kind: output, shape index: {}]
  %s10 = sld [smem:[#allocation0]]
  $region46: #{tpu_custom_call.1} parent=0
    _
  %s12 = ssub.s32 1, %s10
  %s13 = scalar_select 0, %s12, %s10
  $region1: #{tpu_custom_call.1} parent=0
    #allocation2 [shape = 'u8[8192]{0}', space=vmem, size = 0x2000, scoped, tag = 'output window, operand 0, single buffered']
    #allocation3 [shape = 's32[1]{0}', space=sflag, size = 0x4, scoped, tag = 'scoped memory for tpu_custom_call.1']
    %14 = vsyncpa [#allocation3], 0
    // Predicated region
    $region2: #{tpu_custom_call.1} parent=1 // pred_check
      _
    $region3: #{tpu_custom_call.1} parent=1 // pred_check_branch
      %16 = sbr.rel (0) target = $region5
    $region4: #{tpu_custom_call.1} parent=1 // pred_region
      _
    $region5: #{tpu_custom_call.1} parent=1 // pred_fallthru
      _
    // Predicated region
    $region6: #{tpu_custom_call.1} parent=1 // pred_check
      _
    $region7: #{tpu_custom_call.1} parent=1 // pred_check_branch
      %18 = sbr.rel (0) target = $region9
    $region8: #{tpu_custom_call.1} parent=1 // pred_region
      _
    $region9: #{tpu_custom_call.1} parent=1 // pred_fallthru
      _
    // Predicated region
    $region10: #{tpu_custom_call.1} parent=1 // pred_check
      _
    $region11: #{tpu_custom_call.1} parent=1 // pred_check_branch
      %20 = sbr.rel (0) target = $region13
    $region12: #{tpu_custom_call.1} parent=1 // pred_region
      _
    $region13: #{tpu_custom_call.1} parent=1 // pred_fallthru
      _
    // Predicated region
    $region14: #{tpu_custom_call.1} parent=1 // pred_check
      _
    $region15: #{tpu_custom_call.1} parent=1 // pred_check_branch
      %22 = sbr.rel (0) target = $region17
    $region16: #{tpu_custom_call.1} parent=1 // pred_region
      _
    $region17: #{tpu_custom_call.1} parent=1 // pred_fallthru
      _
    // Predicated region
    $region18: #{tpu_custom_call.1} parent=1 // pred_check
      _
    $region19: #{tpu_custom_call.1} parent=1 // pred_check_branch
      %24 = sbr.rel (0) target = $region21
    $region20: #{tpu_custom_call.1} parent=1 // pred_region
      _
    $region21: #{tpu_custom_call.1} parent=1 // pred_fallthru
      _
    // Predicated region
    $region22: #{tpu_custom_call.1} parent=1 // pred_check
      _
    $region23: #{tpu_custom_call.1} parent=1 // pred_check_branch
      %26 = sbr.rel (0) target = $region25
    $region24: #{tpu_custom_call.1} parent=1 // pred_region
      _
    $region25: #{tpu_custom_call.1} parent=1 // pred_fallthru
      _
    // Predicated region
    $region26: #{tpu_custom_call.1} parent=1 // pred_check
      _
    $region27: #{tpu_custom_call.1} parent=1 // pred_check_branch
      %28 = sbr.rel (0) target = $region29
    $region28: #{tpu_custom_call.1} parent=1 // pred_region
      _
    $region29: #{tpu_custom_call.1} parent=1 // pred_fallthru
      _
    // Predicated region
    $region30: #{tpu_custom_call.1} parent=1 // pred_check
      _
    $region31: #{tpu_custom_call.1} parent=1 // pred_check_branch
      %30 = sbr.rel (0) target = $region33
    $region32: #{tpu_custom_call.1} parent=1 // pred_region
      _
    $region33: #{tpu_custom_call.1} parent=1 // pred_fallthru
      _
    // Predicated region
    $region34: #{tpu_custom_call.1} parent=1 // pred_check
      _
    $region35: #{tpu_custom_call.1} parent=1 // pred_check_branch
      %32 = sbr.rel (0) target = $region37
    $region36: #{tpu_custom_call.1} parent=1 // pred_region
      _
    $region37: #{tpu_custom_call.1} parent=1 // pred_fallthru
      _
    %v33 = vld [vmem:[%s0] sm:$0xff]
    %v34 = vld [vmem:[%s0 + $0x8] sm:$0xff]
    %v35 = vld [vmem:[%s0 + $0x10] sm:$0xff]
    %v36 = vld [vmem:[%s0 + $0x18] sm:$0xff]
    %v37 = vld [vmem:[%s0 + $0x20] sm:$0xff]
    %v38 = vld [vmem:[%s0 + $0x28] sm:$0xff]
    %v39 = vld [vmem:[%s0 + $0x30] sm:$0xff]
    %v40 = vld [vmem:[%s0 + $0x38] sm:$0xff]
    %v41 = vld [vmem:[%s1] sm:$0xff]
    %v42 = vld [vmem:[%s1 + $0x8] sm:$0xff]
    %v43 = vld [vmem:[%s1 + $0x10] sm:$0xff]
    %v44 = vld [vmem:[%s1 + $0x18] sm:$0xff]
    %v45 = vld [vmem:[%s1 + $0x20] sm:$0xff]
    %v46 = vld [vmem:[%s1 + $0x28] sm:$0xff]
    %v47 = vld [vmem:[%s1 + $0x30] sm:$0xff]
    %v48 = vld [vmem:[%s1 + $0x38] sm:$0xff]
    %v49 = vld [vmem:[%s2] sm:$0xff]
    %v50 = vld [vmem:[%s2 + $0x8] sm:$0xff]
    %v51 = vld [vmem:[%s2 + $0x10] sm:$0xff]
    %v52 = vld [vmem:[%s2 + $0x18] sm:$0xff]
    %v53 = vld [vmem:[%s2 + $0x20] sm:$0xff]
    %v54 = vld [vmem:[%s2 + $0x28] sm:$0xff]
    %v55 = vld [vmem:[%s2 + $0x30] sm:$0xff]
    %v56 = vld [vmem:[%s2 + $0x38] sm:$0xff]
    %v57 = vld [vmem:[%s2 + $0x40] sm:$0xff]
    %v58 = vld [vmem:[%s2 + $0x48] sm:$0xff]
    %v59 = vld [vmem:[%s2 + $0x50] sm:$0xff]
    %v60 = vld [vmem:[%s2 + $0x58] sm:$0xff]
    %v61 = vld [vmem:[%s2 + $0x60] sm:$0xff]
    %v62 = vld [vmem:[%s2 + $0x68] sm:$0xff]
    %v63 = vld [vmem:[%s2 + $0x70] sm:$0xff]
    %v64 = vld [vmem:[%s2 + $0x78] sm:$0xff]
    %v65 = vld [vmem:[%s2 + $0x80] sm:$0xff]
    %v66 = vld [vmem:[%s2 + $0x88] sm:$0xff]
    %v67 = vld [vmem:[%s2 + $0x90] sm:$0xff]
    %v68 = vld [vmem:[%s2 + $0x98] sm:$0xff]
    %v69 = vld [vmem:[%s2 + $0xa0] sm:$0xff]
    %v70 = vld [vmem:[%s2 + $0xa8] sm:$0xff]
    %v71 = vld [vmem:[%s2 + $0xb0] sm:$0xff]
    %v72 = vld [vmem:[%s2 + $0xb8] sm:$0xff]
    %v73 = vld [vmem:[%s2 + $0xc0] sm:$0xff]
    %v74 = vld [vmem:[%s2 + $0xc8] sm:$0xff]
    %v75 = vld [vmem:[%s2 + $0xd0] sm:$0xff]
    %v76 = vld [vmem:[%s2 + $0xd8] sm:$0xff]
    %v77 = vld [vmem:[%s2 + $0xe0] sm:$0xff]
    %v78 = vld [vmem:[%s2 + $0xe8] sm:$0xff]
    %v79 = vld [vmem:[%s2 + $0xf0] sm:$0xff]
    %v80 = vld [vmem:[%s2 + $0xf8] sm:$0xff]
    %v81 = vld [vmem:[%s5] sm:$0x1]
    %v82 = vld [vmem:[%s5 + $0x1] sm:$0x1]
    %v83 = vld [vmem:[%s5 + $0x2] sm:$0x1]
    %v84 = vld [vmem:[%s5 + $0x3] sm:$0x1]
    %v85 = vld [vmem:[%s5 + $0x4] sm:$0x1]
    %v86 = vld [vmem:[%s5 + $0x5] sm:$0x1]
    %v87 = vld [vmem:[%s5 + $0x6] sm:$0x1]
    %v88 = vld [vmem:[%s5 + $0x7] sm:$0x1]
    %v97 = vlaneseq
    %v98 = vshrl.u32 %v97, 7
    %v99 = vsub.s32 0, %v98
    %v100 = vrot.slane %v81, %v99
    %v101 = vlaneseq
    %v102 = vshrl.u32 %v101, 7
    %v103 = vsub.s32 0, %v102
    %v104 = vrot.slane %v82, %v103
    %v105 = vlaneseq
    %v106 = vshrl.u32 %v105, 7
    %v107 = vsub.s32 0, %v106
    %v108 = vrot.slane %v83, %v107
    %v109 = vlaneseq
    %v110 = vshrl.u32 %v109, 7
    %v111 = vsub.s32 0, %v110
    %v112 = vrot.slane %v84, %v111
    %v113 = vlaneseq
    %v114 = vshrl.u32 %v113, 7
    %v115 = vsub.s32 0, %v114
    %v116 = vrot.slane %v85, %v115
    %v117 = vlaneseq
    %v118 = vshrl.u32 %v117, 7
    %v119 = vsub.s32 0, %v118
    %v120 = vrot.slane %v86, %v119
    %v121 = vlaneseq
    %v122 = vshrl.u32 %v121, 7
    %v123 = vsub.s32 0, %v122
    %v124 = vrot.slane %v87, %v123
    %v125 = vlaneseq
    %v126 = vshrl.u32 %v125, 7
    %v127 = vsub.s32 0, %v126
    %v128 = vrot.slane %v88, %v127
    %vm137 = vcmask 261120
    %v139 = vsel %vm137, %v33, 0
    %141 = vmatprep.subr.mxu0 0.0
    %142 = vmatpush1.msra.mxu0 0.0
    %143 = vmatprep.subr.mxu0 0.0
    %144 = vmatpush1.msra.mxu0 0.0
    %145 = vmatprep.subr.mxu0 0.0
    %146 = vmatpush1.msra.mxu0 0.0
    %147 = vmatprep.subr.mxu0 0.0
    %148 = vmatpush1.msra.mxu0 0.0
    %149 = vmatprep.subr.mxu0 0.0
    %150 = vmatpush1.msra.mxu0 0.0
    %151 = vmatprep.subr.mxu0 0.0
    %152 = vmatpush1.msra.mxu0 0.0
    %153 = vmatprep.subr.mxu0 0.0
    %154 = vmatpush1.msra.mxu0 0.0
    %155 = vmatprep.subr.mxu0 0.0
    %156 = vmatpush1.msra.mxu0 0.0
    %157 = vmatprep.subr.mxu0 0.0
    %158 = vmatpush1.msra.mxu0 0.0
    %159 = vmatprep.subr.mxu0 0.0
    %160 = vmatpush1.msra.mxu0 0.0
    %161 = vmatprep.subr.mxu0 0.0
    %162 = vmatpush1.msra.mxu0 0.0
    %163 = vmatprep.subr.mxu0 0.0
    %164 = vmatpush1.msra.mxu0 0.0
    %165 = vmatprep.subr.mxu0 0.0
    %166 = vmatpush1.msra.mxu0 %v52
    %167 = vmatprep.subr.mxu0 0.0
    %168 = vmatpush1.msra.mxu0 %v51
    %169 = vmatprep.subr.mxu0 0.0
    %170 = vmatpush1.msra.mxu0 %v50
    %171 = vmatprep.subr.mxu0 0.0
    %172 = vmatpush1.msra.mxu0 %v49
    %173 = vmatprep.subr.mxu0 0.0
    %174 = vmatpush2.msra.mxu0 0.0
    %175 = vmatprep.subr.mxu0 0.0
    %176 = vmatpush2.msra.mxu0 0.0
    %177 = vmatprep.subr.mxu0 0.0
    %178 = vmatpush2.msra.mxu0 0.0
    %179 = vmatprep.subr.mxu0 0.0
    %180 = vmatpush2.msra.mxu0 0.0
    %181 = vmatprep.subr.mxu0 0.0
    %182 = vmatpush2.msra.mxu0 0.0
    %183 = vmatprep.subr.mxu0 0.0
    %184 = vmatpush2.msra.mxu0 0.0
    %185 = vmatprep.subr.mxu0 0.0
    %186 = vmatpush2.msra.mxu0 0.0
    %187 = vmatprep.subr.mxu0 0.0
    %188 = vmatpush2.msra.mxu0 0.0
    %189 = vmatprep.subr.mxu0 0.0
    %190 = vmatpush2.msra.mxu0 0.0
    %191 = vmatprep.subr.mxu0 0.0
    %192 = vmatpush2.msra.mxu0 0.0
    %193 = vmatprep.subr.mxu0 0.0
    %194 = vmatpush2.msra.mxu0 0.0
    %195 = vmatprep.subr.mxu0 0.0
    %196 = vmatpush2.msra.mxu0 0.0
    %197 = vmatprep.subr.mxu0 0.0
    %198 = vmatpush2.msra.mxu0 0.0
    %199 = vmatprep.subr.mxu0 0.0
    %200 = vmatpush2.msra.mxu0 0.0
    %201 = vmatprep.subr.mxu0 0.0
    %202 = vmatpush2.msra.mxu0 0.0
    %203 = vmatprep.subr.mxu0 0.0
    %204 = vmatpush2.msra.mxu0 0.0
    %205 = vmatprep.mubr.f32.mxu0 0.0
    %206 = vmatmul.mubr.f32.gmra.mxu0 %v139
    %v207 = vpop.f32.mrf.mxu0
    %v208 = vadd.f32 %v100, %v207
    %v209 = vpop.f32.mrf.mxu0
    %210 = vdwg.mxu0
    %v212 = vsel %vm137, %v34, 0
    %214 = vmatprep.subr.mxu0 0.0
    %215 = vmatpush1.msra.mxu0 0.0
    %216 = vmatprep.subr.mxu0 0.0
    %217 = vmatpush1.msra.mxu0 0.0
    %218 = vmatprep.subr.mxu0 0.0
    %219 = vmatpush1.msra.mxu0 0.0
    %220 = vmatprep.subr.mxu0 0.0
    %221 = vmatpush1.msra.mxu0 0.0
    %222 = vmatprep.subr.mxu0 0.0
    %223 = vmatpush1.msra.mxu0 0.0
    %224 = vmatprep.subr.mxu0 0.0
    %225 = vmatpush1.msra.mxu0 0.0
    %226 = vmatprep.subr.mxu0 0.0
    %227 = vmatpush1.msra.mxu0 0.0
    %228 = vmatprep.subr.mxu0 0.0
    %229 = vmatpush1.msra.mxu0 0.0
    %230 = vmatprep.subr.mxu0 0.0
    %231 = vmatpush1.msra.mxu0 0.0
    %232 = vmatprep.subr.mxu0 0.0
    %233 = vmatpush1.msra.mxu0 0.0
    %234 = vmatprep.subr.mxu0 0.0
    %235 = vmatpush1.msra.mxu0 0.0
    %236 = vmatprep.subr.mxu0 0.0
    %237 = vmatpush1.msra.mxu0 0.0
    %238 = vmatprep.subr.mxu0 0.0
    %239 = vmatpush1.msra.mxu0 %v56
    %240 = vmatprep.subr.mxu0 0.0
    %241 = vmatpush1.msra.mxu0 %v55
    %242 = vmatprep.subr.mxu0 0.0
    %243 = vmatpush1.msra.mxu0 %v54
    %244 = vmatprep.subr.mxu0 0.0
    %245 = vmatpush1.msra.mxu0 %v53
    %246 = vmatprep.subr.mxu0 0.0
    %247 = vmatpush2.msra.mxu0 0.0
    %248 = vmatprep.subr.mxu0 0.0
    %249 = vmatpush2.msra.mxu0 0.0
    %250 = vmatprep.subr.mxu0 0.0
    %251 = vmatpush2.msra.mxu0 0.0
    %252 = vmatprep.subr.mxu0 0.0
    %253 = vmatpush2.msra.mxu0 0.0
    %254 = vmatprep.subr.mxu0 0.0
    %255 = vmatpush2.msra.mxu0 0.0
    %256 = vmatprep.subr.mxu0 0.0
    %257 = vmatpush2.msra.mxu0 0.0
    %258 = vmatprep.subr.mxu0 0.0
    %259 = vmatpush2.msra.mxu0 0.0
    %260 = vmatprep.subr.mxu0 0.0
    %261 = vmatpush2.msra.mxu0 0.0
    %262 = vmatprep.subr.mxu0 0.0
    %263 = vmatpush2.msra.mxu0 0.0
    %264 = vmatprep.subr.mxu0 0.0
    %265 = vmatpush2.msra.mxu0 0.0
    %266 = vmatprep.subr.mxu0 0.0
    %267 = vmatpush2.msra.mxu0 0.0
    %268 = vmatprep.subr.mxu0 0.0
    %269 = vmatpush2.msra.mxu0 0.0
    %270 = vmatprep.subr.mxu0 0.0
    %271 = vmatpush2.msra.mxu0 0.0
    %272 = vmatprep.subr.mxu0 0.0
    %273 = vmatpush2.msra.mxu0 0.0
    %274 = vmatprep.subr.mxu0 0.0
    %275 = vmatpush2.msra.mxu0 0.0
    %276 = vmatprep.subr.mxu0 0.0
    %277 = vmatpush2.msra.mxu0 0.0
    %278 = vmatprep.mubr.f32.mxu0 0.0
    %279 = vmatmul.mubr.f32.gmra.mxu0 %v212
    %v280 = vpop.f32.mrf.mxu0
    %v281 = vadd.f32 %v104, %v280
    %v282 = vpop.f32.mrf.mxu0
    %283 = vdwg.mxu0
    %v285 = vsel %vm137, %v35, 0
    %287 = vmatprep.subr.mxu0 0.0
    %288 = vmatpush1.msra.mxu0 0.0
    %289 = vmatprep.subr.mxu0 0.0
    %290 = vmatpush1.msra.mxu0 0.0
    %291 = vmatprep.subr.mxu0 0.0
    %292 = vmatpush1.msra.mxu0 0.0
    %293 = vmatprep.subr.mxu0 0.0
    %294 = vmatpush1.msra.mxu0 0.0
    %295 = vmatprep.subr.mxu0 0.0
    %296 = vmatpush1.msra.mxu0 0.0
    %297 = vmatprep.subr.mxu0 0.0
    %298 = vmatpush1.msra.mxu0 0.0
    %299 = vmatprep.subr.mxu0 0.0
    %300 = vmatpush1.msra.mxu0 0.0
    %301 = vmatprep.subr.mxu0 0.0
    %302 = vmatpush1.msra.mxu0 0.0
    %303 = vmatprep.subr.mxu0 0.0
    %304 = vmatpush1.msra.mxu0 0.0
    %305 = vmatprep.subr.mxu0 0.0
    %306 = vmatpush1.msra.mxu0 0.0
    %307 = vmatprep.subr.mxu0 0.0
    %308 = vmatpush1.msra.mxu0 0.0
    %309 = vmatprep.subr.mxu0 0.0
    %310 = vmatpush1.msra.mxu0 0.0
    %311 = vmatprep.subr.mxu0 0.0
    %312 = vmatpush1.msra.mxu0 %v60
    %313 = vmatprep.subr.mxu0 0.0
    %314 = vmatpush1.msra.mxu0 %v59
    %315 = vmatprep.subr.mxu0 0.0
    %316 = vmatpush1.msra.mxu0 %v58
    %317 = vmatprep.subr.mxu0 0.0
    %318 = vmatpush1.msra.mxu0 %v57
    %319 = vmatprep.subr.mxu0 0.0
    %320 = vmatpush2.msra.mxu0 0.0
    %321 = vmatprep.subr.mxu0 0.0
    %322 = vmatpush2.msra.mxu0 0.0
    %323 = vmatprep.subr.mxu0 0.0
    %324 = vmatpush2.msra.mxu0 0.0
    %325 = vmatprep.subr.mxu0 0.0
    %326 = vmatpush2.msra.mxu0 0.0
    %327 = vmatprep.subr.mxu0 0.0
    %328 = vmatpush2.msra.mxu0 0.0
    %329 = vmatprep.subr.mxu0 0.0
    %330 = vmatpush2.msra.mxu0 0.0
    %331 = vmatprep.subr.mxu0 0.0
    %332 = vmatpush2.msra.mxu0 0.0
    %333 = vmatprep.subr.mxu0 0.0
    %334 = vmatpush2.msra.mxu0 0.0
    %335 = vmatprep.subr.mxu0 0.0
    %336 = vmatpush2.msra.mxu0 0.0
    %337 = vmatprep.subr.mxu0 0.0
    %338 = vmatpush2.msra.mxu0 0.0
    %339 = vmatprep.subr.mxu0 0.0
    %340 = vmatpush2.msra.mxu0 0.0
    %341 = vmatprep.subr.mxu0 0.0
    %342 = vmatpush2.msra.mxu0 0.0
    %343 = vmatprep.subr.mxu0 0.0
    %344 = vmatpush2.msra.mxu0 0.0
    %345 = vmatprep.subr.mxu0 0.0
    %346 = vmatpush2.msra.mxu0 0.0
    %347 = vmatprep.subr.mxu0 0.0
    %348 = vmatpush2.msra.mxu0 0.0
    %349 = vmatprep.subr.mxu0 0.0
    %350 = vmatpush2.msra.mxu0 0.0
    %351 = vmatprep.mubr.f32.mxu0 0.0
    %352 = vmatmul.mubr.f32.gmra.mxu0 %v285
    %v353 = vpop.f32.mrf.mxu0
    %v354 = vadd.f32 %v108, %v353
    %v355 = vpop.f32.mrf.mxu0
    %356 = vdwg.mxu0
    %v358 = vsel %vm137, %v36, 0
    %360 = vmatprep.subr.mxu0 0.0
    %361 = vmatpush1.msra.mxu0 0.0
    %362 = vmatprep.subr.mxu0 0.0
    %363 = vmatpush1.msra.mxu0 0.0
    %364 = vmatprep.subr.mxu0 0.0
    %365 = vmatpush1.msra.mxu0 0.0
    %366 = vmatprep.subr.mxu0 0.0
    %367 = vmatpush1.msra.mxu0 0.0
    %368 = vmatprep.subr.mxu0 0.0
    %369 = vmatpush1.msra.mxu0 0.0
    %370 = vmatprep.subr.mxu0 0.0
    %371 = vmatpush1.msra.mxu0 0.0
    %372 = vmatprep.subr.mxu0 0.0
    %373 = vmatpush1.msra.mxu0 0.0
    %374 = vmatprep.subr.mxu0 0.0
    %375 = vmatpush1.msra.mxu0 0.0
    %376 = vmatprep.subr.mxu0 0.0
    %377 = vmatpush1.msra.mxu0 0.0
    %378 = vmatprep.subr.mxu0 0.0
    %379 = vmatpush1.msra.mxu0 0.0
    %380 = vmatprep.subr.mxu0 0.0
    %381 = vmatpush1.msra.mxu0 0.0
    %382 = vmatprep.subr.mxu0 0.0
    %383 = vmatpush1.msra.mxu0 0.0
    %384 = vmatprep.subr.mxu0 0.0
    %385 = vmatpush1.msra.mxu0 %v64
    %386 = vmatprep.subr.mxu0 0.0
    %387 = vmatpush1.msra.mxu0 %v63
    %388 = vmatprep.subr.mxu0 0.0
    %389 = vmatpush1.msra.mxu0 %v62
    %390 = vmatprep.subr.mxu0 0.0
    %391 = vmatpush1.msra.mxu0 %v61
    %392 = vmatprep.subr.mxu0 0.0
    %393 = vmatpush2.msra.mxu0 0.0
    %394 = vmatprep.subr.mxu0 0.0
    %395 = vmatpush2.msra.mxu0 0.0
    %396 = vmatprep.subr.mxu0 0.0
    %397 = vmatpush2.msra.mxu0 0.0
    %398 = vmatprep.subr.mxu0 0.0
    %399 = vmatpush2.msra.mxu0 0.0
    %400 = vmatprep.subr.mxu0 0.0
    %401 = vmatpush2.msra.mxu0 0.0
    %402 = vmatprep.subr.mxu0 0.0
    %403 = vmatpush2.msra.mxu0 0.0
    %404 = vmatprep.subr.mxu0 0.0
    %405 = vmatpush2.msra.mxu0 0.0
    %406 = vmatprep.subr.mxu0 0.0
    %407 = vmatpush2.msra.mxu0 0.0
    %408 = vmatprep.subr.mxu0 0.0
    %409 = vmatpush2.msra.mxu0 0.0
    %410 = vmatprep.subr.mxu0 0.0
    %411 = vmatpush2.msra.mxu0 0.0
    %412 = vmatprep.subr.mxu0 0.0
    %413 = vmatpush2.msra.mxu0 0.0
    %414 = vmatprep.subr.mxu0 0.0
    %415 = vmatpush2.msra.mxu0 0.0
    %416 = vmatprep.subr.mxu0 0.0
    %417 = vmatpush2.msra.mxu0 0.0
    %418 = vmatprep.subr.mxu0 0.0
    %419 = vmatpush2.msra.mxu0 0.0
    %420 = vmatprep.subr.mxu0 0.0
    %421 = vmatpush2.msra.mxu0 0.0
    %422 = vmatprep.subr.mxu0 0.0
    %423 = vmatpush2.msra.mxu0 0.0
    %424 = vmatprep.mubr.f32.mxu0 0.0
    %425 = vmatmul.mubr.f32.gmra.mxu0 %v358
    %v426 = vpop.f32.mrf.mxu0
    %v427 = vadd.f32 %v112, %v426
    %v428 = vpop.f32.mrf.mxu0
    %429 = vdwg.mxu0
    %v431 = vsel %vm137, %v37, 0
    %433 = vmatprep.subr.mxu0 0.0
    %434 = vmatpush1.msra.mxu0 0.0
    %435 = vmatprep.subr.mxu0 0.0
    %436 = vmatpush1.msra.mxu0 0.0
    %437 = vmatprep.subr.mxu0 0.0
    %438 = vmatpush1.msra.mxu0 0.0
    %439 = vmatprep.subr.mxu0 0.0
    %440 = vmatpush1.msra.mxu0 0.0
    %441 = vmatprep.subr.mxu0 0.0
    %442 = vmatpush1.msra.mxu0 0.0
    %443 = vmatprep.subr.mxu0 0.0
    %444 = vmatpush1.msra.mxu0 0.0
    %445 = vmatprep.subr.mxu0 0.0
    %446 = vmatpush1.msra.mxu0 0.0
    %447 = vmatprep.subr.mxu0 0.0
    %448 = vmatpush1.msra.mxu0 0.0
    %449 = vmatprep.subr.mxu0 0.0
    %450 = vmatpush1.msra.mxu0 0.0
    %451 = vmatprep.subr.mxu0 0.0
    %452 = vmatpush1.msra.mxu0 0.0
    %453 = vmatprep.subr.mxu0 0.0
    %454 = vmatpush1.msra.mxu0 0.0
    %455 = vmatprep.subr.mxu0 0.0
    %456 = vmatpush1.msra.mxu0 0.0
    %457 = vmatprep.subr.mxu0 0.0
    %458 = vmatpush1.msra.mxu0 %v68
    %459 = vmatprep.subr.mxu0 0.0
    %460 = vmatpush1.msra.mxu0 %v67
    %461 = vmatprep.subr.mxu0 0.0
    %462 = vmatpush1.msra.mxu0 %v66
    %463 = vmatprep.subr.mxu0 0.0
    %464 = vmatpush1.msra.mxu0 %v65
    %465 = vmatprep.subr.mxu0 0.0
    %466 = vmatpush2.msra.mxu0 0.0
    %467 = vmatprep.subr.mxu0 0.0
    %468 = vmatpush2.msra.mxu0 0.0
    %469 = vmatprep.subr.mxu0 0.0
    %470 = vmatpush2.msra.mxu0 0.0
    %471 = vmatprep.subr.mxu0 0.0
    %472 = vmatpush2.msra.mxu0 0.0
    %473 = vmatprep.subr.mxu0 0.0
    %474 = vmatpush2.msra.mxu0 0.0
    %475 = vmatprep.subr.mxu0 0.0
    %476 = vmatpush2.msra.mxu0 0.0
    %477 = vmatprep.subr.mxu0 0.0
    %478 = vmatpush2.msra.mxu0 0.0
    %479 = vmatprep.subr.mxu0 0.0
    %480 = vmatpush2.msra.mxu0 0.0
    %481 = vmatprep.subr.mxu0 0.0
    %482 = vmatpush2.msra.mxu0 0.0
    %483 = vmatprep.subr.mxu0 0.0
    %484 = vmatpush2.msra.mxu0 0.0
    %485 = vmatprep.subr.mxu0 0.0
    %486 = vmatpush2.msra.mxu0 0.0
    %487 = vmatprep.subr.mxu0 0.0
    %488 = vmatpush2.msra.mxu0 0.0
    %489 = vmatprep.subr.mxu0 0.0
    %490 = vmatpush2.msra.mxu0 0.0
    %491 = vmatprep.subr.mxu0 0.0
    %492 = vmatpush2.msra.mxu0 0.0
    %493 = vmatprep.subr.mxu0 0.0
    %494 = vmatpush2.msra.mxu0 0.0
    %495 = vmatprep.subr.mxu0 0.0
    %496 = vmatpush2.msra.mxu0 0.0
    %497 = vmatprep.mubr.f32.mxu0 0.0
    %498 = vmatmul.mubr.f32.gmra.mxu0 %v431
    %v499 = vpop.f32.mrf.mxu0
    %v500 = vadd.f32 %v116, %v499
    %v501 = vpop.f32.mrf.mxu0
    %502 = vdwg.mxu0
    %v504 = vsel %vm137, %v38, 0
    %506 = vmatprep.subr.mxu0 0.0
    %507 = vmatpush1.msra.mxu0 0.0
    %508 = vmatprep.subr.mxu0 0.0
    %509 = vmatpush1.msra.mxu0 0.0
    %510 = vmatprep.subr.mxu0 0.0
    %511 = vmatpush1.msra.mxu0 0.0
    %512 = vmatprep.subr.mxu0 0.0
    %513 = vmatpush1.msra.mxu0 0.0
    %514 = vmatprep.subr.mxu0 0.0
    %515 = vmatpush1.msra.mxu0 0.0
    %516 = vmatprep.subr.mxu0 0.0
    %517 = vmatpush1.msra.mxu0 0.0
    %518 = vmatprep.subr.mxu0 0.0
    %519 = vmatpush1.msra.mxu0 0.0
    %520 = vmatprep.subr.mxu0 0.0
    %521 = vmatpush1.msra.mxu0 0.0
    %522 = vmatprep.subr.mxu0 0.0
    %523 = vmatpush1.msra.mxu0 0.0
    %524 = vmatprep.subr.mxu0 0.0
    %525 = vmatpush1.msra.mxu0 0.0
    %526 = vmatprep.subr.mxu0 0.0
    %527 = vmatpush1.msra.mxu0 0.0
    %528 = vmatprep.subr.mxu0 0.0
    %529 = vmatpush1.msra.mxu0 0.0
    %530 = vmatprep.subr.mxu0 0.0
    %531 = vmatpush1.msra.mxu0 %v72
    %532 = vmatprep.subr.mxu0 0.0
    %533 = vmatpush1.msra.mxu0 %v71
    %534 = vmatprep.subr.mxu0 0.0
    %535 = vmatpush1.msra.mxu0 %v70
    %536 = vmatprep.subr.mxu0 0.0
    %537 = vmatpush1.msra.mxu0 %v69
    %538 = vmatprep.subr.mxu0 0.0
    %539 = vmatpush2.msra.mxu0 0.0
    %540 = vmatprep.subr.mxu0 0.0
    %541 = vmatpush2.msra.mxu0 0.0
    %542 = vmatprep.subr.mxu0 0.0
    %543 = vmatpush2.msra.mxu0 0.0
    %544 = vmatprep.subr.mxu0 0.0
    %545 = vmatpush2.msra.mxu0 0.0
    %546 = vmatprep.subr.mxu0 0.0
    %547 = vmatpush2.msra.mxu0 0.0
    %548 = vmatprep.subr.mxu0 0.0
    %549 = vmatpush2.msra.mxu0 0.0
    %550 = vmatprep.subr.mxu0 0.0
    %551 = vmatpush2.msra.mxu0 0.0
    %552 = vmatprep.subr.mxu0 0.0
    %553 = vmatpush2.msra.mxu0 0.0
    %554 = vmatprep.subr.mxu0 0.0
    %555 = vmatpush2.msra.mxu0 0.0
    %556 = vmatprep.subr.mxu0 0.0
    %557 = vmatpush2.msra.mxu0 0.0
    %558 = vmatprep.subr.mxu0 0.0
    %559 = vmatpush2.msra.mxu0 0.0
    %560 = vmatprep.subr.mxu0 0.0
    %561 = vmatpush2.msra.mxu0 0.0
    %562 = vmatprep.subr.mxu0 0.0
    %563 = vmatpush2.msra.mxu0 0.0
    %564 = vmatprep.subr.mxu0 0.0
    %565 = vmatpush2.msra.mxu0 0.0
    %566 = vmatprep.subr.mxu0 0.0
    %567 = vmatpush2.msra.mxu0 0.0
    %568 = vmatprep.subr.mxu0 0.0
    %569 = vmatpush2.msra.mxu0 0.0
    %570 = vmatprep.mubr.f32.mxu0 0.0
    %571 = vmatmul.mubr.f32.gmra.mxu0 %v504
    %v572 = vpop.f32.mrf.mxu0
    %v573 = vadd.f32 %v120, %v572
    %v574 = vpop.f32.mrf.mxu0
    %575 = vdwg.mxu0
    %v577 = vsel %vm137, %v39, 0
    %579 = vmatprep.subr.mxu0 0.0
    %580 = vmatpush1.msra.mxu0 0.0
    %581 = vmatprep.subr.mxu0 0.0
    %582 = vmatpush1.msra.mxu0 0.0
    %583 = vmatprep.subr.mxu0 0.0
    %584 = vmatpush1.msra.mxu0 0.0
    %585 = vmatprep.subr.mxu0 0.0
    %586 = vmatpush1.msra.mxu0 0.0
    %587 = vmatprep.subr.mxu0 0.0
    %588 = vmatpush1.msra.mxu0 0.0
    %589 = vmatprep.subr.mxu0 0.0
    %590 = vmatpush1.msra.mxu0 0.0
    %591 = vmatprep.subr.mxu0 0.0
    %592 = vmatpush1.msra.mxu0 0.0
    %593 = vmatprep.subr.mxu0 0.0
    %594 = vmatpush1.msra.mxu0 0.0
    %595 = vmatprep.subr.mxu0 0.0
    %596 = vmatpush1.msra.mxu0 0.0
    %597 = vmatprep.subr.mxu0 0.0
    %598 = vmatpush1.msra.mxu0 0.0
    %599 = vmatprep.subr.mxu0 0.0
    %600 = vmatpush1.msra.mxu0 0.0
    %601 = vmatprep.subr.mxu0 0.0
    %602 = vmatpush1.msra.mxu0 0.0
    %603 = vmatprep.subr.mxu0 0.0
    %604 = vmatpush1.msra.mxu0 %v76
    %605 = vmatprep.subr.mxu0 0.0
    %606 = vmatpush1.msra.mxu0 %v75
    %607 = vmatprep.subr.mxu0 0.0
    %608 = vmatpush1.msra.mxu0 %v74
    %609 = vmatprep.subr.mxu0 0.0
    %610 = vmatpush1.msra.mxu0 %v73
    %611 = vmatprep.subr.mxu0 0.0
    %612 = vmatpush2.msra.mxu0 0.0
    %613 = vmatprep.subr.mxu0 0.0
    %614 = vmatpush2.msra.mxu0 0.0
    %615 = vmatprep.subr.mxu0 0.0
    %616 = vmatpush2.msra.mxu0 0.0
    %617 = vmatprep.subr.mxu0 0.0
    %618 = vmatpush2.msra.mxu0 0.0
    %619 = vmatprep.subr.mxu0 0.0
    %620 = vmatpush2.msra.mxu0 0.0
    %621 = vmatprep.subr.mxu0 0.0
    %622 = vmatpush2.msra.mxu0 0.0
    %623 = vmatprep.subr.mxu0 0.0
    %624 = vmatpush2.msra.mxu0 0.0
    %625 = vmatprep.subr.mxu0 0.0
    %626 = vmatpush2.msra.mxu0 0.0
    %627 = vmatprep.subr.mxu0 0.0
    %628 = vmatpush2.msra.mxu0 0.0
    %629 = vmatprep.subr.mxu0 0.0
    %630 = vmatpush2.msra.mxu0 0.0
    %631 = vmatprep.subr.mxu0 0.0
    %632 = vmatpush2.msra.mxu0 0.0
    %633 = vmatprep.subr.mxu0 0.0
    %634 = vmatpush2.msra.mxu0 0.0
    %635 = vmatprep.subr.mxu0 0.0
    %636 = vmatpush2.msra.mxu0 0.0
    %637 = vmatprep.subr.mxu0 0.0
    %638 = vmatpush2.msra.mxu0 0.0
    %639 = vmatprep.subr.mxu0 0.0
    %640 = vmatpush2.msra.mxu0 0.0
    %641 = vmatprep.subr.mxu0 0.0
    %642 = vmatpush2.msra.mxu0 0.0
    %643 = vmatprep.mubr.f32.mxu0 0.0
    %644 = vmatmul.mubr.f32.gmra.mxu0 %v577
    %v645 = vpop.f32.mrf.mxu0
    %v646 = vadd.f32 %v124, %v645
    %v647 = vpop.f32.mrf.mxu0
    %648 = vdwg.mxu0
    %v650 = vsel %vm137, %v40, 0
    %652 = vmatprep.subr.mxu0 0.0
    %653 = vmatpush1.msra.mxu0 0.0
    %654 = vmatprep.subr.mxu0 0.0
    %655 = vmatpush1.msra.mxu0 0.0
    %656 = vmatprep.subr.mxu0 0.0
    %657 = vmatpush1.msra.mxu0 0.0
    %658 = vmatprep.subr.mxu0 0.0
    %659 = vmatpush1.msra.mxu0 0.0
    %660 = vmatprep.subr.mxu0 0.0
    %661 = vmatpush1.msra.mxu0 0.0
    %662 = vmatprep.subr.mxu0 0.0
    %663 = vmatpush1.msra.mxu0 0.0
    %664 = vmatprep.subr.mxu0 0.0
    %665 = vmatpush1.msra.mxu0 0.0
    %666 = vmatprep.subr.mxu0 0.0
    %667 = vmatpush1.msra.mxu0 0.0
    %668 = vmatprep.subr.mxu0 0.0
    %669 = vmatpush1.msra.mxu0 0.0
    %670 = vmatprep.subr.mxu0 0.0
    %671 = vmatpush1.msra.mxu0 0.0
    %672 = vmatprep.subr.mxu0 0.0
    %673 = vmatpush1.msra.mxu0 0.0
    %674 = vmatprep.subr.mxu0 0.0
    %675 = vmatpush1.msra.mxu0 0.0
    %676 = vmatprep.subr.mxu0 0.0
    %677 = vmatpush1.msra.mxu0 %v80
    %678 = vmatprep.subr.mxu0 0.0
    %679 = vmatpush1.msra.mxu0 %v79
    %680 = vmatprep.subr.mxu0 0.0
    %681 = vmatpush1.msra.mxu0 %v78
    %682 = vmatprep.subr.mxu0 0.0
    %683 = vmatpush1.msra.mxu0 %v77
    %684 = vmatprep.subr.mxu0 0.0
    %685 = vmatpush2.msra.mxu0 0.0
    %686 = vmatprep.subr.mxu0 0.0
    %687 = vmatpush2.msra.mxu0 0.0
    %688 = vmatprep.subr.mxu0 0.0
    %689 = vmatpush2.msra.mxu0 0.0
    %690 = vmatprep.subr.mxu0 0.0
    %691 = vmatpush2.msra.mxu0 0.0
    %692 = vmatprep.subr.mxu0 0.0
    %693 = vmatpush2.msra.mxu0 0.0
    %694 = vmatprep.subr.mxu0 0.0
    %695 = vmatpush2.msra.mxu0 0.0
    %696 = vmatprep.subr.mxu0 0.0
    %697 = vmatpush2.msra.mxu0 0.0
    %698 = vmatprep.subr.mxu0 0.0
    %699 = vmatpush2.msra.mxu0 0.0
    %700 = vmatprep.subr.mxu0 0.0
    %701 = vmatpush2.msra.mxu0 0.0
    %702 = vmatprep.subr.mxu0 0.0
    %703 = vmatpush2.msra.mxu0 0.0
    %704 = vmatprep.subr.mxu0 0.0
    %705 = vmatpush2.msra.mxu0 0.0
    %706 = vmatprep.subr.mxu0 0.0
    %707 = vmatpush2.msra.mxu0 0.0
    %708 = vmatprep.subr.mxu0 0.0
    %709 = vmatpush2.msra.mxu0 0.0
    %710 = vmatprep.subr.mxu0 0.0
    %711 = vmatpush2.msra.mxu0 0.0
    %712 = vmatprep.subr.mxu0 0.0
    %713 = vmatpush2.msra.mxu0 0.0
    %714 = vmatprep.subr.mxu0 0.0
    %715 = vmatpush2.msra.mxu0 0.0
    %716 = vmatprep.mubr.f32.mxu0 0.0
    %717 = vmatmul.mubr.f32.gmra.mxu0 %v650
    %v718 = vpop.f32.mrf.mxu0
    %v719 = vadd.f32 %v128, %v718
    %v720 = vpop.f32.mrf.mxu0
    %721 = vdwg.mxu0
    %v722 = vld [vmem:[%s3] sm:$0xff]
    %v723 = vld [vmem:[%s3 + $0x8] sm:$0xff]
    %v724 = vld [vmem:[%s3 + $0x10] sm:$0xff]
    %v725 = vld [vmem:[%s3 + $0x18] sm:$0xff]
    %v726 = vld [vmem:[%s3 + $0x20] sm:$0xff]
    %v727 = vld [vmem:[%s3 + $0x28] sm:$0xff]
    %v728 = vld [vmem:[%s3 + $0x30] sm:$0xff]
    %v729 = vld [vmem:[%s3 + $0x38] sm:$0xff]
    %v730 = vld [vmem:[%s3 + $0x40] sm:$0xff]
    %v731 = vld [vmem:[%s3 + $0x48] sm:$0xff]
    %v732 = vld [vmem:[%s3 + $0x50] sm:$0xff]
    %v733 = vld [vmem:[%s3 + $0x58] sm:$0xff]
    %v734 = vld [vmem:[%s3 + $0x60] sm:$0xff]
    %v735 = vld [vmem:[%s3 + $0x68] sm:$0xff]
    %v736 = vld [vmem:[%s3 + $0x70] sm:$0xff]
    %v737 = vld [vmem:[%s3 + $0x78] sm:$0xff]
    %v738 = vld [vmem:[%s3 + $0x80] sm:$0xff]
    %v739 = vld [vmem:[%s3 + $0x88] sm:$0xff]
    %v740 = vld [vmem:[%s3 + $0x90] sm:$0xff]
    %v741 = vld [vmem:[%s3 + $0x98] sm:$0xff]
    %v742 = vld [vmem:[%s3 + $0xa0] sm:$0xff]
    %v743 = vld [vmem:[%s3 + $0xa8] sm:$0xff]
    %v744 = vld [vmem:[%s3 + $0xb0] sm:$0xff]
    %v745 = vld [vmem:[%s3 + $0xb8] sm:$0xff]
    %v746 = vld [vmem:[%s3 + $0xc0] sm:$0xff]
    %v747 = vld [vmem:[%s3 + $0xc8] sm:$0xff]
    %v748 = vld [vmem:[%s3 + $0xd0] sm:$0xff]
    %v749 = vld [vmem:[%s3 + $0xd8] sm:$0xff]
    %v750 = vld [vmem:[%s3 + $0xe0] sm:$0xff]
    %v751 = vld [vmem:[%s3 + $0xe8] sm:$0xff]
    %v752 = vld [vmem:[%s3 + $0xf0] sm:$0xff]
    %v753 = vld [vmem:[%s3 + $0xf8] sm:$0xff]
    %v754 = vld [vmem:[%s5] sm:$0x1]
    %v755 = vld [vmem:[%s5 + $0x1] sm:$0x1]
    %v756 = vld [vmem:[%s5 + $0x2] sm:$0x1]
    %v757 = vld [vmem:[%s5 + $0x3] sm:$0x1]
    %v758 = vld [vmem:[%s5 + $0x4] sm:$0x1]
    %v759 = vld [vmem:[%s5 + $0x5] sm:$0x1]
    %v760 = vld [vmem:[%s5 + $0x6] sm:$0x1]
    %v761 = vld [vmem:[%s5 + $0x7] sm:$0x1]
    %v770 = vlaneseq
    %v771 = vshrl.u32 %v770, 7
    %v772 = vsub.s32 0, %v771
    %v773 = vrot.slane %v754, %v772
    %v774 = vlaneseq
    %v775 = vshrl.u32 %v774, 7
    %v776 = vsub.s32 0, %v775
    %v777 = vrot.slane %v755, %v776
    %v778 = vlaneseq
    %v779 = vshrl.u32 %v778, 7
    %v780 = vsub.s32 0, %v779
    %v781 = vrot.slane %v756, %v780
    %v782 = vlaneseq
    %v783 = vshrl.u32 %v782, 7
    %v784 = vsub.s32 0, %v783
    %v785 = vrot.slane %v757, %v784
    %v786 = vlaneseq
    %v787 = vshrl.u32 %v786, 7
    %v788 = vsub.s32 0, %v787
    %v789 = vrot.slane %v758, %v788
    %v790 = vlaneseq
    %v791 = vshrl.u32 %v790, 7
    %v792 = vsub.s32 0, %v791
    %v793 = vrot.slane %v759, %v792
    %v794 = vlaneseq
    %v795 = vshrl.u32 %v794, 7
    %v796 = vsub.s32 0, %v795
    %v797 = vrot.slane %v760, %v796
    %v798 = vlaneseq
    %v799 = vshrl.u32 %v798, 7
    %v800 = vsub.s32 0, %v799
    %v801 = vrot.slane %v761, %v800
    %802 = vrot.lane.b32.xlu0 %v773, 120
    %v803 = vpop.permute.xlu0 %802
    %v806 = vsel %vm137, %v41, 0
    %808 = vmatprep.subr.mxu0 0.0
    %809 = vmatpush1.msra.mxu0 0.0
    %810 = vmatprep.subr.mxu0 0.0
    %811 = vmatpush1.msra.mxu0 0.0
    %812 = vmatprep.subr.mxu0 0.0
    %813 = vmatpush1.msra.mxu0 0.0
    %814 = vmatprep.subr.mxu0 0.0
    %815 = vmatpush1.msra.mxu0 0.0
    %816 = vmatprep.subr.mxu0 0.0
    %817 = vmatpush1.msra.mxu0 0.0
    %818 = vmatprep.subr.mxu0 0.0
    %819 = vmatpush1.msra.mxu0 0.0
    %820 = vmatprep.subr.mxu0 0.0
    %821 = vmatpush1.msra.mxu0 0.0
    %822 = vmatprep.subr.mxu0 0.0
    %823 = vmatpush1.msra.mxu0 0.0
    %824 = vmatprep.subr.mxu0 0.0
    %825 = vmatpush1.msra.mxu0 0.0
    %826 = vmatprep.subr.mxu0 0.0
    %827 = vmatpush1.msra.mxu0 0.0
    %828 = vmatprep.subr.mxu0 0.0
    %829 = vmatpush1.msra.mxu0 0.0
    %830 = vmatprep.subr.mxu0 0.0
    %831 = vmatpush1.msra.mxu0 0.0
    %832 = vmatprep.subr.mxu0 0.0
    %833 = vmatpush1.msra.mxu0 %v725
    %834 = vmatprep.subr.mxu0 0.0
    %835 = vmatpush1.msra.mxu0 %v724
    %836 = vmatprep.subr.mxu0 0.0
    %837 = vmatpush1.msra.mxu0 %v723
    %838 = vmatprep.subr.mxu0 0.0
    %839 = vmatpush1.msra.mxu0 %v722
    %840 = vmatprep.subr.mxu0 0.0
    %841 = vmatpush2.msra.mxu0 0.0
    %842 = vmatprep.subr.mxu0 0.0
    %843 = vmatpush2.msra.mxu0 0.0
    %844 = vmatprep.subr.mxu0 0.0
    %845 = vmatpush2.msra.mxu0 0.0
    %846 = vmatprep.subr.mxu0 0.0
    %847 = vmatpush2.msra.mxu0 0.0
    %848 = vmatprep.subr.mxu0 0.0
    %849 = vmatpush2.msra.mxu0 0.0
    %850 = vmatprep.subr.mxu0 0.0
    %851 = vmatpush2.msra.mxu0 0.0
    %852 = vmatprep.subr.mxu0 0.0
    %853 = vmatpush2.msra.mxu0 0.0
    %854 = vmatprep.subr.mxu0 0.0
    %855 = vmatpush2.msra.mxu0 0.0
    %856 = vmatprep.subr.mxu0 0.0
    %857 = vmatpush2.msra.mxu0 0.0
    %858 = vmatprep.subr.mxu0 0.0
    %859 = vmatpush2.msra.mxu0 0.0
    %860 = vmatprep.subr.mxu0 0.0
    %861 = vmatpush2.msra.mxu0 0.0
    %862 = vmatprep.subr.mxu0 0.0
    %863 = vmatpush2.msra.mxu0 0.0
    %864 = vmatprep.subr.mxu0 0.0
    %865 = vmatpush2.msra.mxu0 0.0
    %866 = vmatprep.subr.mxu0 0.0
    %867 = vmatpush2.msra.mxu0 0.0
    %868 = vmatprep.subr.mxu0 0.0
    %869 = vmatpush2.msra.mxu0 0.0
    %870 = vmatprep.subr.mxu0 0.0
    %871 = vmatpush2.msra.mxu0 0.0
    %872 = vmatprep.mubr.f32.mxu0 0.0
    %873 = vmatmul.mubr.f32.gmra.mxu0 %v806
    %v874 = vpop.f32.mrf.mxu0
    %v875 = vadd.f32 %v803, %v874
    %v876 = vpop.f32.mrf.mxu0
    %877 = vdwg.mxu0
    %878 = vrot.lane.b32.xlu0 %v777, 120
    %v879 = vpop.permute.xlu0 %878
    %v882 = vsel %vm137, %v42, 0
    %884 = vmatprep.subr.mxu0 0.0
    %885 = vmatpush1.msra.mxu0 0.0
    %886 = vmatprep.subr.mxu0 0.0
    %887 = vmatpush1.msra.mxu0 0.0
    %888 = vmatprep.subr.mxu0 0.0
    %889 = vmatpush1.msra.mxu0 0.0
    %890 = vmatprep.subr.mxu0 0.0
    %891 = vmatpush1.msra.mxu0 0.0
    %892 = vmatprep.subr.mxu0 0.0
    %893 = vmatpush1.msra.mxu0 0.0
    %894 = vmatprep.subr.mxu0 0.0
    %895 = vmatpush1.msra.mxu0 0.0
    %896 = vmatprep.subr.mxu0 0.0
    %897 = vmatpush1.msra.mxu0 0.0
    %898 = vmatprep.subr.mxu0 0.0
    %899 = vmatpush1.msra.mxu0 0.0
    %900 = vmatprep.subr.mxu0 0.0
    %901 = vmatpush1.msra.mxu0 0.0
    %902 = vmatprep.subr.mxu0 0.0
    %903 = vmatpush1.msra.mxu0 0.0
    %904 = vmatprep.subr.mxu0 0.0
    %905 = vmatpush1.msra.mxu0 0.0
    %906 = vmatprep.subr.mxu0 0.0
    %907 = vmatpush1.msra.mxu0 0.0
    %908 = vmatprep.subr.mxu0 0.0
    %909 = vmatpush1.msra.mxu0 %v729
    %910 = vmatprep.subr.mxu0 0.0
    %911 = vmatpush1.msra.mxu0 %v728
    %912 = vmatprep.subr.mxu0 0.0
    %913 = vmatpush1.msra.mxu0 %v727
    %914 = vmatprep.subr.mxu0 0.0
    %915 = vmatpush1.msra.mxu0 %v726
    %916 = vmatprep.subr.mxu0 0.0
    %917 = vmatpush2.msra.mxu0 0.0
    %918 = vmatprep.subr.mxu0 0.0
    %919 = vmatpush2.msra.mxu0 0.0
    %920 = vmatprep.subr.mxu0 0.0
    %921 = vmatpush2.msra.mxu0 0.0
    %922 = vmatprep.subr.mxu0 0.0
    %923 = vmatpush2.msra.mxu0 0.0
    %924 = vmatprep.subr.mxu0 0.0
    %925 = vmatpush2.msra.mxu0 0.0
    %926 = vmatprep.subr.mxu0 0.0
    %927 = vmatpush2.msra.mxu0 0.0
    %928 = vmatprep.subr.mxu0 0.0
    %929 = vmatpush2.msra.mxu0 0.0
    %930 = vmatprep.subr.mxu0 0.0
    %931 = vmatpush2.msra.mxu0 0.0
    %932 = vmatprep.subr.mxu0 0.0
    %933 = vmatpush2.msra.mxu0 0.0
    %934 = vmatprep.subr.mxu0 0.0
    %935 = vmatpush2.msra.mxu0 0.0
    %936 = vmatprep.subr.mxu0 0.0
    %937 = vmatpush2.msra.mxu0 0.0
    %938 = vmatprep.subr.mxu0 0.0
    %939 = vmatpush2.msra.mxu0 0.0
    %940 = vmatprep.subr.mxu0 0.0
    %941 = vmatpush2.msra.mxu0 0.0
    %942 = vmatprep.subr.mxu0 0.0
    %943 = vmatpush2.msra.mxu0 0.0
    %944 = vmatprep.subr.mxu0 0.0
    %945 = vmatpush2.msra.mxu0 0.0
    %946 = vmatprep.subr.mxu0 0.0
    %947 = vmatpush2.msra.mxu0 0.0
    %948 = vmatprep.mubr.f32.mxu0 0.0
    %949 = vmatmul.mubr.f32.gmra.mxu0 %v882
    %v950 = vpop.f32.mrf.mxu0
    %v951 = vadd.f32 %v879, %v950
    %v952 = vpop.f32.mrf.mxu0
    %953 = vdwg.mxu0
    %954 = vrot.lane.b32.xlu0 %v781, 120
    %v955 = vpop.permute.xlu0 %954
    %v958 = vsel %vm137, %v43, 0
    %960 = vmatprep.subr.mxu0 0.0
    %961 = vmatpush1.msra.mxu0 0.0
    %962 = vmatprep.subr.mxu0 0.0
    %963 = vmatpush1.msra.mxu0 0.0
    %964 = vmatprep.subr.mxu0 0.0
    %965 = vmatpush1.msra.mxu0 0.0
    %966 = vmatprep.subr.mxu0 0.0
    %967 = vmatpush1.msra.mxu0 0.0
    %968 = vmatprep.subr.mxu0 0.0
    %969 = vmatpush1.msra.mxu0 0.0
    %970 = vmatprep.subr.mxu0 0.0
    %971 = vmatpush1.msra.mxu0 0.0
    %972 = vmatprep.subr.mxu0 0.0
    %973 = vmatpush1.msra.mxu0 0.0
    %974 = vmatprep.subr.mxu0 0.0
    %975 = vmatpush1.msra.mxu0 0.0
    %976 = vmatprep.subr.mxu0 0.0
    %977 = vmatpush1.msra.mxu0 0.0
    %978 = vmatprep.subr.mxu0 0.0
    %979 = vmatpush1.msra.mxu0 0.0
    %980 = vmatprep.subr.mxu0 0.0
    %981 = vmatpush1.msra.mxu0 0.0
    %982 = vmatprep.subr.mxu0 0.0
    %983 = vmatpush1.msra.mxu0 0.0
    %984 = vmatprep.subr.mxu0 0.0
    %985 = vmatpush1.msra.mxu0 %v733
    %986 = vmatprep.subr.mxu0 0.0
    %987 = vmatpush1.msra.mxu0 %v732
    %988 = vmatprep.subr.mxu0 0.0
    %989 = vmatpush1.msra.mxu0 %v731
    %990 = vmatprep.subr.mxu0 0.0
    %991 = vmatpush1.msra.mxu0 %v730
    %992 = vmatprep.subr.mxu0 0.0
    %993 = vmatpush2.msra.mxu0 0.0
    %994 = vmatprep.subr.mxu0 0.0
    %995 = vmatpush2.msra.mxu0 0.0
    %996 = vmatprep.subr.mxu0 0.0
    %997 = vmatpush2.msra.mxu0 0.0
    %998 = vmatprep.subr.mxu0 0.0
    %999 = vmatpush2.msra.mxu0 0.0
    %1000 = vmatprep.subr.mxu0 0.0
    %1001 = vmatpush2.msra.mxu0 0.0
    %1002 = vmatprep.subr.mxu0 0.0
    %1003 = vmatpush2.msra.mxu0 0.0
    %1004 = vmatprep.subr.mxu0 0.0
    %1005 = vmatpush2.msra.mxu0 0.0
    %1006 = vmatprep.subr.mxu0 0.0
    %1007 = vmatpush2.msra.mxu0 0.0
    %1008 = vmatprep.subr.mxu0 0.0
    %1009 = vmatpush2.msra.mxu0 0.0
    %1010 = vmatprep.subr.mxu0 0.0
    %1011 = vmatpush2.msra.mxu0 0.0
    %1012 = vmatprep.subr.mxu0 0.0
    %1013 = vmatpush2.msra.mxu0 0.0
    %1014 = vmatprep.subr.mxu0 0.0
    %1015 = vmatpush2.msra.mxu0 0.0
    %1016 = vmatprep.subr.mxu0 0.0
    %1017 = vmatpush2.msra.mxu0 0.0
    %1018 = vmatprep.subr.mxu0 0.0
    %1019 = vmatpush2.msra.mxu0 0.0
    %1020 = vmatprep.subr.mxu0 0.0
    %1021 = vmatpush2.msra.mxu0 0.0
    %1022 = vmatprep.subr.mxu0 0.0
    %1023 = vmatpush2.msra.mxu0 0.0
    %1024 = vmatprep.mubr.f32.mxu0 0.0
    %1025 = vmatmul.mubr.f32.gmra.mxu0 %v958
    %v1026 = vpop.f32.mrf.mxu0
    %v1027 = vadd.f32 %v955, %v1026
    %v1028 = vpop.f32.mrf.mxu0
    %1029 = vdwg.mxu0
    %1030 = vrot.lane.b32.xlu0 %v785, 120
    %v1031 = vpop.permute.xlu0 %1030
    %v1034 = vsel %vm137, %v44, 0
    %1036 = vmatprep.subr.mxu0 0.0
    %1037 = vmatpush1.msra.mxu0 0.0
    %1038 = vmatprep.subr.mxu0 0.0
    %1039 = vmatpush1.msra.mxu0 0.0
    %1040 = vmatprep.subr.mxu0 0.0
    %1041 = vmatpush1.msra.mxu0 0.0
    %1042 = vmatprep.subr.mxu0 0.0
    %1043 = vmatpush1.msra.mxu0 0.0
    %1044 = vmatprep.subr.mxu0 0.0
    %1045 = vmatpush1.msra.mxu0 0.0
    %1046 = vmatprep.subr.mxu0 0.0
    %1047 = vmatpush1.msra.mxu0 0.0
    %1048 = vmatprep.subr.mxu0 0.0
    %1049 = vmatpush1.msra.mxu0 0.0
    %1050 = vmatprep.subr.mxu0 0.0
    %1051 = vmatpush1.msra.mxu0 0.0
    %1052 = vmatprep.subr.mxu0 0.0
    %1053 = vmatpush1.msra.mxu0 0.0
    %1054 = vmatprep.subr.mxu0 0.0
    %1055 = vmatpush1.msra.mxu0 0.0
    %1056 = vmatprep.subr.mxu0 0.0
    %1057 = vmatpush1.msra.mxu0 0.0
    %1058 = vmatprep.subr.mxu0 0.0
    %1059 = vmatpush1.msra.mxu0 0.0
    %1060 = vmatprep.subr.mxu0 0.0
    %1061 = vmatpush1.msra.mxu0 %v737
    %1062 = vmatprep.subr.mxu0 0.0
    %1063 = vmatpush1.msra.mxu0 %v736
    %1064 = vmatprep.subr.mxu0 0.0
    %1065 = vmatpush1.msra.mxu0 %v735
    %1066 = vmatprep.subr.mxu0 0.0
    %1067 = vmatpush1.msra.mxu0 %v734
    %1068 = vmatprep.subr.mxu0 0.0
    %1069 = vmatpush2.msra.mxu0 0.0
    %1070 = vmatprep.subr.mxu0 0.0
    %1071 = vmatpush2.msra.mxu0 0.0
    %1072 = vmatprep.subr.mxu0 0.0
    %1073 = vmatpush2.msra.mxu0 0.0
    %1074 = vmatprep.subr.mxu0 0.0
    %1075 = vmatpush2.msra.mxu0 0.0
    %1076 = vmatprep.subr.mxu0 0.0
    %1077 = vmatpush2.msra.mxu0 0.0
    %1078 = vmatprep.subr.mxu0 0.0
    %1079 = vmatpush2.msra.mxu0 0.0
    %1080 = vmatprep.subr.mxu0 0.0
    %1081 = vmatpush2.msra.mxu0 0.0
    %1082 = vmatprep.subr.mxu0 0.0
    %1083 = vmatpush2.msra.mxu0 0.0
    %1084 = vmatprep.subr.mxu0 0.0
    %1085 = vmatpush2.msra.mxu0 0.0
    %1086 = vmatprep.subr.mxu0 0.0
    %1087 = vmatpush2.msra.mxu0 0.0
    %1088 = vmatprep.subr.mxu0 0.0
    %1089 = vmatpush2.msra.mxu0 0.0
    %1090 = vmatprep.subr.mxu0 0.0
    %1091 = vmatpush2.msra.mxu0 0.0
    %1092 = vmatprep.subr.mxu0 0.0
    %1093 = vmatpush2.msra.mxu0 0.0
    %1094 = vmatprep.subr.mxu0 0.0
    %1095 = vmatpush2.msra.mxu0 0.0
    %1096 = vmatprep.subr.mxu0 0.0
    %1097 = vmatpush2.msra.mxu0 0.0
    %1098 = vmatprep.subr.mxu0 0.0
    %1099 = vmatpush2.msra.mxu0 0.0
    %1100 = vmatprep.mubr.f32.mxu0 0.0
    %1101 = vmatmul.mubr.f32.gmra.mxu0 %v1034
    %v1102 = vpop.f32.mrf.mxu0
    %v1103 = vadd.f32 %v1031, %v1102
    %v1104 = vpop.f32.mrf.mxu0
    %1105 = vdwg.mxu0
    %1106 = vrot.lane.b32.xlu0 %v789, 120
    %v1107 = vpop.permute.xlu0 %1106
    %v1110 = vsel %vm137, %v45, 0
    %1112 = vmatprep.subr.mxu0 0.0
    %1113 = vmatpush1.msra.mxu0 0.0
    %1114 = vmatprep.subr.mxu0 0.0
    %1115 = vmatpush1.msra.mxu0 0.0
    %1116 = vmatprep.subr.mxu0 0.0
    %1117 = vmatpush1.msra.mxu0 0.0
    %1118 = vmatprep.subr.mxu0 0.0
    %1119 = vmatpush1.msra.mxu0 0.0
    %1120 = vmatprep.subr.mxu0 0.0
    %1121 = vmatpush1.msra.mxu0 0.0
    %1122 = vmatprep.subr.mxu0 0.0
    %1123 = vmatpush1.msra.mxu0 0.0
    %1124 = vmatprep.subr.mxu0 0.0
    %1125 = vmatpush1.msra.mxu0 0.0
    %1126 = vmatprep.subr.mxu0 0.0
    %1127 = vmatpush1.msra.mxu0 0.0
    %1128 = vmatprep.subr.mxu0 0.0
    %1129 = vmatpush1.msra.mxu0 0.0
    %1130 = vmatprep.subr.mxu0 0.0
    %1131 = vmatpush1.msra.mxu0 0.0
    %1132 = vmatprep.subr.mxu0 0.0
    %1133 = vmatpush1.msra.mxu0 0.0
    %1134 = vmatprep.subr.mxu0 0.0
    %1135 = vmatpush1.msra.mxu0 0.0
    %1136 = vmatprep.subr.mxu0 0.0
    %1137 = vmatpush1.msra.mxu0 %v741
    %1138 = vmatprep.subr.mxu0 0.0
    %1139 = vmatpush1.msra.mxu0 %v740
    %1140 = vmatprep.subr.mxu0 0.0
    %1141 = vmatpush1.msra.mxu0 %v739
    %1142 = vmatprep.subr.mxu0 0.0
    %1143 = vmatpush1.msra.mxu0 %v738
    %1144 = vmatprep.subr.mxu0 0.0
    %1145 = vmatpush2.msra.mxu0 0.0
    %1146 = vmatprep.subr.mxu0 0.0
    %1147 = vmatpush2.msra.mxu0 0.0
    %1148 = vmatprep.subr.mxu0 0.0
    %1149 = vmatpush2.msra.mxu0 0.0
    %1150 = vmatprep.subr.mxu0 0.0
    %1151 = vmatpush2.msra.mxu0 0.0
    %1152 = vmatprep.subr.mxu0 0.0
    %1153 = vmatpush2.msra.mxu0 0.0
    %1154 = vmatprep.subr.mxu0 0.0
    %1155 = vmatpush2.msra.mxu0 0.0
    %1156 = vmatprep.subr.mxu0 0.0
    %1157 = vmatpush2.msra.mxu0 0.0
    %1158 = vmatprep.subr.mxu0 0.0
    %1159 = vmatpush2.msra.mxu0 0.0
    %1160 = vmatprep.subr.mxu0 0.0
    %1161 = vmatpush2.msra.mxu0 0.0
    %1162 = vmatprep.subr.mxu0 0.0
    %1163 = vmatpush2.msra.mxu0 0.0
    %1164 = vmatprep.subr.mxu0 0.0
    %1165 = vmatpush2.msra.mxu0 0.0
    %1166 = vmatprep.subr.mxu0 0.0
    %1167 = vmatpush2.msra.mxu0 0.0
    %1168 = vmatprep.subr.mxu0 0.0
    %1169 = vmatpush2.msra.mxu0 0.0
    %1170 = vmatprep.subr.mxu0 0.0
    %1171 = vmatpush2.msra.mxu0 0.0
    %1172 = vmatprep.subr.mxu0 0.0
    %1173 = vmatpush2.msra.mxu0 0.0
    %1174 = vmatprep.subr.mxu0 0.0
    %1175 = vmatpush2.msra.mxu0 0.0
    %1176 = vmatprep.mubr.f32.mxu0 0.0
    %1177 = vmatmul.mubr.f32.gmra.mxu0 %v1110
    %v1178 = vpop.f32.mrf.mxu0
    %v1179 = vadd.f32 %v1107, %v1178
    %v1180 = vpop.f32.mrf.mxu0
    %1181 = vdwg.mxu0
    %1182 = vrot.lane.b32.xlu0 %v793, 120
    %v1183 = vpop.permute.xlu0 %1182
    %v1186 = vsel %vm137, %v46, 0
    %1188 = vmatprep.subr.mxu0 0.0
    %1189 = vmatpush1.msra.mxu0 0.0
    %1190 = vmatprep.subr.mxu0 0.0
    %1191 = vmatpush1.msra.mxu0 0.0
    %1192 = vmatprep.subr.mxu0 0.0
    %1193 = vmatpush1.msra.mxu0 0.0
    %1194 = vmatprep.subr.mxu0 0.0
    %1195 = vmatpush1.msra.mxu0 0.0
    %1196 = vmatprep.subr.mxu0 0.0
    %1197 = vmatpush1.msra.mxu0 0.0
    %1198 = vmatprep.subr.mxu0 0.0
    %1199 = vmatpush1.msra.mxu0 0.0
    %1200 = vmatprep.subr.mxu0 0.0
    %1201 = vmatpush1.msra.mxu0 0.0
    %1202 = vmatprep.subr.mxu0 0.0
    %1203 = vmatpush1.msra.mxu0 0.0
    %1204 = vmatprep.subr.mxu0 0.0
    %1205 = vmatpush1.msra.mxu0 0.0
    %1206 = vmatprep.subr.mxu0 0.0
    %1207 = vmatpush1.msra.mxu0 0.0
    %1208 = vmatprep.subr.mxu0 0.0
    %1209 = vmatpush1.msra.mxu0 0.0
    %1210 = vmatprep.subr.mxu0 0.0
    %1211 = vmatpush1.msra.mxu0 0.0
    %1212 = vmatprep.subr.mxu0 0.0
    %1213 = vmatpush1.msra.mxu0 %v745
    %1214 = vmatprep.subr.mxu0 0.0
    %1215 = vmatpush1.msra.mxu0 %v744
    %1216 = vmatprep.subr.mxu0 0.0
    %1217 = vmatpush1.msra.mxu0 %v743
    %1218 = vmatprep.subr.mxu0 0.0
    %1219 = vmatpush1.msra.mxu0 %v742
    %1220 = vmatprep.subr.mxu0 0.0
    %1221 = vmatpush2.msra.mxu0 0.0
    %1222 = vmatprep.subr.mxu0 0.0
    %1223 = vmatpush2.msra.mxu0 0.0
    %1224 = vmatprep.subr.mxu0 0.0
    %1225 = vmatpush2.msra.mxu0 0.0
    %1226 = vmatprep.subr.mxu0 0.0
    %1227 = vmatpush2.msra.mxu0 0.0
    %1228 = vmatprep.subr.mxu0 0.0
    %1229 = vmatpush2.msra.mxu0 0.0
    %1230 = vmatprep.subr.mxu0 0.0
    %1231 = vmatpush2.msra.mxu0 0.0
    %1232 = vmatprep.subr.mxu0 0.0
    %1233 = vmatpush2.msra.mxu0 0.0
    %1234 = vmatprep.subr.mxu0 0.0
    %1235 = vmatpush2.msra.mxu0 0.0
    %1236 = vmatprep.subr.mxu0 0.0
    %1237 = vmatpush2.msra.mxu0 0.0
    %1238 = vmatprep.subr.mxu0 0.0
    %1239 = vmatpush2.msra.mxu0 0.0
    %1240 = vmatprep.subr.mxu0 0.0
    %1241 = vmatpush2.msra.mxu0 0.0
    %1242 = vmatprep.subr.mxu0 0.0
    %1243 = vmatpush2.msra.mxu0 0.0
    %1244 = vmatprep.subr.mxu0 0.0
    %1245 = vmatpush2.msra.mxu0 0.0
    %1246 = vmatprep.subr.mxu0 0.0
    %1247 = vmatpush2.msra.mxu0 0.0
    %1248 = vmatprep.subr.mxu0 0.0
    %1249 = vmatpush2.msra.mxu0 0.0
    %1250 = vmatprep.subr.mxu0 0.0
    %1251 = vmatpush2.msra.mxu0 0.0
    %1252 = vmatprep.mubr.f32.mxu0 0.0
    %1253 = vmatmul.mubr.f32.gmra.mxu0 %v1186
    %v1254 = vpop.f32.mrf.mxu0
    %v1255 = vadd.f32 %v1183, %v1254
    %v1256 = vpop.f32.mrf.mxu0
    %1257 = vdwg.mxu0
    %1258 = vrot.lane.b32.xlu0 %v797, 120
    %v1259 = vpop.permute.xlu0 %1258
    %v1262 = vsel %vm137, %v47, 0
    %1264 = vmatprep.subr.mxu0 0.0
    %1265 = vmatpush1.msra.mxu0 0.0
    %1266 = vmatprep.subr.mxu0 0.0
    %1267 = vmatpush1.msra.mxu0 0.0
    %1268 = vmatprep.subr.mxu0 0.0
    %1269 = vmatpush1.msra.mxu0 0.0
    %1270 = vmatprep.subr.mxu0 0.0
    %1271 = vmatpush1.msra.mxu0 0.0
    %1272 = vmatprep.subr.mxu0 0.0
    %1273 = vmatpush1.msra.mxu0 0.0
    %1274 = vmatprep.subr.mxu0 0.0
    %1275 = vmatpush1.msra.mxu0 0.0
    %1276 = vmatprep.subr.mxu0 0.0
    %1277 = vmatpush1.msra.mxu0 0.0
    %1278 = vmatprep.subr.mxu0 0.0
    %1279 = vmatpush1.msra.mxu0 0.0
    %1280 = vmatprep.subr.mxu0 0.0
    %1281 = vmatpush1.msra.mxu0 0.0
    %1282 = vmatprep.subr.mxu0 0.0
    %1283 = vmatpush1.msra.mxu0 0.0
    %1284 = vmatprep.subr.mxu0 0.0
    %1285 = vmatpush1.msra.mxu0 0.0
    %1286 = vmatprep.subr.mxu0 0.0
    %1287 = vmatpush1.msra.mxu0 0.0
    %1288 = vmatprep.subr.mxu0 0.0
    %1289 = vmatpush1.msra.mxu0 %v749
    %1290 = vmatprep.subr.mxu0 0.0
    %1291 = vmatpush1.msra.mxu0 %v748
    %1292 = vmatprep.subr.mxu0 0.0
    %1293 = vmatpush1.msra.mxu0 %v747
    %1294 = vmatprep.subr.mxu0 0.0
    %1295 = vmatpush1.msra.mxu0 %v746
    %1296 = vmatprep.subr.mxu0 0.0
    %1297 = vmatpush2.msra.mxu0 0.0
    %1298 = vmatprep.subr.mxu0 0.0
    %1299 = vmatpush2.msra.mxu0 0.0
    %1300 = vmatprep.subr.mxu0 0.0
    %1301 = vmatpush2.msra.mxu0 0.0
    %1302 = vmatprep.subr.mxu0 0.0
    %1303 = vmatpush2.msra.mxu0 0.0
    %1304 = vmatprep.subr.mxu0 0.0
    %1305 = vmatpush2.msra.mxu0 0.0
    %1306 = vmatprep.subr.mxu0 0.0
    %1307 = vmatpush2.msra.mxu0 0.0
    %1308 = vmatprep.subr.mxu0 0.0
    %1309 = vmatpush2.msra.mxu0 0.0
    %1310 = vmatprep.subr.mxu0 0.0
    %1311 = vmatpush2.msra.mxu0 0.0
    %1312 = vmatprep.subr.mxu0 0.0
    %1313 = vmatpush2.msra.mxu0 0.0
    %1314 = vmatprep.subr.mxu0 0.0
    %1315 = vmatpush2.msra.mxu0 0.0
    %1316 = vmatprep.subr.mxu0 0.0
    %1317 = vmatpush2.msra.mxu0 0.0
    %1318 = vmatprep.subr.mxu0 0.0
    %1319 = vmatpush2.msra.mxu0 0.0
    %1320 = vmatprep.subr.mxu0 0.0
    %1321 = vmatpush2.msra.mxu0 0.0
    %1322 = vmatprep.subr.mxu0 0.0
    %1323 = vmatpush2.msra.mxu0 0.0
    %1324 = vmatprep.subr.mxu0 0.0
    %1325 = vmatpush2.msra.mxu0 0.0
    %1326 = vmatprep.subr.mxu0 0.0
    %1327 = vmatpush2.msra.mxu0 0.0
    %1328 = vmatprep.mubr.f32.mxu0 0.0
    %1329 = vmatmul.mubr.f32.gmra.mxu0 %v1262
    %v1330 = vpop.f32.mrf.mxu0
    %v1331 = vadd.f32 %v1259, %v1330
    %v1332 = vpop.f32.mrf.mxu0
    %1333 = vdwg.mxu0
    %1334 = vrot.lane.b32.xlu0 %v801, 120
    %v1335 = vpop.permute.xlu0 %1334
    %v1338 = vsel %vm137, %v48, 0
    %1340 = vmatprep.subr.mxu0 0.0
    %1341 = vmatpush1.msra.mxu0 0.0
    %1342 = vmatprep.subr.mxu0 0.0
    %1343 = vmatpush1.msra.mxu0 0.0
    %1344 = vmatprep.subr.mxu0 0.0
    %1345 = vmatpush1.msra.mxu0 0.0
    %1346 = vmatprep.subr.mxu0 0.0
    %1347 = vmatpush1.msra.mxu0 0.0
    %1348 = vmatprep.subr.mxu0 0.0
    %1349 = vmatpush1.msra.mxu0 0.0
    %1350 = vmatprep.subr.mxu0 0.0
    %1351 = vmatpush1.msra.mxu0 0.0
    %1352 = vmatprep.subr.mxu0 0.0
    %1353 = vmatpush1.msra.mxu0 0.0
    %1354 = vmatprep.subr.mxu0 0.0
    %1355 = vmatpush1.msra.mxu0 0.0
    %1356 = vmatprep.subr.mxu0 0.0
    %1357 = vmatpush1.msra.mxu0 0.0
    %1358 = vmatprep.subr.mxu0 0.0
    %1359 = vmatpush1.msra.mxu0 0.0
    %1360 = vmatprep.subr.mxu0 0.0
    %1361 = vmatpush1.msra.mxu0 0.0
    %1362 = vmatprep.subr.mxu0 0.0
    %1363 = vmatpush1.msra.mxu0 0.0
    %1364 = vmatprep.subr.mxu0 0.0
    %1365 = vmatpush1.msra.mxu0 %v753
    %1366 = vmatprep.subr.mxu0 0.0
    %1367 = vmatpush1.msra.mxu0 %v752
    %1368 = vmatprep.subr.mxu0 0.0
    %1369 = vmatpush1.msra.mxu0 %v751
    %1370 = vmatprep.subr.mxu0 0.0
    %1371 = vmatpush1.msra.mxu0 %v750
    %1372 = vmatprep.subr.mxu0 0.0
    %1373 = vmatpush2.msra.mxu0 0.0
    %1374 = vmatprep.subr.mxu0 0.0
    %1375 = vmatpush2.msra.mxu0 0.0
    %1376 = vmatprep.subr.mxu0 0.0
    %1377 = vmatpush2.msra.mxu0 0.0
    %1378 = vmatprep.subr.mxu0 0.0
    %1379 = vmatpush2.msra.mxu0 0.0
    %1380 = vmatprep.subr.mxu0 0.0
    %1381 = vmatpush2.msra.mxu0 0.0
    %1382 = vmatprep.subr.mxu0 0.0
    %1383 = vmatpush2.msra.mxu0 0.0
    %1384 = vmatprep.subr.mxu0 0.0
    %1385 = vmatpush2.msra.mxu0 0.0
    %1386 = vmatprep.subr.mxu0 0.0
    %1387 = vmatpush2.msra.mxu0 0.0
    %1388 = vmatprep.subr.mxu0 0.0
    %1389 = vmatpush2.msra.mxu0 0.0
    %1390 = vmatprep.subr.mxu0 0.0
    %1391 = vmatpush2.msra.mxu0 0.0
    %1392 = vmatprep.subr.mxu0 0.0
    %1393 = vmatpush2.msra.mxu0 0.0
    %1394 = vmatprep.subr.mxu0 0.0
    %1395 = vmatpush2.msra.mxu0 0.0
    %1396 = vmatprep.subr.mxu0 0.0
    %1397 = vmatpush2.msra.mxu0 0.0
    %1398 = vmatprep.subr.mxu0 0.0
    %1399 = vmatpush2.msra.mxu0 0.0
    %1400 = vmatprep.subr.mxu0 0.0
    %1401 = vmatpush2.msra.mxu0 0.0
    %1402 = vmatprep.subr.mxu0 0.0
    %1403 = vmatpush2.msra.mxu0 0.0
    %1404 = vmatprep.mubr.f32.mxu0 0.0
    %1405 = vmatmul.mubr.f32.gmra.mxu0 %v1338
    %v1406 = vpop.f32.mrf.mxu0
    %v1407 = vadd.f32 %v1335, %v1406
    %v1408 = vpop.f32.mrf.mxu0
    %1409 = vdwg.mxu0
    %vm1410 = vcmask 64512
    %v1412 = vsel %vm1410, %v208, 0
    %v1415 = vsel %vm1410, %v875, 0
    %1417 = vmatprep.subr.mxu0 0.0
    %1418 = vmatpush1.xpose.msra.mxu0 0.0
    %1419 = vmatprep.subr.mxu0 0.0
    %1420 = vmatpush1.xpose.msra.mxu0 0.0
    %1421 = vmatprep.subr.mxu0 0.0
    %1422 = vmatpush1.xpose.msra.mxu0 0.0
    %1423 = vmatprep.subr.mxu0 0.0
    %1424 = vmatpush1.xpose.msra.mxu0 0.0
    %1425 = vmatprep.subr.mxu0 0.0
    %1426 = vmatpush1.xpose.msra.mxu0 0.0
    %1427 = vmatprep.subr.mxu0 0.0
    %1428 = vmatpush1.xpose.msra.mxu0 0.0
    %1429 = vmatprep.subr.mxu0 0.0
    %1430 = vmatpush1.xpose.msra.mxu0 0.0
    %1431 = vmatprep.subr.mxu0 0.0
    %1432 = vmatpush1.xpose.msra.mxu0 0.0
    %1433 = vmatprep.subr.mxu0 0.0
    %1434 = vmatpush1.xpose.msra.mxu0 0.0
    %1435 = vmatprep.subr.mxu0 0.0
    %1436 = vmatpush1.xpose.msra.mxu0 0.0
    %1437 = vmatprep.subr.mxu0 0.0
    %1438 = vmatpush1.xpose.msra.mxu0 0.0
    %1439 = vmatprep.subr.mxu0 0.0
    %1440 = vmatpush1.xpose.msra.mxu0 0.0
    %1441 = vmatprep.subr.mxu0 0.0
    %1442 = vmatpush1.xpose.msra.mxu0 0.0
    %1443 = vmatprep.subr.mxu0 0.0
    %1444 = vmatpush1.xpose.msra.mxu0 0.0
    %1445 = vmatprep.subr.mxu0 0.0
    %1446 = vmatpush1.xpose.msra.mxu0 0.0
    %1447 = vmatprep.subr.mxu0 0.0
    %1448 = vmatpush1.xpose.msra.mxu0 %v1415
    %1449 = vmatprep.subr.mxu0 0.0
    %1450 = vmatpush2.xpose.msra.mxu0 0.0
    %1451 = vmatprep.subr.mxu0 0.0
    %1452 = vmatpush2.xpose.msra.mxu0 0.0
    %1453 = vmatprep.subr.mxu0 0.0
    %1454 = vmatpush2.xpose.msra.mxu0 0.0
    %1455 = vmatprep.subr.mxu0 0.0
    %1456 = vmatpush2.xpose.msra.mxu0 0.0
    %1457 = vmatprep.subr.mxu0 0.0
    %1458 = vmatpush2.xpose.msra.mxu0 0.0
    %1459 = vmatprep.subr.mxu0 0.0
    %1460 = vmatpush2.xpose.msra.mxu0 0.0
    %1461 = vmatprep.subr.mxu0 0.0
    %1462 = vmatpush2.xpose.msra.mxu0 0.0
    %1463 = vmatprep.subr.mxu0 0.0
    %1464 = vmatpush2.xpose.msra.mxu0 0.0
    %1465 = vmatprep.subr.mxu0 0.0
    %1466 = vmatpush2.xpose.msra.mxu0 0.0
    %1467 = vmatprep.subr.mxu0 0.0
    %1468 = vmatpush2.xpose.msra.mxu0 0.0
    %1469 = vmatprep.subr.mxu0 0.0
    %1470 = vmatpush2.xpose.msra.mxu0 0.0
    %1471 = vmatprep.subr.mxu0 0.0
    %1472 = vmatpush2.xpose.msra.mxu0 0.0
    %1473 = vmatprep.subr.mxu0 0.0
    %1474 = vmatpush2.xpose.msra.mxu0 0.0
    %1475 = vmatprep.subr.mxu0 0.0
    %1476 = vmatpush2.xpose.msra.mxu0 0.0
    %1477 = vmatprep.subr.mxu0 0.0
    %1478 = vmatpush2.xpose.msra.mxu0 0.0
    %1479 = vmatprep.subr.mxu0 0.0
    %1480 = vmatpush2.xpose.msra.mxu0 0.0
    %1481 = vmatprep.mubr.f32.mxu0 0.0
    %1482 = vmatmul.mubr.f32.gmra.mxu0 %v1412
    %v1483 = vpop.f32.mrf.mxu0
    %v1484 = vadd.f32 0.0, %v1483
    %v1485 = vpop.f32.mrf.mxu0
    %1486 = vdwg.mxu0
    %v1488 = vsel %vm1410, %v281, 0
    %v1491 = vsel %vm1410, %v951, 0
    %1493 = vmatprep.subr.mxu0 0.0
    %1494 = vmatpush1.xpose.msra.mxu0 0.0
    %1495 = vmatprep.subr.mxu0 0.0
    %1496 = vmatpush1.xpose.msra.mxu0 0.0
    %1497 = vmatprep.subr.mxu0 0.0
    %1498 = vmatpush1.xpose.msra.mxu0 0.0
    %1499 = vmatprep.subr.mxu0 0.0
    %1500 = vmatpush1.xpose.msra.mxu0 0.0
    %1501 = vmatprep.subr.mxu0 0.0
    %1502 = vmatpush1.xpose.msra.mxu0 0.0
    %1503 = vmatprep.subr.mxu0 0.0
    %1504 = vmatpush1.xpose.msra.mxu0 0.0
    %1505 = vmatprep.subr.mxu0 0.0
    %1506 = vmatpush1.xpose.msra.mxu0 0.0
    %1507 = vmatprep.subr.mxu0 0.0
    %1508 = vmatpush1.xpose.msra.mxu0 0.0
    %1509 = vmatprep.subr.mxu0 0.0
    %1510 = vmatpush1.xpose.msra.mxu0 0.0
    %1511 = vmatprep.subr.mxu0 0.0
    %1512 = vmatpush1.xpose.msra.mxu0 0.0
    %1513 = vmatprep.subr.mxu0 0.0
    %1514 = vmatpush1.xpose.msra.mxu0 0.0
    %1515 = vmatprep.subr.mxu0 0.0
    %1516 = vmatpush1.xpose.msra.mxu0 0.0
    %1517 = vmatprep.subr.mxu0 0.0
    %1518 = vmatpush1.xpose.msra.mxu0 0.0
    %1519 = vmatprep.subr.mxu0 0.0
    %1520 = vmatpush1.xpose.msra.mxu0 0.0
    %1521 = vmatprep.subr.mxu0 0.0
    %1522 = vmatpush1.xpose.msra.mxu0 0.0
    %1523 = vmatprep.subr.mxu0 0.0
    %1524 = vmatpush1.xpose.msra.mxu0 %v1491
    %1525 = vmatprep.subr.mxu0 0.0
    %1526 = vmatpush2.xpose.msra.mxu0 0.0
    %1527 = vmatprep.subr.mxu0 0.0
    %1528 = vmatpush2.xpose.msra.mxu0 0.0
    %1529 = vmatprep.subr.mxu0 0.0
    %1530 = vmatpush2.xpose.msra.mxu0 0.0
    %1531 = vmatprep.subr.mxu0 0.0
    %1532 = vmatpush2.xpose.msra.mxu0 0.0
    %1533 = vmatprep.subr.mxu0 0.0
    %1534 = vmatpush2.xpose.msra.mxu0 0.0
    %1535 = vmatprep.subr.mxu0 0.0
    %1536 = vmatpush2.xpose.msra.mxu0 0.0
    %1537 = vmatprep.subr.mxu0 0.0
    %1538 = vmatpush2.xpose.msra.mxu0 0.0
    %1539 = vmatprep.subr.mxu0 0.0
    %1540 = vmatpush2.xpose.msra.mxu0 0.0
    %1541 = vmatprep.subr.mxu0 0.0
    %1542 = vmatpush2.xpose.msra.mxu0 0.0
    %1543 = vmatprep.subr.mxu0 0.0
    %1544 = vmatpush2.xpose.msra.mxu0 0.0
    %1545 = vmatprep.subr.mxu0 0.0
    %1546 = vmatpush2.xpose.msra.mxu0 0.0
    %1547 = vmatprep.subr.mxu0 0.0
    %1548 = vmatpush2.xpose.msra.mxu0 0.0
    %1549 = vmatprep.subr.mxu0 0.0
    %1550 = vmatpush2.xpose.msra.mxu0 0.0
    %1551 = vmatprep.subr.mxu0 0.0
    %1552 = vmatpush2.xpose.msra.mxu0 0.0
    %1553 = vmatprep.subr.mxu0 0.0
    %1554 = vmatpush2.xpose.msra.mxu0 0.0
    %1555 = vmatprep.subr.mxu0 0.0
    %1556 = vmatpush2.xpose.msra.mxu0 0.0
    %1557 = vmatprep.mubr.f32.mxu0 0.0
    %1558 = vmatmul.mubr.f32.gmra.mxu0 %v1488
    %v1559 = vpop.f32.mrf.mxu0
    %v1560 = vadd.f32 0.0, %v1559
    %v1561 = vpop.f32.mrf.mxu0
    %1562 = vdwg.mxu0
    %v1564 = vsel %vm1410, %v354, 0
    %v1567 = vsel %vm1410, %v1027, 0
    %1569 = vmatprep.subr.mxu0 0.0
    %1570 = vmatpush1.xpose.msra.mxu0 0.0
    %1571 = vmatprep.subr.mxu0 0.0
    %1572 = vmatpush1.xpose.msra.mxu0 0.0
    %1573 = vmatprep.subr.mxu0 0.0
    %1574 = vmatpush1.xpose.msra.mxu0 0.0
    %1575 = vmatprep.subr.mxu0 0.0
    %1576 = vmatpush1.xpose.msra.mxu0 0.0
    %1577 = vmatprep.subr.mxu0 0.0
    %1578 = vmatpush1.xpose.msra.mxu0 0.0
    %1579 = vmatprep.subr.mxu0 0.0
    %1580 = vmatpush1.xpose.msra.mxu0 0.0
    %1581 = vmatprep.subr.mxu0 0.0
    %1582 = vmatpush1.xpose.msra.mxu0 0.0
    %1583 = vmatprep.subr.mxu0 0.0
    %1584 = vmatpush1.xpose.msra.mxu0 0.0
    %1585 = vmatprep.subr.mxu0 0.0
    %1586 = vmatpush1.xpose.msra.mxu0 0.0
    %1587 = vmatprep.subr.mxu0 0.0
    %1588 = vmatpush1.xpose.msra.mxu0 0.0
    %1589 = vmatprep.subr.mxu0 0.0
    %1590 = vmatpush1.xpose.msra.mxu0 0.0
    %1591 = vmatprep.subr.mxu0 0.0
    %1592 = vmatpush1.xpose.msra.mxu0 0.0
    %1593 = vmatprep.subr.mxu0 0.0
    %1594 = vmatpush1.xpose.msra.mxu0 0.0
    %1595 = vmatprep.subr.mxu0 0.0
    %1596 = vmatpush1.xpose.msra.mxu0 0.0
    %1597 = vmatprep.subr.mxu0 0.0
    %1598 = vmatpush1.xpose.msra.mxu0 0.0
    %1599 = vmatprep.subr.mxu0 0.0
    %1600 = vmatpush1.xpose.msra.mxu0 %v1567
    %1601 = vmatprep.subr.mxu0 0.0
    %1602 = vmatpush2.xpose.msra.mxu0 0.0
    %1603 = vmatprep.subr.mxu0 0.0
    %1604 = vmatpush2.xpose.msra.mxu0 0.0
    %1605 = vmatprep.subr.mxu0 0.0
    %1606 = vmatpush2.xpose.msra.mxu0 0.0
    %1607 = vmatprep.subr.mxu0 0.0
    %1608 = vmatpush2.xpose.msra.mxu0 0.0
    %1609 = vmatprep.subr.mxu0 0.0
    %1610 = vmatpush2.xpose.msra.mxu0 0.0
    %1611 = vmatprep.subr.mxu0 0.0
    %1612 = vmatpush2.xpose.msra.mxu0 0.0
    %1613 = vmatprep.subr.mxu0 0.0
    %1614 = vmatpush2.xpose.msra.mxu0 0.0
    %1615 = vmatprep.subr.mxu0 0.0
    %1616 = vmatpush2.xpose.msra.mxu0 0.0
    %1617 = vmatprep.subr.mxu0 0.0
    %1618 = vmatpush2.xpose.msra.mxu0 0.0
    %1619 = vmatprep.subr.mxu0 0.0
    %1620 = vmatpush2.xpose.msra.mxu0 0.0
    %1621 = vmatprep.subr.mxu0 0.0
    %1622 = vmatpush2.xpose.msra.mxu0 0.0
    %1623 = vmatprep.subr.mxu0 0.0
    %1624 = vmatpush2.xpose.msra.mxu0 0.0
    %1625 = vmatprep.subr.mxu0 0.0
    %1626 = vmatpush2.xpose.msra.mxu0 0.0
    %1627 = vmatprep.subr.mxu0 0.0
    %1628 = vmatpush2.xpose.msra.mxu0 0.0
    %1629 = vmatprep.subr.mxu0 0.0
    %1630 = vmatpush2.xpose.msra.mxu0 0.0
    %1631 = vmatprep.subr.mxu0 0.0
    %1632 = vmatpush2.xpose.msra.mxu0 0.0
    %1633 = vmatprep.mubr.f32.mxu0 0.0
    %1634 = vmatmul.mubr.f32.gmra.mxu0 %v1564
    %v1635 = vpop.f32.mrf.mxu0
    %v1636 = vadd.f32 0.0, %v1635
    %v1637 = vpop.f32.mrf.mxu0
    %1638 = vdwg.mxu0
    %v1640 = vsel %vm1410, %v427, 0
    %v1643 = vsel %vm1410, %v1103, 0
    %1645 = vmatprep.subr.mxu0 0.0
    %1646 = vmatpush1.xpose.msra.mxu0 0.0
    %1647 = vmatprep.subr.mxu0 0.0
    %1648 = vmatpush1.xpose.msra.mxu0 0.0
    %1649 = vmatprep.subr.mxu0 0.0
    %1650 = vmatpush1.xpose.msra.mxu0 0.0
    %1651 = vmatprep.subr.mxu0 0.0
    %1652 = vmatpush1.xpose.msra.mxu0 0.0
    %1653 = vmatprep.subr.mxu0 0.0
    %1654 = vmatpush1.xpose.msra.mxu0 0.0
    %1655 = vmatprep.subr.mxu0 0.0
    %1656 = vmatpush1.xpose.msra.mxu0 0.0
    %1657 = vmatprep.subr.mxu0 0.0
    %1658 = vmatpush1.xpose.msra.mxu0 0.0
    %1659 = vmatprep.subr.mxu0 0.0
    %1660 = vmatpush1.xpose.msra.mxu0 0.0
    %1661 = vmatprep.subr.mxu0 0.0
    %1662 = vmatpush1.xpose.msra.mxu0 0.0
    %1663 = vmatprep.subr.mxu0 0.0
    %1664 = vmatpush1.xpose.msra.mxu0 0.0
    %1665 = vmatprep.subr.mxu0 0.0
    %1666 = vmatpush1.xpose.msra.mxu0 0.0
    %1667 = vmatprep.subr.mxu0 0.0
    %1668 = vmatpush1.xpose.msra.mxu0 0.0
    %1669 = vmatprep.subr.mxu0 0.0
    %1670 = vmatpush1.xpose.msra.mxu0 0.0
    %1671 = vmatprep.subr.mxu0 0.0
    %1672 = vmatpush1.xpose.msra.mxu0 0.0
    %1673 = vmatprep.subr.mxu0 0.0
    %1674 = vmatpush1.xpose.msra.mxu0 0.0
    %1675 = vmatprep.subr.mxu0 0.0
    %1676 = vmatpush1.xpose.msra.mxu0 %v1643
    %1677 = vmatprep.subr.mxu0 0.0
    %1678 = vmatpush2.xpose.msra.mxu0 0.0
    %1679 = vmatprep.subr.mxu0 0.0
    %1680 = vmatpush2.xpose.msra.mxu0 0.0
    %1681 = vmatprep.subr.mxu0 0.0
    %1682 = vmatpush2.xpose.msra.mxu0 0.0
    %1683 = vmatprep.subr.mxu0 0.0
    %1684 = vmatpush2.xpose.msra.mxu0 0.0
    %1685 = vmatprep.subr.mxu0 0.0
    %1686 = vmatpush2.xpose.msra.mxu0 0.0
    %1687 = vmatprep.subr.mxu0 0.0
    %1688 = vmatpush2.xpose.msra.mxu0 0.0
    %1689 = vmatprep.subr.mxu0 0.0
    %1690 = vmatpush2.xpose.msra.mxu0 0.0
    %1691 = vmatprep.subr.mxu0 0.0
    %1692 = vmatpush2.xpose.msra.mxu0 0.0
    %1693 = vmatprep.subr.mxu0 0.0
    %1694 = vmatpush2.xpose.msra.mxu0 0.0
    %1695 = vmatprep.subr.mxu0 0.0
    %1696 = vmatpush2.xpose.msra.mxu0 0.0
    %1697 = vmatprep.subr.mxu0 0.0
    %1698 = vmatpush2.xpose.msra.mxu0 0.0
    %1699 = vmatprep.subr.mxu0 0.0
    %1700 = vmatpush2.xpose.msra.mxu0 0.0
    %1701 = vmatprep.subr.mxu0 0.0
    %1702 = vmatpush2.xpose.msra.mxu0 0.0
    %1703 = vmatprep.subr.mxu0 0.0
    %1704 = vmatpush2.xpose.msra.mxu0 0.0
    %1705 = vmatprep.subr.mxu0 0.0
    %1706 = vmatpush2.xpose.msra.mxu0 0.0
    %1707 = vmatprep.subr.mxu0 0.0
    %1708 = vmatpush2.xpose.msra.mxu0 0.0
    %1709 = vmatprep.mubr.f32.mxu0 0.0
    %1710 = vmatmul.mubr.f32.gmra.mxu0 %v1640
    %v1711 = vpop.f32.mrf.mxu0
    %v1712 = vadd.f32 0.0, %v1711
    %v1713 = vpop.f32.mrf.mxu0
    %1714 = vdwg.mxu0
    %v1716 = vsel %vm1410, %v500, 0
    %v1719 = vsel %vm1410, %v1179, 0
    %1721 = vmatprep.subr.mxu0 0.0
    %1722 = vmatpush1.xpose.msra.mxu0 0.0
    %1723 = vmatprep.subr.mxu0 0.0
    %1724 = vmatpush1.xpose.msra.mxu0 0.0
    %1725 = vmatprep.subr.mxu0 0.0
    %1726 = vmatpush1.xpose.msra.mxu0 0.0
    %1727 = vmatprep.subr.mxu0 0.0
    %1728 = vmatpush1.xpose.msra.mxu0 0.0
    %1729 = vmatprep.subr.mxu0 0.0
    %1730 = vmatpush1.xpose.msra.mxu0 0.0
    %1731 = vmatprep.subr.mxu0 0.0
    %1732 = vmatpush1.xpose.msra.mxu0 0.0
    %1733 = vmatprep.subr.mxu0 0.0
    %1734 = vmatpush1.xpose.msra.mxu0 0.0
    %1735 = vmatprep.subr.mxu0 0.0
    %1736 = vmatpush1.xpose.msra.mxu0 0.0
    %1737 = vmatprep.subr.mxu0 0.0
    %1738 = vmatpush1.xpose.msra.mxu0 0.0
    %1739 = vmatprep.subr.mxu0 0.0
    %1740 = vmatpush1.xpose.msra.mxu0 0.0
    %1741 = vmatprep.subr.mxu0 0.0
    %1742 = vmatpush1.xpose.msra.mxu0 0.0
    %1743 = vmatprep.subr.mxu0 0.0
    %1744 = vmatpush1.xpose.msra.mxu0 0.0
    %1745 = vmatprep.subr.mxu0 0.0
    %1746 = vmatpush1.xpose.msra.mxu0 0.0
    %1747 = vmatprep.subr.mxu0 0.0
    %1748 = vmatpush1.xpose.msra.mxu0 0.0
    %1749 = vmatprep.subr.mxu0 0.0
    %1750 = vmatpush1.xpose.msra.mxu0 0.0
    %1751 = vmatprep.subr.mxu0 0.0
    %1752 = vmatpush1.xpose.msra.mxu0 %v1719
    %1753 = vmatprep.subr.mxu0 0.0
    %1754 = vmatpush2.xpose.msra.mxu0 0.0
    %1755 = vmatprep.subr.mxu0 0.0
    %1756 = vmatpush2.xpose.msra.mxu0 0.0
    %1757 = vmatprep.subr.mxu0 0.0
    %1758 = vmatpush2.xpose.msra.mxu0 0.0
    %1759 = vmatprep.subr.mxu0 0.0
    %1760 = vmatpush2.xpose.msra.mxu0 0.0
    %1761 = vmatprep.subr.mxu0 0.0
    %1762 = vmatpush2.xpose.msra.mxu0 0.0
    %1763 = vmatprep.subr.mxu0 0.0
    %1764 = vmatpush2.xpose.msra.mxu0 0.0
    %1765 = vmatprep.subr.mxu0 0.0
    %1766 = vmatpush2.xpose.msra.mxu0 0.0
    %1767 = vmatprep.subr.mxu0 0.0
    %1768 = vmatpush2.xpose.msra.mxu0 0.0
    %1769 = vmatprep.subr.mxu0 0.0
    %1770 = vmatpush2.xpose.msra.mxu0 0.0
    %1771 = vmatprep.subr.mxu0 0.0
    %1772 = vmatpush2.xpose.msra.mxu0 0.0
    %1773 = vmatprep.subr.mxu0 0.0
    %1774 = vmatpush2.xpose.msra.mxu0 0.0
    %1775 = vmatprep.subr.mxu0 0.0
    %1776 = vmatpush2.xpose.msra.mxu0 0.0
    %1777 = vmatprep.subr.mxu0 0.0
    %1778 = vmatpush2.xpose.msra.mxu0 0.0
    %1779 = vmatprep.subr.mxu0 0.0
    %1780 = vmatpush2.xpose.msra.mxu0 0.0
    %1781 = vmatprep.subr.mxu0 0.0
    %1782 = vmatpush2.xpose.msra.mxu0 0.0
    %1783 = vmatprep.subr.mxu0 0.0
    %1784 = vmatpush2.xpose.msra.mxu0 0.0
    %1785 = vmatprep.mubr.f32.mxu0 0.0
    %1786 = vmatmul.mubr.f32.gmra.mxu0 %v1716
    %v1787 = vpop.f32.mrf.mxu0
    %v1788 = vadd.f32 0.0, %v1787
    %v1789 = vpop.f32.mrf.mxu0
    %1790 = vdwg.mxu0
    %v1792 = vsel %vm1410, %v573, 0
    %v1795 = vsel %vm1410, %v1255, 0
    %1797 = vmatprep.subr.mxu0 0.0
    %1798 = vmatpush1.xpose.msra.mxu0 0.0
    %1799 = vmatprep.subr.mxu0 0.0
    %1800 = vmatpush1.xpose.msra.mxu0 0.0
    %1801 = vmatprep.subr.mxu0 0.0
    %1802 = vmatpush1.xpose.msra.mxu0 0.0
    %1803 = vmatprep.subr.mxu0 0.0
    %1804 = vmatpush1.xpose.msra.mxu0 0.0
    %1805 = vmatprep.subr.mxu0 0.0
    %1806 = vmatpush1.xpose.msra.mxu0 0.0
    %1807 = vmatprep.subr.mxu0 0.0
    %1808 = vmatpush1.xpose.msra.mxu0 0.0
    %1809 = vmatprep.subr.mxu0 0.0
    %1810 = vmatpush1.xpose.msra.mxu0 0.0
    %1811 = vmatprep.subr.mxu0 0.0
    %1812 = vmatpush1.xpose.msra.mxu0 0.0
    %1813 = vmatprep.subr.mxu0 0.0
    %1814 = vmatpush1.xpose.msra.mxu0 0.0
    %1815 = vmatprep.subr.mxu0 0.0
    %1816 = vmatpush1.xpose.msra.mxu0 0.0
    %1817 = vmatprep.subr.mxu0 0.0
    %1818 = vmatpush1.xpose.msra.mxu0 0.0
    %1819 = vmatprep.subr.mxu0 0.0
    %1820 = vmatpush1.xpose.msra.mxu0 0.0
    %1821 = vmatprep.subr.mxu0 0.0
    %1822 = vmatpush1.xpose.msra.mxu0 0.0
    %1823 = vmatprep.subr.mxu0 0.0
    %1824 = vmatpush1.xpose.msra.mxu0 0.0
    %1825 = vmatprep.subr.mxu0 0.0
    %1826 = vmatpush1.xpose.msra.mxu0 0.0
    %1827 = vmatprep.subr.mxu0 0.0
    %1828 = vmatpush1.xpose.msra.mxu0 %v1795
    %1829 = vmatprep.subr.mxu0 0.0
    %1830 = vmatpush2.xpose.msra.mxu0 0.0
    %1831 = vmatprep.subr.mxu0 0.0
    %1832 = vmatpush2.xpose.msra.mxu0 0.0
    %1833 = vmatprep.subr.mxu0 0.0
    %1834 = vmatpush2.xpose.msra.mxu0 0.0
    %1835 = vmatprep.subr.mxu0 0.0
    %1836 = vmatpush2.xpose.msra.mxu0 0.0
    %1837 = vmatprep.subr.mxu0 0.0
    %1838 = vmatpush2.xpose.msra.mxu0 0.0
    %1839 = vmatprep.subr.mxu0 0.0
    %1840 = vmatpush2.xpose.msra.mxu0 0.0
    %1841 = vmatprep.subr.mxu0 0.0
    %1842 = vmatpush2.xpose.msra.mxu0 0.0
    %1843 = vmatprep.subr.mxu0 0.0
    %1844 = vmatpush2.xpose.msra.mxu0 0.0
    %1845 = vmatprep.subr.mxu0 0.0
    %1846 = vmatpush2.xpose.msra.mxu0 0.0
    %1847 = vmatprep.subr.mxu0 0.0
    %1848 = vmatpush2.xpose.msra.mxu0 0.0
    %1849 = vmatprep.subr.mxu0 0.0
    %1850 = vmatpush2.xpose.msra.mxu0 0.0
    %1851 = vmatprep.subr.mxu0 0.0
    %1852 = vmatpush2.xpose.msra.mxu0 0.0
    %1853 = vmatprep.subr.mxu0 0.0
    %1854 = vmatpush2.xpose.msra.mxu0 0.0
    %1855 = vmatprep.subr.mxu0 0.0
    %1856 = vmatpush2.xpose.msra.mxu0 0.0
    %1857 = vmatprep.subr.mxu0 0.0
    %1858 = vmatpush2.xpose.msra.mxu0 0.0
    %1859 = vmatprep.subr.mxu0 0.0
    %1860 = vmatpush2.xpose.msra.mxu0 0.0
    %1861 = vmatprep.mubr.f32.mxu0 0.0
    %1862 = vmatmul.mubr.f32.gmra.mxu0 %v1792
    %v1863 = vpop.f32.mrf.mxu0
    %v1864 = vadd.f32 0.0, %v1863
    %v1865 = vpop.f32.mrf.mxu0
    %1866 = vdwg.mxu0
    %v1868 = vsel %vm1410, %v646, 0
    %v1871 = vsel %vm1410, %v1331, 0
    %1873 = vmatprep.subr.mxu0 0.0
    %1874 = vmatpush1.xpose.msra.mxu0 0.0
    %1875 = vmatprep.subr.mxu0 0.0
    %1876 = vmatpush1.xpose.msra.mxu0 0.0
    %1877 = vmatprep.subr.mxu0 0.0
    %1878 = vmatpush1.xpose.msra.mxu0 0.0
    %1879 = vmatprep.subr.mxu0 0.0
    %1880 = vmatpush1.xpose.msra.mxu0 0.0
    %1881 = vmatprep.subr.mxu0 0.0
    %1882 = vmatpush1.xpose.msra.mxu0 0.0
    %1883 = vmatprep.subr.mxu0 0.0
    %1884 = vmatpush1.xpose.msra.mxu0 0.0
    %1885 = vmatprep.subr.mxu0 0.0
    %1886 = vmatpush1.xpose.msra.mxu0 0.0
    %1887 = vmatprep.subr.mxu0 0.0
    %1888 = vmatpush1.xpose.msra.mxu0 0.0
    %1889 = vmatprep.subr.mxu0 0.0
    %1890 = vmatpush1.xpose.msra.mxu0 0.0
    %1891 = vmatprep.subr.mxu0 0.0
    %1892 = vmatpush1.xpose.msra.mxu0 0.0
    %1893 = vmatprep.subr.mxu0 0.0
    %1894 = vmatpush1.xpose.msra.mxu0 0.0
    %1895 = vmatprep.subr.mxu0 0.0
    %1896 = vmatpush1.xpose.msra.mxu0 0.0
    %1897 = vmatprep.subr.mxu0 0.0
    %1898 = vmatpush1.xpose.msra.mxu0 0.0
    %1899 = vmatprep.subr.mxu0 0.0
    %1900 = vmatpush1.xpose.msra.mxu0 0.0
    %1901 = vmatprep.subr.mxu0 0.0
    %1902 = vmatpush1.xpose.msra.mxu0 0.0
    %1903 = vmatprep.subr.mxu0 0.0
    %1904 = vmatpush1.xpose.msra.mxu0 %v1871
    %1905 = vmatprep.subr.mxu0 0.0
    %1906 = vmatpush2.xpose.msra.mxu0 0.0
    %1907 = vmatprep.subr.mxu0 0.0
    %1908 = vmatpush2.xpose.msra.mxu0 0.0
    %1909 = vmatprep.subr.mxu0 0.0
    %1910 = vmatpush2.xpose.msra.mxu0 0.0
    %1911 = vmatprep.subr.mxu0 0.0
    %1912 = vmatpush2.xpose.msra.mxu0 0.0
    %1913 = vmatprep.subr.mxu0 0.0
    %1914 = vmatpush2.xpose.msra.mxu0 0.0
    %1915 = vmatprep.subr.mxu0 0.0
    %1916 = vmatpush2.xpose.msra.mxu0 0.0
    %1917 = vmatprep.subr.mxu0 0.0
    %1918 = vmatpush2.xpose.msra.mxu0 0.0
    %1919 = vmatprep.subr.mxu0 0.0
    %1920 = vmatpush2.xpose.msra.mxu0 0.0
    %1921 = vmatprep.subr.mxu0 0.0
    %1922 = vmatpush2.xpose.msra.mxu0 0.0
    %1923 = vmatprep.subr.mxu0 0.0
    %1924 = vmatpush2.xpose.msra.mxu0 0.0
    %1925 = vmatprep.subr.mxu0 0.0
    %1926 = vmatpush2.xpose.msra.mxu0 0.0
    %1927 = vmatprep.subr.mxu0 0.0
    %1928 = vmatpush2.xpose.msra.mxu0 0.0
    %1929 = vmatprep.subr.mxu0 0.0
    %1930 = vmatpush2.xpose.msra.mxu0 0.0
    %1931 = vmatprep.subr.mxu0 0.0
    %1932 = vmatpush2.xpose.msra.mxu0 0.0
    %1933 = vmatprep.subr.mxu0 0.0
    %1934 = vmatpush2.xpose.msra.mxu0 0.0
    %1935 = vmatprep.subr.mxu0 0.0
    %1936 = vmatpush2.xpose.msra.mxu0 0.0
    %1937 = vmatprep.mubr.f32.mxu0 0.0
    %1938 = vmatmul.mubr.f32.gmra.mxu0 %v1868
    %v1939 = vpop.f32.mrf.mxu0
    %v1940 = vadd.f32 0.0, %v1939
    %v1941 = vpop.f32.mrf.mxu0
    %1942 = vdwg.mxu0
    %v1944 = vsel %vm1410, %v719, 0
    %v1947 = vsel %vm1410, %v1407, 0
    %1949 = vmatprep.subr.mxu0 0.0
    %1950 = vmatpush1.xpose.msra.mxu0 0.0
    %1951 = vmatprep.subr.mxu0 0.0
    %1952 = vmatpush1.xpose.msra.mxu0 0.0
    %1953 = vmatprep.subr.mxu0 0.0
    %1954 = vmatpush1.xpose.msra.mxu0 0.0
    %1955 = vmatprep.subr.mxu0 0.0
    %1956 = vmatpush1.xpose.msra.mxu0 0.0
    %1957 = vmatprep.subr.mxu0 0.0
    %1958 = vmatpush1.xpose.msra.mxu0 0.0
    %1959 = vmatprep.subr.mxu0 0.0
    %1960 = vmatpush1.xpose.msra.mxu0 0.0
    %1961 = vmatprep.subr.mxu0 0.0
    %1962 = vmatpush1.xpose.msra.mxu0 0.0
    %1963 = vmatprep.subr.mxu0 0.0
    %1964 = vmatpush1.xpose.msra.mxu0 0.0
    %1965 = vmatprep.subr.mxu0 0.0
    %1966 = vmatpush1.xpose.msra.mxu0 0.0
    %1967 = vmatprep.subr.mxu0 0.0
    %1968 = vmatpush1.xpose.msra.mxu0 0.0
    %1969 = vmatprep.subr.mxu0 0.0
    %1970 = vmatpush1.xpose.msra.mxu0 0.0
    %1971 = vmatprep.subr.mxu0 0.0
    %1972 = vmatpush1.xpose.msra.mxu0 0.0
    %1973 = vmatprep.subr.mxu0 0.0
    %1974 = vmatpush1.xpose.msra.mxu0 0.0
    %1975 = vmatprep.subr.mxu0 0.0
    %1976 = vmatpush1.xpose.msra.mxu0 0.0
    %1977 = vmatprep.subr.mxu0 0.0
    %1978 = vmatpush1.xpose.msra.mxu0 0.0
    %1979 = vmatprep.subr.mxu0 0.0
    %1980 = vmatpush1.xpose.msra.mxu0 %v1947
    %1981 = vmatprep.subr.mxu0 0.0
    %1982 = vmatpush2.xpose.msra.mxu0 0.0
    %1983 = vmatprep.subr.mxu0 0.0
    %1984 = vmatpush2.xpose.msra.mxu0 0.0
    %1985 = vmatprep.subr.mxu0 0.0
    %1986 = vmatpush2.xpose.msra.mxu0 0.0
    %1987 = vmatprep.subr.mxu0 0.0
    %1988 = vmatpush2.xpose.msra.mxu0 0.0
    %1989 = vmatprep.subr.mxu0 0.0
    %1990 = vmatpush2.xpose.msra.mxu0 0.0
    %1991 = vmatprep.subr.mxu0 0.0
    %1992 = vmatpush2.xpose.msra.mxu0 0.0
    %1993 = vmatprep.subr.mxu0 0.0
    %1994 = vmatpush2.xpose.msra.mxu0 0.0
    %1995 = vmatprep.subr.mxu0 0.0
    %1996 = vmatpush2.xpose.msra.mxu0 0.0
    %1997 = vmatprep.subr.mxu0 0.0
    %1998 = vmatpush2.xpose.msra.mxu0 0.0
    %1999 = vmatprep.subr.mxu0 0.0
    %2000 = vmatpush2.xpose.msra.mxu0 0.0
    %2001 = vmatprep.subr.mxu0 0.0
    %2002 = vmatpush2.xpose.msra.mxu0 0.0
    %2003 = vmatprep.subr.mxu0 0.0
    %2004 = vmatpush2.xpose.msra.mxu0 0.0
    %2005 = vmatprep.subr.mxu0 0.0
    %2006 = vmatpush2.xpose.msra.mxu0 0.0
    %2007 = vmatprep.subr.mxu0 0.0
    %2008 = vmatpush2.xpose.msra.mxu0 0.0
    %2009 = vmatprep.subr.mxu0 0.0
    %2010 = vmatpush2.xpose.msra.mxu0 0.0
    %2011 = vmatprep.subr.mxu0 0.0
    %2012 = vmatpush2.xpose.msra.mxu0 0.0
    %2013 = vmatprep.mubr.f32.mxu0 0.0
    %2014 = vmatmul.mubr.f32.gmra.mxu0 %v1944
    %v2015 = vpop.f32.mrf.mxu0
    %v2016 = vadd.f32 0.0, %v2015
    %v2017 = vpop.f32.mrf.mxu0
    %2018 = vdwg.mxu0
    %v2019 = vmul.f32 %v1484, 0.35355338
    %v2020 = vmul.f32 %v1560, 0.35355338
    %v2021 = vmul.f32 %v1636, 0.35355338
    %v2022 = vmul.f32 %v1712, 0.35355338
    %v2023 = vmul.f32 %v1788, 0.35355338
    %v2024 = vmul.f32 %v1864, 0.35355338
    %v2025 = vmul.f32 %v1940, 0.35355338
    %v2026 = vmul.f32 %v2016, 0.35355338
    %v2027 = vsel %vm1410, %v2019, -inf
    %2028 = vmax.xlane.f32.xlu0 %v2027
    %v2029 = vpop.xlane.xlu0 %2028
    %v2030 = vsel %vm1410, %v2020, -inf
    %2031 = vmax.xlane.f32.xlu0 %v2030
    %v2032 = vpop.xlane.xlu0 %2031
    %v2033 = vsel %vm1410, %v2021, -inf
    %2034 = vmax.xlane.f32.xlu0 %v2033
    %v2035 = vpop.xlane.xlu0 %2034
    %v2036 = vsel %vm1410, %v2022, -inf
    %2037 = vmax.xlane.f32.xlu0 %v2036
    %v2038 = vpop.xlane.xlu0 %2037
    %v2039 = vsel %vm1410, %v2023, -inf
    %2040 = vmax.xlane.f32.xlu0 %v2039
    %v2041 = vpop.xlane.xlu0 %2040
    %v2042 = vsel %vm1410, %v2024, -inf
    %2043 = vmax.xlane.f32.xlu0 %v2042
    %v2044 = vpop.xlane.xlu0 %2043
    %v2045 = vsel %vm1410, %v2025, -inf
    %2046 = vmax.xlane.f32.xlu0 %v2045
    %v2047 = vpop.xlane.xlu0 %2046
    %v2048 = vsel %vm1410, %v2026, -inf
    %2049 = vmax.xlane.f32.xlu0 %v2048
    %v2050 = vpop.xlane.xlu0 %2049
    %v2051 = vsub.f32 %v2019, %v2029
    %v2052 = vsub.f32 %v2020, %v2032
    %v2053 = vsub.f32 %v2021, %v2035
    %v2054 = vsub.f32 %v2022, %v2038
    %v2055 = vsub.f32 %v2023, %v2041
    %v2056 = vsub.f32 %v2024, %v2044
    %v2057 = vsub.f32 %v2025, %v2047
    %v2058 = vsub.f32 %v2026, %v2050
    %v2059 = vmul.f32 %v2051, 1.442695
    %v2060 = vpow.pop %v2059
    %v2061 = vmul.f32 %v2052, 1.442695
    %v2062 = vpow.pop %v2061
    %v2063 = vmul.f32 %v2053, 1.442695
    %v2064 = vpow.pop %v2063
    %v2065 = vmul.f32 %v2054, 1.442695
    %v2066 = vpow.pop %v2065
    %v2067 = vmul.f32 %v2055, 1.442695
    %v2068 = vpow.pop %v2067
    %v2069 = vmul.f32 %v2056, 1.442695
    %v2070 = vpow.pop %v2069
    %v2071 = vmul.f32 %v2057, 1.442695
    %v2072 = vpow.pop %v2071
    %v2073 = vmul.f32 %v2058, 1.442695
    %v2074 = vpow.pop %v2073
    %v2075 = vsel %vm1410, %v2060, 0.0
    %2076 = vadd.xlane.f32.xlu0 %v2075
    %v2077 = vpop.xlane.xlu0 %2076
    %v2078 = vsel %vm1410, %v2062, 0.0
    %2079 = vadd.xlane.f32.xlu0 %v2078
    %v2080 = vpop.xlane.xlu0 %2079
    %v2081 = vsel %vm1410, %v2064, 0.0
    %2082 = vadd.xlane.f32.xlu0 %v2081
    %v2083 = vpop.xlane.xlu0 %2082
    %v2084 = vsel %vm1410, %v2066, 0.0
    %2085 = vadd.xlane.f32.xlu0 %v2084
    %v2086 = vpop.xlane.xlu0 %2085
    %v2087 = vsel %vm1410, %v2068, 0.0
    %2088 = vadd.xlane.f32.xlu0 %v2087
    %v2089 = vpop.xlane.xlu0 %2088
    %v2090 = vsel %vm1410, %v2070, 0.0
    %2091 = vadd.xlane.f32.xlu0 %v2090
    %v2092 = vpop.xlane.xlu0 %2091
    %v2093 = vsel %vm1410, %v2072, 0.0
    %2094 = vadd.xlane.f32.xlu0 %v2093
    %v2095 = vpop.xlane.xlu0 %2094
    %v2096 = vsel %vm1410, %v2074, 0.0
    %2097 = vadd.xlane.f32.xlu0 %v2096
    %v2098 = vpop.xlane.xlu0 %2097
    %v2099 = vrcp.pop %v2077
    %v2100 = vrcp.pop %v2080
    %v2101 = vrcp.pop %v2083
    %v2102 = vrcp.pop %v2086
    %v2103 = vrcp.pop %v2089
    %v2104 = vrcp.pop %v2092
    %v2105 = vrcp.pop %v2095
    %v2106 = vrcp.pop %v2098
    %v2107 = vmul.f32 %v2060, %v2099
    %v2108 = vmul.f32 %v2062, %v2100
    %v2109 = vmul.f32 %v2064, %v2101
    %v2110 = vmul.f32 %v2066, %v2102
    %v2111 = vmul.f32 %v2068, %v2103
    %v2112 = vmul.f32 %v2070, %v2104
    %v2113 = vmul.f32 %v2072, %v2105
    %v2114 = vmul.f32 %v2074, %v2106
    %2115 = vrot.lane.b32.xlu0 %v875, 120
    %v2116 = vpop.permute.xlu0 %2115
    %v2119 = vsel %vm1410, %v2107, 0
    %2121 = vmatprep.subr.mxu0 0.0
    %2122 = vmatpush1.msra.mxu0 0.0
    %2123 = vmatprep.subr.mxu0 0.0
    %2124 = vmatpush1.msra.mxu0 0.0
    %2125 = vmatprep.subr.mxu0 0.0
    %2126 = vmatpush1.msra.mxu0 0.0
    %2127 = vmatprep.subr.mxu0 0.0
    %2128 = vmatpush1.msra.mxu0 0.0
    %2129 = vmatprep.subr.mxu0 0.0
    %2130 = vmatpush1.msra.mxu0 0.0
    %2131 = vmatprep.subr.mxu0 0.0
    %2132 = vmatpush1.msra.mxu0 0.0
    %2133 = vmatprep.subr.mxu0 0.0
    %2134 = vmatpush1.msra.mxu0 0.0
    %2135 = vmatprep.subr.mxu0 0.0
    %2136 = vmatpush1.msra.mxu0 0.0
    %2137 = vmatprep.subr.mxu0 0.0
    %2138 = vmatpush1.msra.mxu0 0.0
    %2139 = vmatprep.subr.mxu0 0.0
    %2140 = vmatpush1.msra.mxu0 0.0
    %2141 = vmatprep.subr.mxu0 0.0
    %2142 = vmatpush1.msra.mxu0 0.0
    %2143 = vmatprep.subr.mxu0 0.0
    %2144 = vmatpush1.msra.mxu0 0.0
    %2145 = vmatprep.subr.mxu0 0.0
    %2146 = vmatpush1.msra.mxu0 0.0
    %2147 = vmatprep.subr.mxu0 0.0
    %2148 = vmatpush1.msra.mxu0 0.0
    %2149 = vmatprep.subr.mxu0 0.0
    %2150 = vmatpush1.msra.mxu0 0.0
    %2151 = vmatprep.subr.mxu0 0.0
    %2152 = vmatpush1.msra.mxu0 %v2116
    %2153 = vmatprep.subr.mxu0 0.0
    %2154 = vmatpush2.msra.mxu0 0.0
    %2155 = vmatprep.subr.mxu0 0.0
    %2156 = vmatpush2.msra.mxu0 0.0
    %2157 = vmatprep.subr.mxu0 0.0
    %2158 = vmatpush2.msra.mxu0 0.0
    %2159 = vmatprep.subr.mxu0 0.0
    %2160 = vmatpush2.msra.mxu0 0.0
    %2161 = vmatprep.subr.mxu0 0.0
    %2162 = vmatpush2.msra.mxu0 0.0
    %2163 = vmatprep.subr.mxu0 0.0
    %2164 = vmatpush2.msra.mxu0 0.0
    %2165 = vmatprep.subr.mxu0 0.0
    %2166 = vmatpush2.msra.mxu0 0.0
    %2167 = vmatprep.subr.mxu0 0.0
    %2168 = vmatpush2.msra.mxu0 0.0
    %2169 = vmatprep.subr.mxu0 0.0
    %2170 = vmatpush2.msra.mxu0 0.0
    %2171 = vmatprep.subr.mxu0 0.0
    %2172 = vmatpush2.msra.mxu0 0.0
    %2173 = vmatprep.subr.mxu0 0.0
    %2174 = vmatpush2.msra.mxu0 0.0
    %2175 = vmatprep.subr.mxu0 0.0
    %2176 = vmatpush2.msra.mxu0 0.0
    %2177 = vmatprep.subr.mxu0 0.0
    %2178 = vmatpush2.msra.mxu0 0.0
    %2179 = vmatprep.subr.mxu0 0.0
    %2180 = vmatpush2.msra.mxu0 0.0
    %2181 = vmatprep.subr.mxu0 0.0
    %2182 = vmatpush2.msra.mxu0 0.0
    %2183 = vmatprep.subr.mxu0 0.0
    %2184 = vmatpush2.msra.mxu0 0.0
    %2185 = vmatprep.mubr.f32.mxu0 0.0
    %2186 = vmatmul.mubr.f32.gmra.mxu0 %v2119
    %v2187 = vpop.f32.mrf.mxu0
    %v2188 = vadd.f32 0.0, %v2187
    %v2189 = vpop.f32.mrf.mxu0
    %2190 = vdwg.mxu0
    %2191 = vrot.lane.b32.xlu0 %v951, 120
    %v2192 = vpop.permute.xlu0 %2191
    %v2195 = vsel %vm1410, %v2108, 0
    %2197 = vmatprep.subr.mxu0 0.0
    %2198 = vmatpush1.msra.mxu0 0.0
    %2199 = vmatprep.subr.mxu0 0.0
    %2200 = vmatpush1.msra.mxu0 0.0
    %2201 = vmatprep.subr.mxu0 0.0
    %2202 = vmatpush1.msra.mxu0 0.0
    %2203 = vmatprep.subr.mxu0 0.0
    %2204 = vmatpush1.msra.mxu0 0.0
    %2205 = vmatprep.subr.mxu0 0.0
    %2206 = vmatpush1.msra.mxu0 0.0
    %2207 = vmatprep.subr.mxu0 0.0
    %2208 = vmatpush1.msra.mxu0 0.0
    %2209 = vmatprep.subr.mxu0 0.0
    %2210 = vmatpush1.msra.mxu0 0.0
    %2211 = vmatprep.subr.mxu0 0.0
    %2212 = vmatpush1.msra.mxu0 0.0
    %2213 = vmatprep.subr.mxu0 0.0
    %2214 = vmatpush1.msra.mxu0 0.0
    %2215 = vmatprep.subr.mxu0 0.0
    %2216 = vmatpush1.msra.mxu0 0.0
    %2217 = vmatprep.subr.mxu0 0.0
    %2218 = vmatpush1.msra.mxu0 0.0
    %2219 = vmatprep.subr.mxu0 0.0
    %2220 = vmatpush1.msra.mxu0 0.0
    %2221 = vmatprep.subr.mxu0 0.0
    %2222 = vmatpush1.msra.mxu0 0.0
    %2223 = vmatprep.subr.mxu0 0.0
    %2224 = vmatpush1.msra.mxu0 0.0
    %2225 = vmatprep.subr.mxu0 0.0
    %2226 = vmatpush1.msra.mxu0 0.0
    %2227 = vmatprep.subr.mxu0 0.0
    %2228 = vmatpush1.msra.mxu0 %v2192
    %2229 = vmatprep.subr.mxu0 0.0
    %2230 = vmatpush2.msra.mxu0 0.0
    %2231 = vmatprep.subr.mxu0 0.0
    %2232 = vmatpush2.msra.mxu0 0.0
    %2233 = vmatprep.subr.mxu0 0.0
    %2234 = vmatpush2.msra.mxu0 0.0
    %2235 = vmatprep.subr.mxu0 0.0
    %2236 = vmatpush2.msra.mxu0 0.0
    %2237 = vmatprep.subr.mxu0 0.0
    %2238 = vmatpush2.msra.mxu0 0.0
    %2239 = vmatprep.subr.mxu0 0.0
    %2240 = vmatpush2.msra.mxu0 0.0
    %2241 = vmatprep.subr.mxu0 0.0
    %2242 = vmatpush2.msra.mxu0 0.0
    %2243 = vmatprep.subr.mxu0 0.0
    %2244 = vmatpush2.msra.mxu0 0.0
    %2245 = vmatprep.subr.mxu0 0.0
    %2246 = vmatpush2.msra.mxu0 0.0
    %2247 = vmatprep.subr.mxu0 0.0
    %2248 = vmatpush2.msra.mxu0 0.0
    %2249 = vmatprep.subr.mxu0 0.0
    %2250 = vmatpush2.msra.mxu0 0.0
    %2251 = vmatprep.subr.mxu0 0.0
    %2252 = vmatpush2.msra.mxu0 0.0
    %2253 = vmatprep.subr.mxu0 0.0
    %2254 = vmatpush2.msra.mxu0 0.0
    %2255 = vmatprep.subr.mxu0 0.0
    %2256 = vmatpush2.msra.mxu0 0.0
    %2257 = vmatprep.subr.mxu0 0.0
    %2258 = vmatpush2.msra.mxu0 0.0
    %2259 = vmatprep.subr.mxu0 0.0
    %2260 = vmatpush2.msra.mxu0 0.0
    %2261 = vmatprep.mubr.f32.mxu0 0.0
    %2262 = vmatmul.mubr.f32.gmra.mxu0 %v2195
    %v2263 = vpop.f32.mrf.mxu0
    %v2264 = vadd.f32 0.0, %v2263
    %v2265 = vpop.f32.mrf.mxu0
    %2266 = vdwg.mxu0
    %2267 = vrot.lane.b32.xlu0 %v1027, 120
    %v2268 = vpop.permute.xlu0 %2267
    %v2271 = vsel %vm1410, %v2109, 0
    %2273 = vmatprep.subr.mxu0 0.0
    %2274 = vmatpush1.msra.mxu0 0.0
    %2275 = vmatprep.subr.mxu0 0.0
    %2276 = vmatpush1.msra.mxu0 0.0
    %2277 = vmatprep.subr.mxu0 0.0
    %2278 = vmatpush1.msra.mxu0 0.0
    %2279 = vmatprep.subr.mxu0 0.0
    %2280 = vmatpush1.msra.mxu0 0.0
    %2281 = vmatprep.subr.mxu0 0.0
    %2282 = vmatpush1.msra.mxu0 0.0
    %2283 = vmatprep.subr.mxu0 0.0
    %2284 = vmatpush1.msra.mxu0 0.0
    %2285 = vmatprep.subr.mxu0 0.0
    %2286 = vmatpush1.msra.mxu0 0.0
    %2287 = vmatprep.subr.mxu0 0.0
    %2288 = vmatpush1.msra.mxu0 0.0
    %2289 = vmatprep.subr.mxu0 0.0
    %2290 = vmatpush1.msra.mxu0 0.0
    %2291 = vmatprep.subr.mxu0 0.0
    %2292 = vmatpush1.msra.mxu0 0.0
    %2293 = vmatprep.subr.mxu0 0.0
    %2294 = vmatpush1.msra.mxu0 0.0
    %2295 = vmatprep.subr.mxu0 0.0
    %2296 = vmatpush1.msra.mxu0 0.0
    %2297 = vmatprep.subr.mxu0 0.0
    %2298 = vmatpush1.msra.mxu0 0.0
    %2299 = vmatprep.subr.mxu0 0.0
    %2300 = vmatpush1.msra.mxu0 0.0
    %2301 = vmatprep.subr.mxu0 0.0
    %2302 = vmatpush1.msra.mxu0 0.0
    %2303 = vmatprep.subr.mxu0 0.0
    %2304 = vmatpush1.msra.mxu0 %v2268
    %2305 = vmatprep.subr.mxu0 0.0
    %2306 = vmatpush2.msra.mxu0 0.0
    %2307 = vmatprep.subr.mxu0 0.0
    %2308 = vmatpush2.msra.mxu0 0.0
    %2309 = vmatprep.subr.mxu0 0.0
    %2310 = vmatpush2.msra.mxu0 0.0
    %2311 = vmatprep.subr.mxu0 0.0
    %2312 = vmatpush2.msra.mxu0 0.0
    %2313 = vmatprep.subr.mxu0 0.0
    %2314 = vmatpush2.msra.mxu0 0.0
    %2315 = vmatprep.subr.mxu0 0.0
    %2316 = vmatpush2.msra.mxu0 0.0
    %2317 = vmatprep.subr.mxu0 0.0
    %2318 = vmatpush2.msra.mxu0 0.0
    %2319 = vmatprep.subr.mxu0 0.0
    %2320 = vmatpush2.msra.mxu0 0.0
    %2321 = vmatprep.subr.mxu0 0.0
    %2322 = vmatpush2.msra.mxu0 0.0
    %2323 = vmatprep.subr.mxu0 0.0
    %2324 = vmatpush2.msra.mxu0 0.0
    %2325 = vmatprep.subr.mxu0 0.0
    %2326 = vmatpush2.msra.mxu0 0.0
    %2327 = vmatprep.subr.mxu0 0.0
    %2328 = vmatpush2.msra.mxu0 0.0
    %2329 = vmatprep.subr.mxu0 0.0
    %2330 = vmatpush2.msra.mxu0 0.0
    %2331 = vmatprep.subr.mxu0 0.0
    %2332 = vmatpush2.msra.mxu0 0.0
    %2333 = vmatprep.subr.mxu0 0.0
    %2334 = vmatpush2.msra.mxu0 0.0
    %2335 = vmatprep.subr.mxu0 0.0
    %2336 = vmatpush2.msra.mxu0 0.0
    %2337 = vmatprep.mubr.f32.mxu0 0.0
    %2338 = vmatmul.mubr.f32.gmra.mxu0 %v2271
    %v2339 = vpop.f32.mrf.mxu0
    %v2340 = vadd.f32 0.0, %v2339
    %v2341 = vpop.f32.mrf.mxu0
    %2342 = vdwg.mxu0
    %2343 = vrot.lane.b32.xlu0 %v1103, 120
    %v2344 = vpop.permute.xlu0 %2343
    %v2347 = vsel %vm1410, %v2110, 0
    %2349 = vmatprep.subr.mxu0 0.0
    %2350 = vmatpush1.msra.mxu0 0.0
    %2351 = vmatprep.subr.mxu0 0.0
    %2352 = vmatpush1.msra.mxu0 0.0
    %2353 = vmatprep.subr.mxu0 0.0
    %2354 = vmatpush1.msra.mxu0 0.0
    %2355 = vmatprep.subr.mxu0 0.0
    %2356 = vmatpush1.msra.mxu0 0.0
    %2357 = vmatprep.subr.mxu0 0.0
    %2358 = vmatpush1.msra.mxu0 0.0
    %2359 = vmatprep.subr.mxu0 0.0
    %2360 = vmatpush1.msra.mxu0 0.0
    %2361 = vmatprep.subr.mxu0 0.0
    %2362 = vmatpush1.msra.mxu0 0.0
    %2363 = vmatprep.subr.mxu0 0.0
    %2364 = vmatpush1.msra.mxu0 0.0
    %2365 = vmatprep.subr.mxu0 0.0
    %2366 = vmatpush1.msra.mxu0 0.0
    %2367 = vmatprep.subr.mxu0 0.0
    %2368 = vmatpush1.msra.mxu0 0.0
    %2369 = vmatprep.subr.mxu0 0.0
    %2370 = vmatpush1.msra.mxu0 0.0
    %2371 = vmatprep.subr.mxu0 0.0
    %2372 = vmatpush1.msra.mxu0 0.0
    %2373 = vmatprep.subr.mxu0 0.0
    %2374 = vmatpush1.msra.mxu0 0.0
    %2375 = vmatprep.subr.mxu0 0.0
    %2376 = vmatpush1.msra.mxu0 0.0
    %2377 = vmatprep.subr.mxu0 0.0
    %2378 = vmatpush1.msra.mxu0 0.0
    %2379 = vmatprep.subr.mxu0 0.0
    %2380 = vmatpush1.msra.mxu0 %v2344
    %2381 = vmatprep.subr.mxu0 0.0
    %2382 = vmatpush2.msra.mxu0 0.0
    %2383 = vmatprep.subr.mxu0 0.0
    %2384 = vmatpush2.msra.mxu0 0.0
    %2385 = vmatprep.subr.mxu0 0.0
    %2386 = vmatpush2.msra.mxu0 0.0
    %2387 = vmatprep.subr.mxu0 0.0
    %2388 = vmatpush2.msra.mxu0 0.0
    %2389 = vmatprep.subr.mxu0 0.0
    %2390 = vmatpush2.msra.mxu0 0.0
    %2391 = vmatprep.subr.mxu0 0.0
    %2392 = vmatpush2.msra.mxu0 0.0
    %2393 = vmatprep.subr.mxu0 0.0
    %2394 = vmatpush2.msra.mxu0 0.0
    %2395 = vmatprep.subr.mxu0 0.0
    %2396 = vmatpush2.msra.mxu0 0.0
    %2397 = vmatprep.subr.mxu0 0.0
    %2398 = vmatpush2.msra.mxu0 0.0
    %2399 = vmatprep.subr.mxu0 0.0
    %2400 = vmatpush2.msra.mxu0 0.0
    %2401 = vmatprep.subr.mxu0 0.0
    %2402 = vmatpush2.msra.mxu0 0.0
    %2403 = vmatprep.subr.mxu0 0.0
    %2404 = vmatpush2.msra.mxu0 0.0
    %2405 = vmatprep.subr.mxu0 0.0
    %2406 = vmatpush2.msra.mxu0 0.0
    %2407 = vmatprep.subr.mxu0 0.0
    %2408 = vmatpush2.msra.mxu0 0.0
    %2409 = vmatprep.subr.mxu0 0.0
    %2410 = vmatpush2.msra.mxu0 0.0
    %2411 = vmatprep.subr.mxu0 0.0
    %2412 = vmatpush2.msra.mxu0 0.0
    %2413 = vmatprep.mubr.f32.mxu0 0.0
    %2414 = vmatmul.mubr.f32.gmra.mxu0 %v2347
    %v2415 = vpop.f32.mrf.mxu0
    %v2416 = vadd.f32 0.0, %v2415
    %v2417 = vpop.f32.mrf.mxu0
    %2418 = vdwg.mxu0
    %2419 = vrot.lane.b32.xlu0 %v1179, 120
    %v2420 = vpop.permute.xlu0 %2419
    %v2423 = vsel %vm1410, %v2111, 0
    %2425 = vmatprep.subr.mxu0 0.0
    %2426 = vmatpush1.msra.mxu0 0.0
    %2427 = vmatprep.subr.mxu0 0.0
    %2428 = vmatpush1.msra.mxu0 0.0
    %2429 = vmatprep.subr.mxu0 0.0
    %2430 = vmatpush1.msra.mxu0 0.0
    %2431 = vmatprep.subr.mxu0 0.0
    %2432 = vmatpush1.msra.mxu0 0.0
    %2433 = vmatprep.subr.mxu0 0.0
    %2434 = vmatpush1.msra.mxu0 0.0
    %2435 = vmatprep.subr.mxu0 0.0
    %2436 = vmatpush1.msra.mxu0 0.0
    %2437 = vmatprep.subr.mxu0 0.0
    %2438 = vmatpush1.msra.mxu0 0.0
    %2439 = vmatprep.subr.mxu0 0.0
    %2440 = vmatpush1.msra.mxu0 0.0
    %2441 = vmatprep.subr.mxu0 0.0
    %2442 = vmatpush1.msra.mxu0 0.0
    %2443 = vmatprep.subr.mxu0 0.0
    %2444 = vmatpush1.msra.mxu0 0.0
    %2445 = vmatprep.subr.mxu0 0.0
    %2446 = vmatpush1.msra.mxu0 0.0
    %2447 = vmatprep.subr.mxu0 0.0
    %2448 = vmatpush1.msra.mxu0 0.0
    %2449 = vmatprep.subr.mxu0 0.0
    %2450 = vmatpush1.msra.mxu0 0.0
    %2451 = vmatprep.subr.mxu0 0.0
    %2452 = vmatpush1.msra.mxu0 0.0
    %2453 = vmatprep.subr.mxu0 0.0
    %2454 = vmatpush1.msra.mxu0 0.0
    %2455 = vmatprep.subr.mxu0 0.0
    %2456 = vmatpush1.msra.mxu0 %v2420
    %2457 = vmatprep.subr.mxu0 0.0
    %2458 = vmatpush2.msra.mxu0 0.0
    %2459 = vmatprep.subr.mxu0 0.0
    %2460 = vmatpush2.msra.mxu0 0.0
    %2461 = vmatprep.subr.mxu0 0.0
    %2462 = vmatpush2.msra.mxu0 0.0
    %2463 = vmatprep.subr.mxu0 0.0
    %2464 = vmatpush2.msra.mxu0 0.0
    %2465 = vmatprep.subr.mxu0 0.0
    %2466 = vmatpush2.msra.mxu0 0.0
    %2467 = vmatprep.subr.mxu0 0.0
    %2468 = vmatpush2.msra.mxu0 0.0
    %2469 = vmatprep.subr.mxu0 0.0
    %2470 = vmatpush2.msra.mxu0 0.0
    %2471 = vmatprep.subr.mxu0 0.0
    %2472 = vmatpush2.msra.mxu0 0.0
    %2473 = vmatprep.subr.mxu0 0.0
    %2474 = vmatpush2.msra.mxu0 0.0
    %2475 = vmatprep.subr.mxu0 0.0
    %2476 = vmatpush2.msra.mxu0 0.0
    %2477 = vmatprep.subr.mxu0 0.0
    %2478 = vmatpush2.msra.mxu0 0.0
    %2479 = vmatprep.subr.mxu0 0.0
    %2480 = vmatpush2.msra.mxu0 0.0
    %2481 = vmatprep.subr.mxu0 0.0
    %2482 = vmatpush2.msra.mxu0 0.0
    %2483 = vmatprep.subr.mxu0 0.0
    %2484 = vmatpush2.msra.mxu0 0.0
    %2485 = vmatprep.subr.mxu0 0.0
    %2486 = vmatpush2.msra.mxu0 0.0
    %2487 = vmatprep.subr.mxu0 0.0
    %2488 = vmatpush2.msra.mxu0 0.0
    %2489 = vmatprep.mubr.f32.mxu0 0.0
    %2490 = vmatmul.mubr.f32.gmra.mxu0 %v2423
    %v2491 = vpop.f32.mrf.mxu0
    %v2492 = vadd.f32 0.0, %v2491
    %v2493 = vpop.f32.mrf.mxu0
    %2494 = vdwg.mxu0
    %2495 = vrot.lane.b32.xlu0 %v1255, 120
    %v2496 = vpop.permute.xlu0 %2495
    %v2499 = vsel %vm1410, %v2112, 0
    %2501 = vmatprep.subr.mxu0 0.0
    %2502 = vmatpush1.msra.mxu0 0.0
    %2503 = vmatprep.subr.mxu0 0.0
    %2504 = vmatpush1.msra.mxu0 0.0
    %2505 = vmatprep.subr.mxu0 0.0
    %2506 = vmatpush1.msra.mxu0 0.0
    %2507 = vmatprep.subr.mxu0 0.0
    %2508 = vmatpush1.msra.mxu0 0.0
    %2509 = vmatprep.subr.mxu0 0.0
    %2510 = vmatpush1.msra.mxu0 0.0
    %2511 = vmatprep.subr.mxu0 0.0
    %2512 = vmatpush1.msra.mxu0 0.0
    %2513 = vmatprep.subr.mxu0 0.0
    %2514 = vmatpush1.msra.mxu0 0.0
    %2515 = vmatprep.subr.mxu0 0.0
    %2516 = vmatpush1.msra.mxu0 0.0
    %2517 = vmatprep.subr.mxu0 0.0
    %2518 = vmatpush1.msra.mxu0 0.0
    %2519 = vmatprep.subr.mxu0 0.0
    %2520 = vmatpush1.msra.mxu0 0.0
    %2521 = vmatprep.subr.mxu0 0.0
    %2522 = vmatpush1.msra.mxu0 0.0
    %2523 = vmatprep.subr.mxu0 0.0
    %2524 = vmatpush1.msra.mxu0 0.0
    %2525 = vmatprep.subr.mxu0 0.0
    %2526 = vmatpush1.msra.mxu0 0.0
    %2527 = vmatprep.subr.mxu0 0.0
    %2528 = vmatpush1.msra.mxu0 0.0
    %2529 = vmatprep.subr.mxu0 0.0
    %2530 = vmatpush1.msra.mxu0 0.0
    %2531 = vmatprep.subr.mxu0 0.0
    %2532 = vmatpush1.msra.mxu0 %v2496
    %2533 = vmatprep.subr.mxu0 0.0
    %2534 = vmatpush2.msra.mxu0 0.0
    %2535 = vmatprep.subr.mxu0 0.0
    %2536 = vmatpush2.msra.mxu0 0.0
    %2537 = vmatprep.subr.mxu0 0.0
    %2538 = vmatpush2.msra.mxu0 0.0
    %2539 = vmatprep.subr.mxu0 0.0
    %2540 = vmatpush2.msra.mxu0 0.0
    %2541 = vmatprep.subr.mxu0 0.0
    %2542 = vmatpush2.msra.mxu0 0.0
    %2543 = vmatprep.subr.mxu0 0.0
    %2544 = vmatpush2.msra.mxu0 0.0
    %2545 = vmatprep.subr.mxu0 0.0
    %2546 = vmatpush2.msra.mxu0 0.0
    %2547 = vmatprep.subr.mxu0 0.0
    %2548 = vmatpush2.msra.mxu0 0.0
    %2549 = vmatprep.subr.mxu0 0.0
    %2550 = vmatpush2.msra.mxu0 0.0
    %2551 = vmatprep.subr.mxu0 0.0
    %2552 = vmatpush2.msra.mxu0 0.0
    %2553 = vmatprep.subr.mxu0 0.0
    %2554 = vmatpush2.msra.mxu0 0.0
    %2555 = vmatprep.subr.mxu0 0.0
    %2556 = vmatpush2.msra.mxu0 0.0
    %2557 = vmatprep.subr.mxu0 0.0
    %2558 = vmatpush2.msra.mxu0 0.0
    %2559 = vmatprep.subr.mxu0 0.0
    %2560 = vmatpush2.msra.mxu0 0.0
    %2561 = vmatprep.subr.mxu0 0.0
    %2562 = vmatpush2.msra.mxu0 0.0
    %2563 = vmatprep.subr.mxu0 0.0
    %2564 = vmatpush2.msra.mxu0 0.0
    %2565 = vmatprep.mubr.f32.mxu0 0.0
    %2566 = vmatmul.mubr.f32.gmra.mxu0 %v2499
    %v2567 = vpop.f32.mrf.mxu0
    %v2568 = vadd.f32 0.0, %v2567
    %v2569 = vpop.f32.mrf.mxu0
    %2570 = vdwg.mxu0
    %2571 = vrot.lane.b32.xlu0 %v1331, 120
    %v2572 = vpop.permute.xlu0 %2571
    %v2575 = vsel %vm1410, %v2113, 0
    %2577 = vmatprep.subr.mxu0 0.0
    %2578 = vmatpush1.msra.mxu0 0.0
    %2579 = vmatprep.subr.mxu0 0.0
    %2580 = vmatpush1.msra.mxu0 0.0
    %2581 = vmatprep.subr.mxu0 0.0
    %2582 = vmatpush1.msra.mxu0 0.0
    %2583 = vmatprep.subr.mxu0 0.0
    %2584 = vmatpush1.msra.mxu0 0.0
    %2585 = vmatprep.subr.mxu0 0.0
    %2586 = vmatpush1.msra.mxu0 0.0
    %2587 = vmatprep.subr.mxu0 0.0
    %2588 = vmatpush1.msra.mxu0 0.0
    %2589 = vmatprep.subr.mxu0 0.0
    %2590 = vmatpush1.msra.mxu0 0.0
    %2591 = vmatprep.subr.mxu0 0.0
    %2592 = vmatpush1.msra.mxu0 0.0
    %2593 = vmatprep.subr.mxu0 0.0
    %2594 = vmatpush1.msra.mxu0 0.0
    %2595 = vmatprep.subr.mxu0 0.0
    %2596 = vmatpush1.msra.mxu0 0.0
    %2597 = vmatprep.subr.mxu0 0.0
    %2598 = vmatpush1.msra.mxu0 0.0
    %2599 = vmatprep.subr.mxu0 0.0
    %2600 = vmatpush1.msra.mxu0 0.0
    %2601 = vmatprep.subr.mxu0 0.0
    %2602 = vmatpush1.msra.mxu0 0.0
    %2603 = vmatprep.subr.mxu0 0.0
    %2604 = vmatpush1.msra.mxu0 0.0
    %2605 = vmatprep.subr.mxu0 0.0
    %2606 = vmatpush1.msra.mxu0 0.0
    %2607 = vmatprep.subr.mxu0 0.0
    %2608 = vmatpush1.msra.mxu0 %v2572
    %2609 = vmatprep.subr.mxu0 0.0
    %2610 = vmatpush2.msra.mxu0 0.0
    %2611 = vmatprep.subr.mxu0 0.0
    %2612 = vmatpush2.msra.mxu0 0.0
    %2613 = vmatprep.subr.mxu0 0.0
    %2614 = vmatpush2.msra.mxu0 0.0
    %2615 = vmatprep.subr.mxu0 0.0
    %2616 = vmatpush2.msra.mxu0 0.0
    %2617 = vmatprep.subr.mxu0 0.0
    %2618 = vmatpush2.msra.mxu0 0.0
    %2619 = vmatprep.subr.mxu0 0.0
    %2620 = vmatpush2.msra.mxu0 0.0
    %2621 = vmatprep.subr.mxu0 0.0
    %2622 = vmatpush2.msra.mxu0 0.0
    %2623 = vmatprep.subr.mxu0 0.0
    %2624 = vmatpush2.msra.mxu0 0.0
    %2625 = vmatprep.subr.mxu0 0.0
    %2626 = vmatpush2.msra.mxu0 0.0
    %2627 = vmatprep.subr.mxu0 0.0
    %2628 = vmatpush2.msra.mxu0 0.0
    %2629 = vmatprep.subr.mxu0 0.0
    %2630 = vmatpush2.msra.mxu0 0.0
    %2631 = vmatprep.subr.mxu0 0.0
    %2632 = vmatpush2.msra.mxu0 0.0
    %2633 = vmatprep.subr.mxu0 0.0
    %2634 = vmatpush2.msra.mxu0 0.0
    %2635 = vmatprep.subr.mxu0 0.0
    %2636 = vmatpush2.msra.mxu0 0.0
    %2637 = vmatprep.subr.mxu0 0.0
    %2638 = vmatpush2.msra.mxu0 0.0
    %2639 = vmatprep.subr.mxu0 0.0
    %2640 = vmatpush2.msra.mxu0 0.0
    %2641 = vmatprep.mubr.f32.mxu0 0.0
    %2642 = vmatmul.mubr.f32.gmra.mxu0 %v2575
    %v2643 = vpop.f32.mrf.mxu0
    %v2644 = vadd.f32 0.0, %v2643
    %v2645 = vpop.f32.mrf.mxu0
    %2646 = vdwg.mxu0
    %2647 = vrot.lane.b32.xlu0 %v1407, 120
    %v2648 = vpop.permute.xlu0 %2647
    %v2651 = vsel %vm1410, %v2114, 0
    %2653 = vmatprep.subr.mxu0 0.0
    %2654 = vmatpush1.msra.mxu0 0.0
    %2655 = vmatprep.subr.mxu0 0.0
    %2656 = vmatpush1.msra.mxu0 0.0
    %2657 = vmatprep.subr.mxu0 0.0
    %2658 = vmatpush1.msra.mxu0 0.0
    %2659 = vmatprep.subr.mxu0 0.0
    %2660 = vmatpush1.msra.mxu0 0.0
    %2661 = vmatprep.subr.mxu0 0.0
    %2662 = vmatpush1.msra.mxu0 0.0
    %2663 = vmatprep.subr.mxu0 0.0
    %2664 = vmatpush1.msra.mxu0 0.0
    %2665 = vmatprep.subr.mxu0 0.0
    %2666 = vmatpush1.msra.mxu0 0.0
    %2667 = vmatprep.subr.mxu0 0.0
    %2668 = vmatpush1.msra.mxu0 0.0
    %2669 = vmatprep.subr.mxu0 0.0
    %2670 = vmatpush1.msra.mxu0 0.0
    %2671 = vmatprep.subr.mxu0 0.0
    %2672 = vmatpush1.msra.mxu0 0.0
    %2673 = vmatprep.subr.mxu0 0.0
    %2674 = vmatpush1.msra.mxu0 0.0
    %2675 = vmatprep.subr.mxu0 0.0
    %2676 = vmatpush1.msra.mxu0 0.0
    %2677 = vmatprep.subr.mxu0 0.0
    %2678 = vmatpush1.msra.mxu0 0.0
    %2679 = vmatprep.subr.mxu0 0.0
    %2680 = vmatpush1.msra.mxu0 0.0
    %2681 = vmatprep.subr.mxu0 0.0
    %2682 = vmatpush1.msra.mxu0 0.0
    %2683 = vmatprep.subr.mxu0 0.0
    %2684 = vmatpush1.msra.mxu0 %v2648
    %2685 = vmatprep.subr.mxu0 0.0
    %2686 = vmatpush2.msra.mxu0 0.0
    %2687 = vmatprep.subr.mxu0 0.0
    %2688 = vmatpush2.msra.mxu0 0.0
    %2689 = vmatprep.subr.mxu0 0.0
    %2690 = vmatpush2.msra.mxu0 0.0
    %2691 = vmatprep.subr.mxu0 0.0
    %2692 = vmatpush2.msra.mxu0 0.0
    %2693 = vmatprep.subr.mxu0 0.0
    %2694 = vmatpush2.msra.mxu0 0.0
    %2695 = vmatprep.subr.mxu0 0.0
    %2696 = vmatpush2.msra.mxu0 0.0
    %2697 = vmatprep.subr.mxu0 0.0
    %2698 = vmatpush2.msra.mxu0 0.0
    %2699 = vmatprep.subr.mxu0 0.0
    %2700 = vmatpush2.msra.mxu0 0.0
    %2701 = vmatprep.subr.mxu0 0.0
    %2702 = vmatpush2.msra.mxu0 0.0
    %2703 = vmatprep.subr.mxu0 0.0
    %2704 = vmatpush2.msra.mxu0 0.0
    %2705 = vmatprep.subr.mxu0 0.0
    %2706 = vmatpush2.msra.mxu0 0.0
    %2707 = vmatprep.subr.mxu0 0.0
    %2708 = vmatpush2.msra.mxu0 0.0
    %2709 = vmatprep.subr.mxu0 0.0
    %2710 = vmatpush2.msra.mxu0 0.0
    %2711 = vmatprep.subr.mxu0 0.0
    %2712 = vmatpush2.msra.mxu0 0.0
    %2713 = vmatprep.subr.mxu0 0.0
    %2714 = vmatpush2.msra.mxu0 0.0
    %2715 = vmatprep.subr.mxu0 0.0
    %2716 = vmatpush2.msra.mxu0 0.0
    %2717 = vmatprep.mubr.f32.mxu0 0.0
    %2718 = vmatmul.mubr.f32.gmra.mxu0 %v2651
    %v2719 = vpop.f32.mrf.mxu0
    %v2720 = vadd.f32 0.0, %v2719
    %v2721 = vpop.f32.mrf.mxu0
    %2722 = vdwg.mxu0
    %v2723 = vld [vmem:[%s4] sm:$0xff]
    %v2724 = vld [vmem:[%s4 + $0x8] sm:$0xff]
    %v2725 = vld [vmem:[%s4 + $0x10] sm:$0xff]
    %v2726 = vld [vmem:[%s4 + $0x18] sm:$0xff]
    %v2727 = vld [vmem:[%s4 + $0x20] sm:$0xff]
    %v2728 = vld [vmem:[%s4 + $0x28] sm:$0xff]
    %v2729 = vld [vmem:[%s4 + $0x30] sm:$0xff]
    %v2730 = vld [vmem:[%s4 + $0x38] sm:$0xff]
    %v2732 = vsel %vm1410, %v2188, 0
    %2734 = vmatprep.subr.mxu0 0.0
    %2735 = vmatpush1.msra.mxu0 0.0
    %2736 = vmatprep.subr.mxu0 0.0
    %2737 = vmatpush1.msra.mxu0 0.0
    %2738 = vmatprep.subr.mxu0 0.0
    %2739 = vmatpush1.msra.mxu0 0.0
    %2740 = vmatprep.subr.mxu0 0.0
    %2741 = vmatpush1.msra.mxu0 0.0
    %2742 = vmatprep.subr.mxu0 0.0
    %2743 = vmatpush1.msra.mxu0 0.0
    %2744 = vmatprep.subr.mxu0 0.0
    %2745 = vmatpush1.msra.mxu0 0.0
    %2746 = vmatprep.subr.mxu0 0.0
    %2747 = vmatpush1.msra.mxu0 0.0
    %2748 = vmatprep.subr.mxu0 0.0
    %2749 = vmatpush1.msra.mxu0 0.0
    %2750 = vmatprep.subr.mxu0 0.0
    %2751 = vmatpush1.msra.mxu0 0.0
    %2752 = vmatprep.subr.mxu0 0.0
    %2753 = vmatpush1.msra.mxu0 0.0
    %2754 = vmatprep.subr.mxu0 0.0
    %2755 = vmatpush1.msra.mxu0 0.0
    %2756 = vmatprep.subr.mxu0 0.0
    %2757 = vmatpush1.msra.mxu0 0.0
    %2758 = vmatprep.subr.mxu0 0.0
    %2759 = vmatpush1.msra.mxu0 0.0
    %2760 = vmatprep.subr.mxu0 0.0
    %2761 = vmatpush1.msra.mxu0 0.0
    %2762 = vmatprep.subr.mxu0 0.0
    %2763 = vmatpush1.msra.mxu0 0.0
    %2764 = vmatprep.subr.mxu0 0.0
    %2765 = vmatpush1.msra.mxu0 %v2723
    %2766 = vmatprep.subr.mxu0 0.0
    %2767 = vmatpush2.msra.mxu0 0.0
    %2768 = vmatprep.subr.mxu0 0.0
    %2769 = vmatpush2.msra.mxu0 0.0
    %2770 = vmatprep.subr.mxu0 0.0
    %2771 = vmatpush2.msra.mxu0 0.0
    %2772 = vmatprep.subr.mxu0 0.0
    %2773 = vmatpush2.msra.mxu0 0.0
    %2774 = vmatprep.subr.mxu0 0.0
    %2775 = vmatpush2.msra.mxu0 0.0
    %2776 = vmatprep.subr.mxu0 0.0
    %2777 = vmatpush2.msra.mxu0 0.0
    %2778 = vmatprep.subr.mxu0 0.0
    %2779 = vmatpush2.msra.mxu0 0.0
    %2780 = vmatprep.subr.mxu0 0.0
    %2781 = vmatpush2.msra.mxu0 0.0
    %2782 = vmatprep.subr.mxu0 0.0
    %2783 = vmatpush2.msra.mxu0 0.0
    %2784 = vmatprep.subr.mxu0 0.0
    %2785 = vmatpush2.msra.mxu0 0.0
    %2786 = vmatprep.subr.mxu0 0.0
    %2787 = vmatpush2.msra.mxu0 0.0
    %2788 = vmatprep.subr.mxu0 0.0
    %2789 = vmatpush2.msra.mxu0 0.0
    %2790 = vmatprep.subr.mxu0 0.0
    %2791 = vmatpush2.msra.mxu0 0.0
    %2792 = vmatprep.subr.mxu0 0.0
    %2793 = vmatpush2.msra.mxu0 0.0
    %2794 = vmatprep.subr.mxu0 0.0
    %2795 = vmatpush2.msra.mxu0 0.0
    %2796 = vmatprep.subr.mxu0 0.0
    %2797 = vmatpush2.msra.mxu0 0.0
    %2798 = vmatprep.mubr.f32.mxu0 0.0
    %2799 = vmatmul.mubr.f32.gmra.mxu0 %v2732
    %v2800 = vpop.f32.mrf.mxu0
    %v2801 = vadd.f32 0.0, %v2800
    %v2802 = vpop.f32.mrf.mxu0
    %2803 = vdwg.mxu0
    %v2805 = vsel %vm1410, %v2264, 0
    %2807 = vmatprep.subr.mxu0 0.0
    %2808 = vmatpush1.msra.mxu0 0.0
    %2809 = vmatprep.subr.mxu0 0.0
    %2810 = vmatpush1.msra.mxu0 0.0
    %2811 = vmatprep.subr.mxu0 0.0
    %2812 = vmatpush1.msra.mxu0 0.0
    %2813 = vmatprep.subr.mxu0 0.0
    %2814 = vmatpush1.msra.mxu0 0.0
    %2815 = vmatprep.subr.mxu0 0.0
    %2816 = vmatpush1.msra.mxu0 0.0
    %2817 = vmatprep.subr.mxu0 0.0
    %2818 = vmatpush1.msra.mxu0 0.0
    %2819 = vmatprep.subr.mxu0 0.0
    %2820 = vmatpush1.msra.mxu0 0.0
    %2821 = vmatprep.subr.mxu0 0.0
    %2822 = vmatpush1.msra.mxu0 0.0
    %2823 = vmatprep.subr.mxu0 0.0
    %2824 = vmatpush1.msra.mxu0 0.0
    %2825 = vmatprep.subr.mxu0 0.0
    %2826 = vmatpush1.msra.mxu0 0.0
    %2827 = vmatprep.subr.mxu0 0.0
    %2828 = vmatpush1.msra.mxu0 0.0
    %2829 = vmatprep.subr.mxu0 0.0
    %2830 = vmatpush1.msra.mxu0 0.0
    %2831 = vmatprep.subr.mxu0 0.0
    %2832 = vmatpush1.msra.mxu0 0.0
    %2833 = vmatprep.subr.mxu0 0.0
    %2834 = vmatpush1.msra.mxu0 0.0
    %2835 = vmatprep.subr.mxu0 0.0
    %2836 = vmatpush1.msra.mxu0 0.0
    %2837 = vmatprep.subr.mxu0 0.0
    %2838 = vmatpush1.msra.mxu0 %v2724
    %2839 = vmatprep.subr.mxu0 0.0
    %2840 = vmatpush2.msra.mxu0 0.0
    %2841 = vmatprep.subr.mxu0 0.0
    %2842 = vmatpush2.msra.mxu0 0.0
    %2843 = vmatprep.subr.mxu0 0.0
    %2844 = vmatpush2.msra.mxu0 0.0
    %2845 = vmatprep.subr.mxu0 0.0
    %2846 = vmatpush2.msra.mxu0 0.0
    %2847 = vmatprep.subr.mxu0 0.0
    %2848 = vmatpush2.msra.mxu0 0.0
    %2849 = vmatprep.subr.mxu0 0.0
    %2850 = vmatpush2.msra.mxu0 0.0
    %2851 = vmatprep.subr.mxu0 0.0
    %2852 = vmatpush2.msra.mxu0 0.0
    %2853 = vmatprep.subr.mxu0 0.0
    %2854 = vmatpush2.msra.mxu0 0.0
    %2855 = vmatprep.subr.mxu0 0.0
    %2856 = vmatpush2.msra.mxu0 0.0
    %2857 = vmatprep.subr.mxu0 0.0
    %2858 = vmatpush2.msra.mxu0 0.0
    %2859 = vmatprep.subr.mxu0 0.0
    %2860 = vmatpush2.msra.mxu0 0.0
    %2861 = vmatprep.subr.mxu0 0.0
    %2862 = vmatpush2.msra.mxu0 0.0
    %2863 = vmatprep.subr.mxu0 0.0
    %2864 = vmatpush2.msra.mxu0 0.0
    %2865 = vmatprep.subr.mxu0 0.0
    %2866 = vmatpush2.msra.mxu0 0.0
    %2867 = vmatprep.subr.mxu0 0.0
    %2868 = vmatpush2.msra.mxu0 0.0
    %2869 = vmatprep.subr.mxu0 0.0
    %2870 = vmatpush2.msra.mxu0 0.0
    %2871 = vmatprep.mubr.f32.mxu0 0.0
    %2872 = vmatmul.mubr.f32.gmra.mxu0 %v2805
    %v2873 = vpop.f32.mrf.mxu0
    %v2874 = vadd.f32 0.0, %v2873
    %v2875 = vpop.f32.mrf.mxu0
    %2876 = vdwg.mxu0
    %v2878 = vsel %vm1410, %v2340, 0
    %2880 = vmatprep.subr.mxu0 0.0
    %2881 = vmatpush1.msra.mxu0 0.0
    %2882 = vmatprep.subr.mxu0 0.0
    %2883 = vmatpush1.msra.mxu0 0.0
    %2884 = vmatprep.subr.mxu0 0.0
    %2885 = vmatpush1.msra.mxu0 0.0
    %2886 = vmatprep.subr.mxu0 0.0
    %2887 = vmatpush1.msra.mxu0 0.0
    %2888 = vmatprep.subr.mxu0 0.0
    %2889 = vmatpush1.msra.mxu0 0.0
    %2890 = vmatprep.subr.mxu0 0.0
    %2891 = vmatpush1.msra.mxu0 0.0
    %2892 = vmatprep.subr.mxu0 0.0
    %2893 = vmatpush1.msra.mxu0 0.0
    %2894 = vmatprep.subr.mxu0 0.0
    %2895 = vmatpush1.msra.mxu0 0.0
    %2896 = vmatprep.subr.mxu0 0.0
    %2897 = vmatpush1.msra.mxu0 0.0
    %2898 = vmatprep.subr.mxu0 0.0
    %2899 = vmatpush1.msra.mxu0 0.0
    %2900 = vmatprep.subr.mxu0 0.0
    %2901 = vmatpush1.msra.mxu0 0.0
    %2902 = vmatprep.subr.mxu0 0.0
    %2903 = vmatpush1.msra.mxu0 0.0
    %2904 = vmatprep.subr.mxu0 0.0
    %2905 = vmatpush1.msra.mxu0 0.0
    %2906 = vmatprep.subr.mxu0 0.0
    %2907 = vmatpush1.msra.mxu0 0.0
    %2908 = vmatprep.subr.mxu0 0.0
    %2909 = vmatpush1.msra.mxu0 0.0
    %2910 = vmatprep.subr.mxu0 0.0
    %2911 = vmatpush1.msra.mxu0 %v2725
    %2912 = vmatprep.subr.mxu0 0.0
    %2913 = vmatpush2.msra.mxu0 0.0
    %2914 = vmatprep.subr.mxu0 0.0
    %2915 = vmatpush2.msra.mxu0 0.0
    %2916 = vmatprep.subr.mxu0 0.0
    %2917 = vmatpush2.msra.mxu0 0.0
    %2918 = vmatprep.subr.mxu0 0.0
    %2919 = vmatpush2.msra.mxu0 0.0
    %2920 = vmatprep.subr.mxu0 0.0
    %2921 = vmatpush2.msra.mxu0 0.0
    %2922 = vmatprep.subr.mxu0 0.0
    %2923 = vmatpush2.msra.mxu0 0.0
    %2924 = vmatprep.subr.mxu0 0.0
    %2925 = vmatpush2.msra.mxu0 0.0
    %2926 = vmatprep.subr.mxu0 0.0
    %2927 = vmatpush2.msra.mxu0 0.0
    %2928 = vmatprep.subr.mxu0 0.0
    %2929 = vmatpush2.msra.mxu0 0.0
    %2930 = vmatprep.subr.mxu0 0.0
    %2931 = vmatpush2.msra.mxu0 0.0
    %2932 = vmatprep.subr.mxu0 0.0
    %2933 = vmatpush2.msra.mxu0 0.0
    %2934 = vmatprep.subr.mxu0 0.0
    %2935 = vmatpush2.msra.mxu0 0.0
    %2936 = vmatprep.subr.mxu0 0.0
    %2937 = vmatpush2.msra.mxu0 0.0
    %2938 = vmatprep.subr.mxu0 0.0
    %2939 = vmatpush2.msra.mxu0 0.0
    %2940 = vmatprep.subr.mxu0 0.0
    %2941 = vmatpush2.msra.mxu0 0.0
    %2942 = vmatprep.subr.mxu0 0.0
    %2943 = vmatpush2.msra.mxu0 0.0
    %2944 = vmatprep.mubr.f32.mxu0 0.0
    %2945 = vmatmul.mubr.f32.gmra.mxu0 %v2878
    %v2946 = vpop.f32.mrf.mxu0
    %v2947 = vadd.f32 0.0, %v2946
    %v2948 = vpop.f32.mrf.mxu0
    %2949 = vdwg.mxu0
    %v2951 = vsel %vm1410, %v2416, 0
    %2953 = vmatprep.subr.mxu0 0.0
    %2954 = vmatpush1.msra.mxu0 0.0
    %2955 = vmatprep.subr.mxu0 0.0
    %2956 = vmatpush1.msra.mxu0 0.0
    %2957 = vmatprep.subr.mxu0 0.0
    %2958 = vmatpush1.msra.mxu0 0.0
    %2959 = vmatprep.subr.mxu0 0.0
    %2960 = vmatpush1.msra.mxu0 0.0
    %2961 = vmatprep.subr.mxu0 0.0
    %2962 = vmatpush1.msra.mxu0 0.0
    %2963 = vmatprep.subr.mxu0 0.0
    %2964 = vmatpush1.msra.mxu0 0.0
    %2965 = vmatprep.subr.mxu0 0.0
    %2966 = vmatpush1.msra.mxu0 0.0
    %2967 = vmatprep.subr.mxu0 0.0
    %2968 = vmatpush1.msra.mxu0 0.0
    %2969 = vmatprep.subr.mxu0 0.0
    %2970 = vmatpush1.msra.mxu0 0.0
    %2971 = vmatprep.subr.mxu0 0.0
    %2972 = vmatpush1.msra.mxu0 0.0
    %2973 = vmatprep.subr.mxu0 0.0
    %2974 = vmatpush1.msra.mxu0 0.0
    %2975 = vmatprep.subr.mxu0 0.0
    %2976 = vmatpush1.msra.mxu0 0.0
    %2977 = vmatprep.subr.mxu0 0.0
    %2978 = vmatpush1.msra.mxu0 0.0
    %2979 = vmatprep.subr.mxu0 0.0
    %2980 = vmatpush1.msra.mxu0 0.0
    %2981 = vmatprep.subr.mxu0 0.0
    %2982 = vmatpush1.msra.mxu0 0.0
    %2983 = vmatprep.subr.mxu0 0.0
    %2984 = vmatpush1.msra.mxu0 %v2726
    %2985 = vmatprep.subr.mxu0 0.0
    %2986 = vmatpush2.msra.mxu0 0.0
    %2987 = vmatprep.subr.mxu0 0.0
    %2988 = vmatpush2.msra.mxu0 0.0
    %2989 = vmatprep.subr.mxu0 0.0
    %2990 = vmatpush2.msra.mxu0 0.0
    %2991 = vmatprep.subr.mxu0 0.0
    %2992 = vmatpush2.msra.mxu0 0.0
    %2993 = vmatprep.subr.mxu0 0.0
    %2994 = vmatpush2.msra.mxu0 0.0
    %2995 = vmatprep.subr.mxu0 0.0
    %2996 = vmatpush2.msra.mxu0 0.0
    %2997 = vmatprep.subr.mxu0 0.0
    %2998 = vmatpush2.msra.mxu0 0.0
    %2999 = vmatprep.subr.mxu0 0.0
    %3000 = vmatpush2.msra.mxu0 0.0
    %3001 = vmatprep.subr.mxu0 0.0
    %3002 = vmatpush2.msra.mxu0 0.0
    %3003 = vmatprep.subr.mxu0 0.0
    %3004 = vmatpush2.msra.mxu0 0.0
    %3005 = vmatprep.subr.mxu0 0.0
    %3006 = vmatpush2.msra.mxu0 0.0
    %3007 = vmatprep.subr.mxu0 0.0
    %3008 = vmatpush2.msra.mxu0 0.0
    %3009 = vmatprep.subr.mxu0 0.0
    %3010 = vmatpush2.msra.mxu0 0.0
    %3011 = vmatprep.subr.mxu0 0.0
    %3012 = vmatpush2.msra.mxu0 0.0
    %3013 = vmatprep.subr.mxu0 0.0
    %3014 = vmatpush2.msra.mxu0 0.0
    %3015 = vmatprep.subr.mxu0 0.0
    %3016 = vmatpush2.msra.mxu0 0.0
    %3017 = vmatprep.mubr.f32.mxu0 0.0
    %3018 = vmatmul.mubr.f32.gmra.mxu0 %v2951
    %v3019 = vpop.f32.mrf.mxu0
    %v3020 = vadd.f32 0.0, %v3019
    %v3021 = vpop.f32.mrf.mxu0
    %3022 = vdwg.mxu0
    %v3024 = vsel %vm1410, %v2492, 0
    %3026 = vmatprep.subr.mxu0 0.0
    %3027 = vmatpush1.msra.mxu0 0.0
    %3028 = vmatprep.subr.mxu0 0.0
    %3029 = vmatpush1.msra.mxu0 0.0
    %3030 = vmatprep.subr.mxu0 0.0
    %3031 = vmatpush1.msra.mxu0 0.0
    %3032 = vmatprep.subr.mxu0 0.0
    %3033 = vmatpush1.msra.mxu0 0.0
    %3034 = vmatprep.subr.mxu0 0.0
    %3035 = vmatpush1.msra.mxu0 0.0
    %3036 = vmatprep.subr.mxu0 0.0
    %3037 = vmatpush1.msra.mxu0 0.0
    %3038 = vmatprep.subr.mxu0 0.0
    %3039 = vmatpush1.msra.mxu0 0.0
    %3040 = vmatprep.subr.mxu0 0.0
    %3041 = vmatpush1.msra.mxu0 0.0
    %3042 = vmatprep.subr.mxu0 0.0
    %3043 = vmatpush1.msra.mxu0 0.0
    %3044 = vmatprep.subr.mxu0 0.0
    %3045 = vmatpush1.msra.mxu0 0.0
    %3046 = vmatprep.subr.mxu0 0.0
    %3047 = vmatpush1.msra.mxu0 0.0
    %3048 = vmatprep.subr.mxu0 0.0
    %3049 = vmatpush1.msra.mxu0 0.0
    %3050 = vmatprep.subr.mxu0 0.0
    %3051 = vmatpush1.msra.mxu0 0.0
    %3052 = vmatprep.subr.mxu0 0.0
    %3053 = vmatpush1.msra.mxu0 0.0
    %3054 = vmatprep.subr.mxu0 0.0
    %3055 = vmatpush1.msra.mxu0 0.0
    %3056 = vmatprep.subr.mxu0 0.0
    %3057 = vmatpush1.msra.mxu0 %v2727
    %3058 = vmatprep.subr.mxu0 0.0
    %3059 = vmatpush2.msra.mxu0 0.0
    %3060 = vmatprep.subr.mxu0 0.0
    %3061 = vmatpush2.msra.mxu0 0.0
    %3062 = vmatprep.subr.mxu0 0.0
    %3063 = vmatpush2.msra.mxu0 0.0
    %3064 = vmatprep.subr.mxu0 0.0
    %3065 = vmatpush2.msra.mxu0 0.0
    %3066 = vmatprep.subr.mxu0 0.0
    %3067 = vmatpush2.msra.mxu0 0.0
    %3068 = vmatprep.subr.mxu0 0.0
    %3069 = vmatpush2.msra.mxu0 0.0
    %3070 = vmatprep.subr.mxu0 0.0
    %3071 = vmatpush2.msra.mxu0 0.0
    %3072 = vmatprep.subr.mxu0 0.0
    %3073 = vmatpush2.msra.mxu0 0.0
    %3074 = vmatprep.subr.mxu0 0.0
    %3075 = vmatpush2.msra.mxu0 0.0
    %3076 = vmatprep.subr.mxu0 0.0
    %3077 = vmatpush2.msra.mxu0 0.0
    %3078 = vmatprep.subr.mxu0 0.0
    %3079 = vmatpush2.msra.mxu0 0.0
    %3080 = vmatprep.subr.mxu0 0.0
    %3081 = vmatpush2.msra.mxu0 0.0
    %3082 = vmatprep.subr.mxu0 0.0
    %3083 = vmatpush2.msra.mxu0 0.0
    %3084 = vmatprep.subr.mxu0 0.0
    %3085 = vmatpush2.msra.mxu0 0.0
    %3086 = vmatprep.subr.mxu0 0.0
    %3087 = vmatpush2.msra.mxu0 0.0
    %3088 = vmatprep.subr.mxu0 0.0
    %3089 = vmatpush2.msra.mxu0 0.0
    %3090 = vmatprep.mubr.f32.mxu0 0.0
    %3091 = vmatmul.mubr.f32.gmra.mxu0 %v3024
    %v3092 = vpop.f32.mrf.mxu0
    %v3093 = vadd.f32 0.0, %v3092
    %v3094 = vpop.f32.mrf.mxu0
    %3095 = vdwg.mxu0
    %v3097 = vsel %vm1410, %v2568, 0
    %3099 = vmatprep.subr.mxu0 0.0
    %3100 = vmatpush1.msra.mxu0 0.0
    %3101 = vmatprep.subr.mxu0 0.0
    %3102 = vmatpush1.msra.mxu0 0.0
    %3103 = vmatprep.subr.mxu0 0.0
    %3104 = vmatpush1.msra.mxu0 0.0
    %3105 = vmatprep.subr.mxu0 0.0
    %3106 = vmatpush1.msra.mxu0 0.0
    %3107 = vmatprep.subr.mxu0 0.0
    %3108 = vmatpush1.msra.mxu0 0.0
    %3109 = vmatprep.subr.mxu0 0.0
    %3110 = vmatpush1.msra.mxu0 0.0
    %3111 = vmatprep.subr.mxu0 0.0
    %3112 = vmatpush1.msra.mxu0 0.0
    %3113 = vmatprep.subr.mxu0 0.0
    %3114 = vmatpush1.msra.mxu0 0.0
    %3115 = vmatprep.subr.mxu0 0.0
    %3116 = vmatpush1.msra.mxu0 0.0
    %3117 = vmatprep.subr.mxu0 0.0
    %3118 = vmatpush1.msra.mxu0 0.0
    %3119 = vmatprep.subr.mxu0 0.0
    %3120 = vmatpush1.msra.mxu0 0.0
    %3121 = vmatprep.subr.mxu0 0.0
    %3122 = vmatpush1.msra.mxu0 0.0
    %3123 = vmatprep.subr.mxu0 0.0
    %3124 = vmatpush1.msra.mxu0 0.0
    %3125 = vmatprep.subr.mxu0 0.0
    %3126 = vmatpush1.msra.mxu0 0.0
    %3127 = vmatprep.subr.mxu0 0.0
    %3128 = vmatpush1.msra.mxu0 0.0
    %3129 = vmatprep.subr.mxu0 0.0
    %3130 = vmatpush1.msra.mxu0 %v2728
    %3131 = vmatprep.subr.mxu0 0.0
    %3132 = vmatpush2.msra.mxu0 0.0
    %3133 = vmatprep.subr.mxu0 0.0
    %3134 = vmatpush2.msra.mxu0 0.0
    %3135 = vmatprep.subr.mxu0 0.0
    %3136 = vmatpush2.msra.mxu0 0.0
    %3137 = vmatprep.subr.mxu0 0.0
    %3138 = vmatpush2.msra.mxu0 0.0
    %3139 = vmatprep.subr.mxu0 0.0
    %3140 = vmatpush2.msra.mxu0 0.0
    %3141 = vmatprep.subr.mxu0 0.0
    %3142 = vmatpush2.msra.mxu0 0.0
    %3143 = vmatprep.subr.mxu0 0.0
    %3144 = vmatpush2.msra.mxu0 0.0
    %3145 = vmatprep.subr.mxu0 0.0
    %3146 = vmatpush2.msra.mxu0 0.0
    %3147 = vmatprep.subr.mxu0 0.0
    %3148 = vmatpush2.msra.mxu0 0.0
    %3149 = vmatprep.subr.mxu0 0.0
    %3150 = vmatpush2.msra.mxu0 0.0
    %3151 = vmatprep.subr.mxu0 0.0
    %3152 = vmatpush2.msra.mxu0 0.0
    %3153 = vmatprep.subr.mxu0 0.0
    %3154 = vmatpush2.msra.mxu0 0.0
    %3155 = vmatprep.subr.mxu0 0.0
    %3156 = vmatpush2.msra.mxu0 0.0
    %3157 = vmatprep.subr.mxu0 0.0
    %3158 = vmatpush2.msra.mxu0 0.0
    %3159 = vmatprep.subr.mxu0 0.0
    %3160 = vmatpush2.msra.mxu0 0.0
    %3161 = vmatprep.subr.mxu0 0.0
    %3162 = vmatpush2.msra.mxu0 0.0
    %3163 = vmatprep.mubr.f32.mxu0 0.0
    %3164 = vmatmul.mubr.f32.gmra.mxu0 %v3097
    %v3165 = vpop.f32.mrf.mxu0
    %v3166 = vadd.f32 0.0, %v3165
    %v3167 = vpop.f32.mrf.mxu0
    %3168 = vdwg.mxu0
    %v3170 = vsel %vm1410, %v2644, 0
    %3172 = vmatprep.subr.mxu0 0.0
    %3173 = vmatpush1.msra.mxu0 0.0
    %3174 = vmatprep.subr.mxu0 0.0
    %3175 = vmatpush1.msra.mxu0 0.0
    %3176 = vmatprep.subr.mxu0 0.0
    %3177 = vmatpush1.msra.mxu0 0.0
    %3178 = vmatprep.subr.mxu0 0.0
    %3179 = vmatpush1.msra.mxu0 0.0
    %3180 = vmatprep.subr.mxu0 0.0
    %3181 = vmatpush1.msra.mxu0 0.0
    %3182 = vmatprep.subr.mxu0 0.0
    %3183 = vmatpush1.msra.mxu0 0.0
    %3184 = vmatprep.subr.mxu0 0.0
    %3185 = vmatpush1.msra.mxu0 0.0
    %3186 = vmatprep.subr.mxu0 0.0
    %3187 = vmatpush1.msra.mxu0 0.0
    %3188 = vmatprep.subr.mxu0 0.0
    %3189 = vmatpush1.msra.mxu0 0.0
    %3190 = vmatprep.subr.mxu0 0.0
    %3191 = vmatpush1.msra.mxu0 0.0
    %3192 = vmatprep.subr.mxu0 0.0
    %3193 = vmatpush1.msra.mxu0 0.0
    %3194 = vmatprep.subr.mxu0 0.0
    %3195 = vmatpush1.msra.mxu0 0.0
    %3196 = vmatprep.subr.mxu0 0.0
    %3197 = vmatpush1.msra.mxu0 0.0
    %3198 = vmatprep.subr.mxu0 0.0
    %3199 = vmatpush1.msra.mxu0 0.0
    %3200 = vmatprep.subr.mxu0 0.0
    %3201 = vmatpush1.msra.mxu0 0.0
    %3202 = vmatprep.subr.mxu0 0.0
    %3203 = vmatpush1.msra.mxu0 %v2729
    %3204 = vmatprep.subr.mxu0 0.0
    %3205 = vmatpush2.msra.mxu0 0.0
    %3206 = vmatprep.subr.mxu0 0.0
    %3207 = vmatpush2.msra.mxu0 0.0
    %3208 = vmatprep.subr.mxu0 0.0
    %3209 = vmatpush2.msra.mxu0 0.0
    %3210 = vmatprep.subr.mxu0 0.0
    %3211 = vmatpush2.msra.mxu0 0.0
    %3212 = vmatprep.subr.mxu0 0.0
    %3213 = vmatpush2.msra.mxu0 0.0
    %3214 = vmatprep.subr.mxu0 0.0
    %3215 = vmatpush2.msra.mxu0 0.0
    %3216 = vmatprep.subr.mxu0 0.0
    %3217 = vmatpush2.msra.mxu0 0.0
    %3218 = vmatprep.subr.mxu0 0.0
    %3219 = vmatpush2.msra.mxu0 0.0
    %3220 = vmatprep.subr.mxu0 0.0
    %3221 = vmatpush2.msra.mxu0 0.0
    %3222 = vmatprep.subr.mxu0 0.0
    %3223 = vmatpush2.msra.mxu0 0.0
    %3224 = vmatprep.subr.mxu0 0.0
    %3225 = vmatpush2.msra.mxu0 0.0
    %3226 = vmatprep.subr.mxu0 0.0
    %3227 = vmatpush2.msra.mxu0 0.0
    %3228 = vmatprep.subr.mxu0 0.0
    %3229 = vmatpush2.msra.mxu0 0.0
    %3230 = vmatprep.subr.mxu0 0.0
    %3231 = vmatpush2.msra.mxu0 0.0
    %3232 = vmatprep.subr.mxu0 0.0
    %3233 = vmatpush2.msra.mxu0 0.0
    %3234 = vmatprep.subr.mxu0 0.0
    %3235 = vmatpush2.msra.mxu0 0.0
    %3236 = vmatprep.mubr.f32.mxu0 0.0
    %3237 = vmatmul.mubr.f32.gmra.mxu0 %v3170
    %v3238 = vpop.f32.mrf.mxu0
    %v3239 = vadd.f32 0.0, %v3238
    %v3240 = vpop.f32.mrf.mxu0
    %3241 = vdwg.mxu0
    %v3243 = vsel %vm1410, %v2720, 0
    %3245 = vmatprep.subr.mxu0 0.0
    %3246 = vmatpush1.msra.mxu0 0.0
    %3247 = vmatprep.subr.mxu0 0.0
    %3248 = vmatpush1.msra.mxu0 0.0
    %3249 = vmatprep.subr.mxu0 0.0
    %3250 = vmatpush1.msra.mxu0 0.0
    %3251 = vmatprep.subr.mxu0 0.0
    %3252 = vmatpush1.msra.mxu0 0.0
    %3253 = vmatprep.subr.mxu0 0.0
    %3254 = vmatpush1.msra.mxu0 0.0
    %3255 = vmatprep.subr.mxu0 0.0
    %3256 = vmatpush1.msra.mxu0 0.0
    %3257 = vmatprep.subr.mxu0 0.0
    %3258 = vmatpush1.msra.mxu0 0.0
    %3259 = vmatprep.subr.mxu0 0.0
    %3260 = vmatpush1.msra.mxu0 0.0
    %3261 = vmatprep.subr.mxu0 0.0
    %3262 = vmatpush1.msra.mxu0 0.0
    %3263 = vmatprep.subr.mxu0 0.0
    %3264 = vmatpush1.msra.mxu0 0.0
    %3265 = vmatprep.subr.mxu0 0.0
    %3266 = vmatpush1.msra.mxu0 0.0
    %3267 = vmatprep.subr.mxu0 0.0
    %3268 = vmatpush1.msra.mxu0 0.0
    %3269 = vmatprep.subr.mxu0 0.0
    %3270 = vmatpush1.msra.mxu0 0.0
    %3271 = vmatprep.subr.mxu0 0.0
    %3272 = vmatpush1.msra.mxu0 0.0
    %3273 = vmatprep.subr.mxu0 0.0
    %3274 = vmatpush1.msra.mxu0 0.0
    %3275 = vmatprep.subr.mxu0 0.0
    %3276 = vmatpush1.msra.mxu0 %v2730
    %3277 = vmatprep.subr.mxu0 0.0
    %3278 = vmatpush2.msra.mxu0 0.0
    %3279 = vmatprep.subr.mxu0 0.0
    %3280 = vmatpush2.msra.mxu0 0.0
    %3281 = vmatprep.subr.mxu0 0.0
    %3282 = vmatpush2.msra.mxu0 0.0
    %3283 = vmatprep.subr.mxu0 0.0
    %3284 = vmatpush2.msra.mxu0 0.0
    %3285 = vmatprep.subr.mxu0 0.0
    %3286 = vmatpush2.msra.mxu0 0.0
    %3287 = vmatprep.subr.mxu0 0.0
    %3288 = vmatpush2.msra.mxu0 0.0
    %3289 = vmatprep.subr.mxu0 0.0
    %3290 = vmatpush2.msra.mxu0 0.0
    %3291 = vmatprep.subr.mxu0 0.0
    %3292 = vmatpush2.msra.mxu0 0.0
    %3293 = vmatprep.subr.mxu0 0.0
    %3294 = vmatpush2.msra.mxu0 0.0
    %3295 = vmatprep.subr.mxu0 0.0
    %3296 = vmatpush2.msra.mxu0 0.0
    %3297 = vmatprep.subr.mxu0 0.0
    %3298 = vmatpush2.msra.mxu0 0.0
    %3299 = vmatprep.subr.mxu0 0.0
    %3300 = vmatpush2.msra.mxu0 0.0
    %3301 = vmatprep.subr.mxu0 0.0
    %3302 = vmatpush2.msra.mxu0 0.0
    %3303 = vmatprep.subr.mxu0 0.0
    %3304 = vmatpush2.msra.mxu0 0.0
    %3305 = vmatprep.subr.mxu0 0.0
    %3306 = vmatpush2.msra.mxu0 0.0
    %3307 = vmatprep.subr.mxu0 0.0
    %3308 = vmatpush2.msra.mxu0 0.0
    %3309 = vmatprep.mubr.f32.mxu0 0.0
    %3310 = vmatmul.mubr.f32.gmra.mxu0 %v3243
    %v3311 = vpop.f32.mrf.mxu0
    %v3312 = vadd.f32 0.0, %v3311
    %v3313 = vpop.f32.mrf.mxu0
    %3314 = vdwg.mxu0
    %v3315 = vadd.f32 %v2801, %v2874
    %v3316 = vadd.f32 %v3093, %v3166
    %v3317 = vadd.f32 %v3315, %v2947
    %v3318 = vadd.f32 %v3316, %v3239
    %v3319 = vadd.f32 %v3317, %v3020
    %v3320 = vadd.f32 %v3318, %v3312
    %v3321 = vld [vmem:[%s8] sm:$0x1]
    %v3322 = vlaneseq
    %v3323 = vshrl.u32 %v3322, 7
    %v3324 = vsub.s32 0, %v3323
    %v3325 = vrot.slane %v3321, %v3324
    %v3326 = vadd.f32 %v3319, %v3325
    %v3327 = vadd.f32 %v3320, %v3325
    %v3328 = vadd.f32 %v3326, %v33
    %v3329 = vadd.f32 %v3327, %v37
    %v3330 = vld [vmem:[%s8 + $0x1] sm:$0x1]
    %v3331 = vld [vmem:[%s8 + $0x2] sm:$0x1]
    %v3332 = vsel %vm137, %v3328, 0.0
    %3333 = vadd.xlane.f32.xlu0 %v3332
    %v3334 = vpop.xlane.xlu0 %3333
    %v3335 = vsel %vm137, %v3329, 0.0
    %3336 = vadd.xlane.f32.xlu0 %v3335
    %v3337 = vpop.xlane.xlu0 %3336
    %v3338 = vrcp.pop 32.0
    %v3339 = vmul.f32 %v3334, %v3338
    %v3340 = vmul.f32 %v3337, %v3338
    %v3341 = vsub.f32 %v3328, %v3339
    %v3342 = vsub.f32 %v3329, %v3340
    %v3343 = vmul.f32 %v3341, %v3341
    %v3344 = vmul.f32 %v3342, %v3342
    %v3345 = vsel %vm137, %v3343, 0.0
    %3346 = vadd.xlane.f32.xlu0 %v3345
    %v3347 = vpop.xlane.xlu0 %3346
    %v3348 = vsel %vm137, %v3344, 0.0
    %3349 = vadd.xlane.f32.xlu0 %v3348
    %v3350 = vpop.xlane.xlu0 %3349
    %v3351 = vmul.f32 %v3347, %v3338
    %v3352 = vmul.f32 %v3350, %v3338
    %v3353 = vadd.f32 %v3351, 1e-05
    %v3354 = vadd.f32 %v3352, 1e-05
    %v3355 = vrsqrt.pop %v3353
    %v3356 = vrsqrt.pop %v3354
    %v3357 = vmul.f32 %v3341, %v3355
    %v3358 = vmul.f32 %v3342, %v3356
    %v3359 = vlaneseq
    %v3360 = vshrl.u32 %v3359, 7
    %v3361 = vsub.s32 0, %v3360
    %v3362 = vrot.slane %v3330, %v3361
    %v3363 = vmul.f32 %v3357, %v3362
    %v3364 = vmul.f32 %v3358, %v3362
    %v3365 = vlaneseq
    %v3366 = vshrl.u32 %v3365, 7
    %v3367 = vsub.s32 0, %v3366
    %v3368 = vrot.slane %v3331, %v3367
    %v3369 = vadd.f32 %v3363, %v3368
    %v3370 = vadd.f32 %v3364, %v3368
    %v3371 = vld [vmem:[%s6] sm:$0xff]
    %v3372 = vld [vmem:[%s6 + $0x8] sm:$0xff]
    %v3373 = vld [vmem:[%s6 + $0x10] sm:$0xff]
    %v3374 = vld [vmem:[%s6 + $0x18] sm:$0xff]
    %v3375 = vld [vmem:[%s8 + $0x6] sm:$0x1]
    %v3376 = vlaneseq
    %v3377 = vshrl.u32 %v3376, 7
    %v3378 = vsub.s32 0, %v3377
    %v3379 = vrot.slane %v3375, %v3378
    %v3381 = vsel %vm137, %v3369, 0
    %v3384 = vsel %vm137, %v3370, 0
    %3386 = vmatprep.subr.mxu0 0.0
    %3387 = vmatpush1.msra.mxu0 0.0
    %3388 = vmatprep.subr.mxu0 0.0
    %3389 = vmatpush1.msra.mxu0 0.0
    %3390 = vmatprep.subr.mxu0 0.0
    %3391 = vmatpush1.msra.mxu0 0.0
    %3392 = vmatprep.subr.mxu0 0.0
    %3393 = vmatpush1.msra.mxu0 0.0
    %3394 = vmatprep.subr.mxu0 0.0
    %3395 = vmatpush1.msra.mxu0 0.0
    %3396 = vmatprep.subr.mxu0 0.0
    %3397 = vmatpush1.msra.mxu0 0.0
    %3398 = vmatprep.subr.mxu0 0.0
    %3399 = vmatpush1.msra.mxu0 0.0
    %3400 = vmatprep.subr.mxu0 0.0
    %3401 = vmatpush1.msra.mxu0 0.0
    %3402 = vmatprep.subr.mxu0 0.0
    %3403 = vmatpush1.msra.mxu0 0.0
    %3404 = vmatprep.subr.mxu0 0.0
    %3405 = vmatpush1.msra.mxu0 0.0
    %3406 = vmatprep.subr.mxu0 0.0
    %3407 = vmatpush1.msra.mxu0 0.0
    %3408 = vmatprep.subr.mxu0 0.0
    %3409 = vmatpush1.msra.mxu0 0.0
    %3410 = vmatprep.subr.mxu0 0.0
    %3411 = vmatpush1.msra.mxu0 %v3374
    %3412 = vmatprep.subr.mxu0 0.0
    %3413 = vmatpush1.msra.mxu0 %v3373
    %3414 = vmatprep.subr.mxu0 0.0
    %3415 = vmatpush1.msra.mxu0 %v3372
    %3416 = vmatprep.subr.mxu0 0.0
    %3417 = vmatpush1.msra.mxu0 %v3371
    %3418 = vmatprep.subr.mxu0 0.0
    %3419 = vmatpush2.msra.mxu0 0.0
    %3420 = vmatprep.subr.mxu0 0.0
    %3421 = vmatpush2.msra.mxu0 0.0
    %3422 = vmatprep.subr.mxu0 0.0
    %3423 = vmatpush2.msra.mxu0 0.0
    %3424 = vmatprep.subr.mxu0 0.0
    %3425 = vmatpush2.msra.mxu0 0.0
    %3426 = vmatprep.subr.mxu0 0.0
    %3427 = vmatpush2.msra.mxu0 0.0
    %3428 = vmatprep.subr.mxu0 0.0
    %3429 = vmatpush2.msra.mxu0 0.0
    %3430 = vmatprep.subr.mxu0 0.0
    %3431 = vmatpush2.msra.mxu0 0.0
    %3432 = vmatprep.subr.mxu0 0.0
    %3433 = vmatpush2.msra.mxu0 0.0
    %3434 = vmatprep.subr.mxu0 0.0
    %3435 = vmatpush2.msra.mxu0 0.0
    %3436 = vmatprep.subr.mxu0 0.0
    %3437 = vmatpush2.msra.mxu0 0.0
    %3438 = vmatprep.subr.mxu0 0.0
    %3439 = vmatpush2.msra.mxu0 0.0
    %3440 = vmatprep.subr.mxu0 0.0
    %3441 = vmatpush2.msra.mxu0 0.0
    %3442 = vmatprep.subr.mxu0 0.0
    %3443 = vmatpush2.msra.mxu0 0.0
    %3444 = vmatprep.subr.mxu0 0.0
    %3445 = vmatpush2.msra.mxu0 0.0
    %3446 = vmatprep.subr.mxu0 0.0
    %3447 = vmatpush2.msra.mxu0 0.0
    %3448 = vmatprep.subr.mxu0 0.0
    %3449 = vmatpush2.msra.mxu0 0.0
    %3450 = vmatprep.mubr.f32.mxu0 0.0
    %3451 = vmatmul.mubr.f32.gmra.mxu0 %v3381
    %v3452 = vpop.f32.mrf.mxu0
    %v3453 = vadd.f32 %v3379, %v3452
    %v3454 = vpop.f32.mrf.mxu0
    %3455 = vmatprep.mubr.f32.mxu0 0.0
    %3456 = vmatmul.mubr.f32.gmra.mxu0 %v3384
    %v3457 = vpop.f32.mrf.mxu0
    %v3458 = vadd.f32 %v3379, %v3457
    %v3459 = vpop.f32.mrf.mxu0
    %3460 = vdwg.mxu0
    %v3461 = vmax.f32 %v3453, 0.0
    %v3462 = vmax.f32 %v3458, 0.0
    %v3463 = vld [vmem:[%s7] sm:$0xff]
    %v3464 = vld [vmem:[%s7 + $0x8] sm:$0xff]
    %v3465 = vld [vmem:[%s7 + $0x10] sm:$0xff]
    %v3466 = vld [vmem:[%s7 + $0x18] sm:$0xff]
    %v3467 = vld [vmem:[%s7 + $0x20] sm:$0xff]
    %v3468 = vld [vmem:[%s7 + $0x28] sm:$0xff]
    %v3469 = vld [vmem:[%s7 + $0x30] sm:$0xff]
    %v3470 = vld [vmem:[%s7 + $0x38] sm:$0xff]
    %v3471 = vld [vmem:[%s8 + $0x3] sm:$0x1]
    %v3472 = vlaneseq
    %v3473 = vshrl.u32 %v3472, 7
    %v3474 = vsub.s32 0, %v3473
    %v3475 = vrot.slane %v3471, %v3474
    %vm3476 = vcmask 523264
    %v3478 = vsel %vm3476, %v3461, 0
    %v3481 = vsel %vm3476, %v3462, 0
    %3483 = vmatprep.subr.mxu0 0.0
    %3484 = vmatpush1.msra.mxu0 0.0
    %3485 = vmatprep.subr.mxu0 0.0
    %3486 = vmatpush1.msra.mxu0 0.0
    %3487 = vmatprep.subr.mxu0 0.0
    %3488 = vmatpush1.msra.mxu0 0.0
    %3489 = vmatprep.subr.mxu0 0.0
    %3490 = vmatpush1.msra.mxu0 0.0
    %3491 = vmatprep.subr.mxu0 0.0
    %3492 = vmatpush1.msra.mxu0 0.0
    %3493 = vmatprep.subr.mxu0 0.0
    %3494 = vmatpush1.msra.mxu0 0.0
    %3495 = vmatprep.subr.mxu0 0.0
    %3496 = vmatpush1.msra.mxu0 0.0
    %3497 = vmatprep.subr.mxu0 0.0
    %3498 = vmatpush1.msra.mxu0 0.0
    %3499 = vmatprep.subr.mxu0 0.0
    %3500 = vmatpush1.msra.mxu0 %v3470
    %3501 = vmatprep.subr.mxu0 0.0
    %3502 = vmatpush1.msra.mxu0 %v3469
    %3503 = vmatprep.subr.mxu0 0.0
    %3504 = vmatpush1.msra.mxu0 %v3468
    %3505 = vmatprep.subr.mxu0 0.0
    %3506 = vmatpush1.msra.mxu0 %v3467
    %3507 = vmatprep.subr.mxu0 0.0
    %3508 = vmatpush1.msra.mxu0 %v3466
    %3509 = vmatprep.subr.mxu0 0.0
    %3510 = vmatpush1.msra.mxu0 %v3465
    %3511 = vmatprep.subr.mxu0 0.0
    %3512 = vmatpush1.msra.mxu0 %v3464
    %3513 = vmatprep.subr.mxu0 0.0
    %3514 = vmatpush1.msra.mxu0 %v3463
    %3515 = vmatprep.subr.mxu0 0.0
    %3516 = vmatpush2.msra.mxu0 0.0
    %3517 = vmatprep.subr.mxu0 0.0
    %3518 = vmatpush2.msra.mxu0 0.0
    %3519 = vmatprep.subr.mxu0 0.0
    %3520 = vmatpush2.msra.mxu0 0.0
    %3521 = vmatprep.subr.mxu0 0.0
    %3522 = vmatpush2.msra.mxu0 0.0
    %3523 = vmatprep.subr.mxu0 0.0
    %3524 = vmatpush2.msra.mxu0 0.0
    %3525 = vmatprep.subr.mxu0 0.0
    %3526 = vmatpush2.msra.mxu0 0.0
    %3527 = vmatprep.subr.mxu0 0.0
    %3528 = vmatpush2.msra.mxu0 0.0
    %3529 = vmatprep.subr.mxu0 0.0
    %3530 = vmatpush2.msra.mxu0 0.0
    %3531 = vmatprep.subr.mxu0 0.0
    %3532 = vmatpush2.msra.mxu0 0.0
    %3533 = vmatprep.subr.mxu0 0.0
    %3534 = vmatpush2.msra.mxu0 0.0
    %3535 = vmatprep.subr.mxu0 0.0
    %3536 = vmatpush2.msra.mxu0 0.0
    %3537 = vmatprep.subr.mxu0 0.0
    %3538 = vmatpush2.msra.mxu0 0.0
    %3539 = vmatprep.subr.mxu0 0.0
    %3540 = vmatpush2.msra.mxu0 0.0
    %3541 = vmatprep.subr.mxu0 0.0
    %3542 = vmatpush2.msra.mxu0 0.0
    %3543 = vmatprep.subr.mxu0 0.0
    %3544 = vmatpush2.msra.mxu0 0.0
    %3545 = vmatprep.subr.mxu0 0.0
    %3546 = vmatpush2.msra.mxu0 0.0
    %3547 = vmatprep.mubr.f32.mxu0 0.0
    %3548 = vmatmul.mubr.f32.gmra.mxu0 %v3478
    %v3549 = vpop.f32.mrf.mxu0
    %v3550 = vadd.f32 %v3475, %v3549
    %v3551 = vpop.f32.mrf.mxu0
    %3552 = vmatprep.mubr.f32.mxu0 0.0
    %3553 = vmatmul.mubr.f32.gmra.mxu0 %v3481
    %v3554 = vpop.f32.mrf.mxu0
    %v3555 = vadd.f32 %v3475, %v3554
    %v3556 = vpop.f32.mrf.mxu0
    %3557 = vdwg.mxu0
    %v3558 = vadd.f32 %v3550, %v3369
    %v3559 = vadd.f32 %v3555, %v3370
    %v3560 = vld [vmem:[%s8 + $0x4] sm:$0x1]
    %v3561 = vld [vmem:[%s8 + $0x5] sm:$0x1]
    %v3562 = vsel %vm137, %v3558, 0.0
    %3563 = vadd.xlane.f32.xlu0 %v3562
    %v3564 = vpop.xlane.xlu0 %3563
    %v3565 = vsel %vm137, %v3559, 0.0
    %3566 = vadd.xlane.f32.xlu0 %v3565
    %v3567 = vpop.xlane.xlu0 %3566
    %v3568 = vmul.f32 %v3564, %v3338
    %v3569 = vmul.f32 %v3567, %v3338
    %v3570 = vsub.f32 %v3558, %v3568
    %v3571 = vsub.f32 %v3559, %v3569
    %v3572 = vmul.f32 %v3570, %v3570
    %v3573 = vmul.f32 %v3571, %v3571
    %v3574 = vsel %vm137, %v3572, 0.0
    %3575 = vadd.xlane.f32.xlu0 %v3574
    %v3576 = vpop.xlane.xlu0 %3575
    %v3577 = vsel %vm137, %v3573, 0.0
    %3578 = vadd.xlane.f32.xlu0 %v3577
    %v3579 = vpop.xlane.xlu0 %3578
    %v3580 = vmul.f32 %v3576, %v3338
    %v3581 = vmul.f32 %v3579, %v3338
    %v3582 = vadd.f32 %v3580, 1e-05
    %v3583 = vadd.f32 %v3581, 1e-05
    %v3584 = vrsqrt.pop %v3582
    %v3585 = vrsqrt.pop %v3583
    %v3586 = vmul.f32 %v3570, %v3584
    %v3587 = vmul.f32 %v3571, %v3585
    %v3588 = vlaneseq
    %v3589 = vshrl.u32 %v3588, 7
    %v3590 = vsub.s32 0, %v3589
    %v3591 = vrot.slane %v3560, %v3590
    %v3592 = vmul.f32 %v3586, %v3591
    %v3593 = vmul.f32 %v3587, %v3591
    %v3594 = vlaneseq
    %v3595 = vshrl.u32 %v3594, 7
    %v3596 = vsub.s32 0, %v3595
    %v3597 = vrot.slane %v3561, %v3596
    %v3598 = vadd.f32 %v3592, %v3597
    %v3599 = vadd.f32 %v3593, %v3597
    %3600 = vst.msk [vmem:[#allocation2] sm:$0xff] %vm137, %v3598
    %3601 = vst.msk [vmem:[#allocation2 + $0x8] sm:$0xff] %vm137, %v3599
    // Predicated region
    $region38: #{tpu_custom_call.1} parent=1 // pred_check
      _
    $region39: #{tpu_custom_call.1} parent=1 // pred_check_branch
      %3603 = sbr.rel (0) target = $region41
    $region40: #{tpu_custom_call.1} parent=1 // pred_region
      %s3605 = ssub.s32 256, 256
      %3606 = vsyncadd [#allocation3], %s3605
      %s3607 = sshll.u32 [#allocation2], 4
      %s3608 = int_to_ptr.vmem [resolvable:$true] %s3607
      %3613 = dma.vmem_to_hbm [thread:$0]  %s3608, 256, %s9, [#allocation3], 128, 128, 8
    $region41: #{tpu_custom_call.1} parent=1 // pred_fallthru
      _
    // Predicated region
    $region42: #{tpu_custom_call.1} parent=1 // pred_check
      _
    $region43: #{tpu_custom_call.1} parent=1 // pred_check_branch
      %3615 = sbr.rel (0) target = $region45
    $region44: #{tpu_custom_call.1} parent=1 // pred_region
      %3616 = dma.done [#allocation3], 256
    $region45: #{tpu_custom_call.1} parent=1 // pred_fallthru
      _
    %3617 = vsyncpa [#allocation3], 1

</llo_original>
